<compile_context>
chip_gen: v7x
topology: tpu7x:2x2x1
jax: 0.10.0
libtpu: 0.0.40
codegen_flags: <defaults>
</compile_context>

<pallas_src>
import numpy as np
import jax
import jax.numpy as jnp
from jax.experimental import pallas as pl
from jax.experimental.pallas import tpu as pltpu


# ---------------------------------------------------------------------------
# Fully fused kernel
# ---------------------------------------------------------------------------
def _siamese_kernel(p1_ref, w1_ref, b1_ref, w2_ref, b2_ref,
                    wf1_ref, bf1_ref, wf2_ref, bf2_ref, wf3_ref, bf3_ref,
                    o_ref):
    f32 = jnp.float32
    bf16 = jnp.bfloat16

    # ---- conv1: one banded matmul on row-patches, rows ordered (di, e, q, n)
    # where oh = 4q + 2e + di.  Columns ordered (dj, pw, oc) in 256-lane halves.
    y1 = jnp.dot(p1_ref[...], w1_ref[...], preferred_element_type=f32)  # (24*NB, 512)
    half = y1.shape[0] // 2
    a = jnp.maximum(y1[:half], y1[half:])                 # pool over oh (di)
    pooled1 = jnp.maximum(a[:, :256], a[:, 256:]) + b1_ref[...]   # pool over ow (dj) + bias
    # pooled1: (12*NB, 256); rows (ph%2, ph//2, n); lanes pw*20+oc (240.. are 0)

    nb = pooled1.shape[0] // 12

    # ---- conv2: per output-row parity (di2), 5 shifted banded matmuls over
    # contiguous, tile-aligned row slices of pooled1; then 2x2 max-pool.
    def conv2_half(di2):
        acc = None
        for kh in range(5):
            c = di2 + kh                                   # ph = 2*ph2 + c
            start = ((c % 2) * 6 + c // 2) * nb            # multiple of 8
            lhs = pooled1[start:start + 4 * nb, :].astype(bf16)   # rows (ph2, n)
            t = jnp.dot(lhs, w2_ref[kh], preferred_element_type=f32)
            acc = t if acc is None else acc + t
        return jnp.maximum(acc[:, :256], acc[:, 256:])     # pool over ow2 (dj2)

    pooled2 = jnp.maximum(conv2_half(0), conv2_half(1)) + b2_ref[...]
    # pooled2: (4*NB, 256); rows (ph2, n); lanes pw2*50+oc2 (200.. are 0)

    # ---- fc1 (800->500, padded to 512): 4 accumulated slab matmuls + ReLU
    h = None
    for ph2 in range(4):
        lhs = pooled2[ph2 * nb:(ph2 + 1) * nb, :].astype(bf16)
        t = jnp.dot(lhs, wf1_ref[ph2], preferred_element_type=f32)
        h = t if h is None else h + t
    h = jnp.maximum(h + bf1_ref[...], 0.0)                 # (NB, 512), ReLU

    # ---- fc2 (500->10, padded 512->128) and fc3 (10->2, padded 128->128)
    g = jnp.dot(h.astype(bf16), wf2_ref[...], preferred_element_type=f32) + bf2_ref[...]
    o = jnp.dot(g.astype(bf16), wf3_ref[...], preferred_element_type=f32) + bf3_ref[...]
    o_ref[...] = o.astype(o_ref.dtype)                     # (NB, 128) lane-dense


# ---------------------------------------------------------------------------
# Tiny XLA prologue: conv1 row-patch matrix (5 taps, no corner duplication)
# ---------------------------------------------------------------------------
def _conv1_row_patches(x):
    """x: (NBp, 28, 28) f32 -> (24*NBp, 256) bf16, rows ordered (di, e, q, n),
    lanes kh*28 + w (zero-padded 140 -> 256)."""
    nbp = x.shape[0]
    xt = jnp.transpose(x, (1, 0, 2))                       # (28, NBp, 28): (h, n, w)
    slabs = []
    for di in range(2):
        for e in range(2):
            r0 = 2 * e + di
            taps = [xt[r0 + kh: r0 + kh + 21: 4] for kh in range(5)]  # each (6, NBp, 28)
            t = jnp.concatenate(taps, axis=-1)             # (6, NBp, 140): (q, n, kh*28+w)
            slabs.append(t.reshape(6 * nbp, 140))
    p1 = jnp.concatenate(slabs, axis=0)                    # (24*NBp, 140)
    p1 = jnp.pad(p1, ((0, 0), (0, 116)))                   # lane-pad K to 256
    return p1.astype(jnp.bfloat16)


# ---------------------------------------------------------------------------
# Forward pass (both Siamese branches batched together, one pallas_call)
# ---------------------------------------------------------------------------
def forward_batched(x_nchw, params):
    """x_nchw: (NB, 1, 28, 28) -> (NB, 2)."""
    nb = x_nchw.shape[0]
    nbp = max(8, ((nb + 7) // 8) * 8)                      # tile-align batch to 8
    x = x_nchw[:, 0, :, :].astype(jnp.float32)             # (NB, 28, 28)
    if nbp != nb:
        x = jnp.pad(x, ((0, nbp - nb), (0, 0), (0, 0)))

    p1 = _conv1_row_patches(x)                             # (24*NBp, 256) bf16

    def full(shp):
        return pl.BlockSpec(shp, lambda *_: (0,) * len(shp))

    out = pl.pallas_call(
        _siamese_kernel,
        out_shape=jax.ShapeDtypeStruct((nbp, 128), jnp.float32),
        grid=(1,),
        in_specs=[
            full((24 * nbp, 256)),                         # conv1 row-patches
            full((256, 512)), full((1, 256)),              # conv1 banded W, bias
            full((5, 256, 512)), full((1, 256)),           # conv2 banded W (per kh), bias
            full((4, 256, 512)), full((1, 512)),           # fc1 slabs (per ph2), bias
            full((512, 128)), full((1, 128)),              # fc2
            full((128, 128)), full((1, 128)),              # fc3
        ],
        out_specs=full((nbp, 128)),
        compiler_params=pltpu.CompilerParams(
            dimension_semantics=("arbitrary",),
            vmem_limit_bytes=32 * 1024 * 1024,
        ),
    )(p1, params["w1"], params["b1"], params["w2"], params["b2"],
      params["wf1"], params["bf1"], params["wf2"], params["bf2"],
      params["wf3"], params["bf3"])

    return out[:nb, :2]


@jax.jit
def siamese_forward(input1, input2, params):
    b = input1.shape[0]
    x = jnp.concatenate([input1, input2], axis=0)          # both branches, one pass
    out = forward_batched(x, params)
    return out[:b], out[b:]


# ---------------------------------------------------------------------------
# Parameters: deterministic synthetic init in PyTorch layouts, then rewritten
# once (with numpy, at init time) into the banded / padded matmul layouts.
# ---------------------------------------------------------------------------
def init_params(key):
    ks = jax.random.split(key, 10)

    def nrm(k, shape, scale):
        return np.asarray(jax.random.normal(k, shape, dtype=jnp.float32)) * scale

    # PyTorch-layout parameters.
    w1 = nrm(ks[0], (20, 1, 5, 5), 0.1)      # Conv2d(1, 20, 5)
    b1 = nrm(ks[1], (20,), 0.1)
    w2 = nrm(ks[2], (50, 20, 5, 5), 0.05)    # Conv2d(20, 50, 5)
    b2 = nrm(ks[3], (50,), 0.05)
    fw1 = nrm(ks[4], (500, 800), 0.03)       # Linear(800, 500)
    fb1 = nrm(ks[5], (500,), 0.03)
    fw2 = nrm(ks[6], (10, 500), 0.05)        # Linear(500, 10)
    fb2 = nrm(ks[7], (10,), 0.05)
    fw3 = nrm(ks[8], (2, 10), 0.3)           # Linear(10, 2)
    fb3 = nrm(ks[9], (2,), 0.3)

    # conv1 banded weight: row = kh*28 + (ow + kw), col = dj*256 + pw*20 + oc,
    # where ow = 2*pw + dj.  K lane-padded 140 -> 256.
    W1 = np.zeros((256, 512), np.float32)
    for kh in range(5):
        for kw in range(5):
            for ow in range(24):
                dj, pw = ow % 2, ow // 2
                c0 = dj * 256 + pw * 20
                W1[kh * 28 + ow + kw, c0:c0 + 20] = w1[:, 0, kh, kw]
    B1 = np.zeros((1, 256), np.float32)
    B1[0, :240] = np.tile(b1, 12)            # bias per (pw, oc); added post-pool

    # conv2 per-kh banded weights: row = (ow2+kw)*20 + ic (== pooled1 lane),
    # col = dj2*256 + pw2*50 + oc2, where ow2 = 2*pw2 + dj2.
    W2 = np.zeros((5, 256, 512), np.float32)
    for kh in range(5):
        for kw in range(5):
            blk = w2[:, :, kh, kw].T         # (ic, oc2)
            for ow2 in range(8):
                dj2, pw2 = ow2 % 2, ow2 // 2
                r0 = (ow2 + kw) * 20
                c0 = dj2 * 256 + pw2 * 50
                W2[kh, r0:r0 + 20, c0:c0 + 50] = blk
    B2 = np.zeros((1, 256), np.float32)
    B2[0, :200] = np.tile(b2, 4)

    # fc1 split into 4 per-ph2 slabs; rows pw2*50 + oc2 match pooled2 lanes,
    # reproducing PyTorch's NCHW view(B, -1) flatten order (oc2, ph2, pw2).
    Wf1 = np.zeros((4, 256, 512), np.float32)
    f = fw1.reshape(500, 50, 4, 4)           # [j, oc2, ph2, pw2]
    for ph2 in range(4):
        blk = np.transpose(f[:, :, ph2, :], (2, 1, 0)).reshape(200, 500)
        Wf1[ph2, :200, :500] = blk
    Bf1 = np.zeros((1, 512), np.float32)
    Bf1[0, :500] = fb1

    Wf2 = np.zeros((512, 128), np.float32)   # Linear(500, 10), lane-padded
    Wf2[:500, :10] = fw2.T
    Bf2 = np.zeros((1, 128), np.float32)
    Bf2[0, :10] = fb2

    Wf3 = np.zeros((128, 128), np.float32)   # Linear(10, 2), lane-padded
    Wf3[:10, :2] = fw3.T
    Bf3 = np.zeros((1, 128), np.float32)
    Bf3[0, :2] = fb3

    as_bf16 = lambda a: jnp.asarray(a, dtype=jnp.bfloat16)
    as_f32 = lambda a: jnp.asarray(a, dtype=jnp.float32)
    return {
        "w1": as_bf16(W1), "b1": as_f32(B1),
        "w2": as_bf16(W2), "b2": as_f32(B2),
        "wf1": as_bf16(Wf1), "bf1": as_f32(Bf1),
        "wf2": as_bf16(Wf2), "bf2": as_f32(Bf2),
        "wf3": as_bf16(Wf3), "bf3": as_f32(Bf3),
    }


# ---------------------------------------------------------------------------
if __name__ == "__main__":
    key = jax.random.PRNGKey(0)
    k1, k2, kp = jax.random.split(key, 3)

    B = 2
    # Spatial size must be 28x28 so the flattened feature is 50*4*4 = 800.
    input1 = jax.random.normal(k1, (B, 1, 28, 28), dtype=jnp.float32)
    input2 = jax.random.normal(k2, (B, 1, 28, 28), dtype=jnp.float32)

    params = init_params(kp)

    out1, out2 = siamese_forward(input1, input2, params)
    jax.block_until_ready((out1, out2))

    assert out1.shape == (B, 2) and out2.shape == (B, 2)
    print("KERNEL_OK")
</pallas_src>

<mosaic_0001>
module attributes {stable_mosaic.version = 11 : i64} {
  func.func @_siamese_kernel(%arg0: i32, %arg1: memref<192x256xbf16, #tpu.memory_space<vmem>>, %arg2: memref<256x512xbf16, #tpu.memory_space<vmem>>, %arg3: memref<1x256xf32, #tpu.memory_space<vmem>>, %arg4: memref<5x256x512xbf16, #tpu.memory_space<vmem>>, %arg5: memref<1x256xf32, #tpu.memory_space<vmem>>, %arg6: memref<4x256x512xbf16, #tpu.memory_space<vmem>>, %arg7: memref<1x512xf32, #tpu.memory_space<vmem>>, %arg8: memref<512x128xbf16, #tpu.memory_space<vmem>>, %arg9: memref<1x128xf32, #tpu.memory_space<vmem>>, %arg10: memref<128x128xbf16, #tpu.memory_space<vmem>>, %arg11: memref<1x128xf32, #tpu.memory_space<vmem>>, %arg12: memref<8x128xf32, #tpu.memory_space<vmem>>) attributes {dimension_semantics = [#tpu.dimension_semantics<arbitrary>], iteration_bounds = array<i64: 1>, scalar_prefetch = 0 : i64, scratch_operands = 0 : i64, tpu.core_type = #tpu.core_type<tc>, window_params = [{pipeline_mode = #tpu.pipeline_mode<synchronous>, transform_indices = @transform_0, window_bounds = array<i64: 192, 256>}, {pipeline_mode = #tpu.pipeline_mode<synchronous>, transform_indices = @transform_1, window_bounds = array<i64: 256, 512>}, {pipeline_mode = #tpu.pipeline_mode<synchronous>, transform_indices = @transform_2, window_bounds = array<i64: 1, 256>}, {pipeline_mode = #tpu.pipeline_mode<synchronous>, transform_indices = @transform_3, window_bounds = array<i64: 5, 256, 512>}, {pipeline_mode = #tpu.pipeline_mode<synchronous>, transform_indices = @transform_4, window_bounds = array<i64: 1, 256>}, {pipeline_mode = #tpu.pipeline_mode<synchronous>, transform_indices = @transform_5, window_bounds = array<i64: 4, 256, 512>}, {pipeline_mode = #tpu.pipeline_mode<synchronous>, transform_indices = @transform_6, window_bounds = array<i64: 1, 512>}, {pipeline_mode = #tpu.pipeline_mode<synchronous>, transform_indices = @transform_7, window_bounds = array<i64: 512, 128>}, {pipeline_mode = #tpu.pipeline_mode<synchronous>, transform_indices = @transform_8, window_bounds = array<i64: 1, 128>}, {pipeline_mode = #tpu.pipeline_mode<synchronous>, transform_indices = @transform_9, window_bounds = array<i64: 128, 128>}, {pipeline_mode = #tpu.pipeline_mode<synchronous>, transform_indices = @transform_10, window_bounds = array<i64: 1, 128>}, {pipeline_mode = #tpu.pipeline_mode<synchronous>, transform_indices = @transform_11, window_bounds = array<i64: 8, 128>}]} {
    %c0 = arith.constant 0 : index
    %c0_0 = arith.constant 0 : index
    %0 = vector.load %arg1[%c0, %c0_0] : memref<192x256xbf16, #tpu.memory_space<vmem>>, vector<192x256xbf16>
    %c0_1 = arith.constant 0 : index
    %c0_2 = arith.constant 0 : index
    %1 = vector.load %arg2[%c0_1, %c0_2] : memref<256x512xbf16, #tpu.memory_space<vmem>>, vector<256x512xbf16>
    %cst = arith.constant dense<0.000000e+00> : vector<192x512xf32>
    %2 = tpu.matmul %0, %1, %cst {dimension_numbers = #tpu.dot_dimension_numbers<[1], [0], [0], [1], [0, 0, 1, 1], [], []>} : vector<192x256xbf16>, vector<256x512xbf16>, vector<192x512xf32> -> vector<192x512xf32>
    %3 = vector.extract_strided_slice %2 {offsets = [0, 0], sizes = [96, 512], strides = [1, 1]} : vector<192x512xf32> to vector<96x512xf32>
    %4 = vector.extract_strided_slice %2 {offsets = [96, 0], sizes = [96, 512], strides = [1, 1]} : vector<192x512xf32> to vector<96x512xf32>
    %5 = arith.maximumf %3, %4 : vector<96x512xf32>
    %6 = vector.extract_strided_slice %5 {offsets = [0, 0], sizes = [96, 256], strides = [1, 1]} : vector<96x512xf32> to vector<96x256xf32>
    %7 = vector.extract_strided_slice %5 {offsets = [0, 256], sizes = [96, 256], strides = [1, 1]} : vector<96x512xf32> to vector<96x256xf32>
    %8 = arith.maximumf %6, %7 : vector<96x256xf32>
    %c0_3 = arith.constant 0 : index
    %c0_4 = arith.constant 0 : index
    %9 = vector.load %arg3[%c0_3, %c0_4] : memref<1x256xf32, #tpu.memory_space<vmem>>, vector<1x256xf32>
    %10 = vector.broadcast %9 : vector<1x256xf32> to vector<96x256xf32>
    %11 = arith.addf %8, %10 : vector<96x256xf32>
    %12 = vector.extract_strided_slice %11 {offsets = [0, 0], sizes = [32, 256], strides = [1, 1]} : vector<96x256xf32> to vector<32x256xf32>
    %13 = arith.truncf %12 : vector<32x256xf32> to vector<32x256xbf16>
    %c0_5 = arith.constant 0 : index
    %c0_6 = arith.constant 0 : index
    %c0_7 = arith.constant 0 : index
    %14 = vector.load %arg4[%c0_5, %c0_6, %c0_7] : memref<5x256x512xbf16, #tpu.memory_space<vmem>>, vector<1x256x512xbf16>
    %15 = vector.shape_cast %14 : vector<1x256x512xbf16> to vector<256x512xbf16>
    %cst_8 = arith.constant dense<0.000000e+00> : vector<32x512xf32>
    %16 = tpu.matmul %13, %15, %cst_8 {dimension_numbers = #tpu.dot_dimension_numbers<[1], [0], [0], [1], [0, 0, 1, 1], [], []>} : vector<32x256xbf16>, vector<256x512xbf16>, vector<32x512xf32> -> vector<32x512xf32>
    %17 = vector.extract_strided_slice %11 {offsets = [48, 0], sizes = [32, 256], strides = [1, 1]} : vector<96x256xf32> to vector<32x256xf32>
    %18 = arith.truncf %17 : vector<32x256xf32> to vector<32x256xbf16>
    %c1 = arith.constant 1 : index
    %c0_9 = arith.constant 0 : index
    %c0_10 = arith.constant 0 : index
    %19 = vector.load %arg4[%c1, %c0_9, %c0_10] : memref<5x256x512xbf16, #tpu.memory_space<vmem>>, vector<1x256x512xbf16>
    %20 = vector.shape_cast %19 : vector<1x256x512xbf16> to vector<256x512xbf16>
    %cst_11 = arith.constant dense<0.000000e+00> : vector<32x512xf32>
    %21 = tpu.matmul %18, %20, %cst_11 {dimension_numbers = #tpu.dot_dimension_numbers<[1], [0], [0], [1], [0, 0, 1, 1], [], []>} : vector<32x256xbf16>, vector<256x512xbf16>, vector<32x512xf32> -> vector<32x512xf32>
    %22 = arith.addf %16, %21 : vector<32x512xf32>
    %23 = vector.extract_strided_slice %11 {offsets = [8, 0], sizes = [32, 256], strides = [1, 1]} : vector<96x256xf32> to vector<32x256xf32>
    %24 = arith.truncf %23 : vector<32x256xf32> to vector<32x256xbf16>
    %c2 = arith.constant 2 : index
    %c0_12 = arith.constant 0 : index
    %c0_13 = arith.constant 0 : index
    %25 = vector.load %arg4[%c2, %c0_12, %c0_13] : memref<5x256x512xbf16, #tpu.memory_space<vmem>>, vector<1x256x512xbf16>
    %26 = vector.shape_cast %25 : vector<1x256x512xbf16> to vector<256x512xbf16>
    %cst_14 = arith.constant dense<0.000000e+00> : vector<32x512xf32>
    %27 = tpu.matmul %24, %26, %cst_14 {dimension_numbers = #tpu.dot_dimension_numbers<[1], [0], [0], [1], [0, 0, 1, 1], [], []>} : vector<32x256xbf16>, vector<256x512xbf16>, vector<32x512xf32> -> vector<32x512xf32>
    %28 = arith.addf %22, %27 : vector<32x512xf32>
    %29 = vector.extract_strided_slice %11 {offsets = [56, 0], sizes = [32, 256], strides = [1, 1]} : vector<96x256xf32> to vector<32x256xf32>
    %30 = arith.truncf %29 : vector<32x256xf32> to vector<32x256xbf16>
    %c3 = arith.constant 3 : index
    %c0_15 = arith.constant 0 : index
    %c0_16 = arith.constant 0 : index
    %31 = vector.load %arg4[%c3, %c0_15, %c0_16] : memref<5x256x512xbf16, #tpu.memory_space<vmem>>, vector<1x256x512xbf16>
    %32 = vector.shape_cast %31 : vector<1x256x512xbf16> to vector<256x512xbf16>
    %cst_17 = arith.constant dense<0.000000e+00> : vector<32x512xf32>
    %33 = tpu.matmul %30, %32, %cst_17 {dimension_numbers = #tpu.dot_dimension_numbers<[1], [0], [0], [1], [0, 0, 1, 1], [], []>} : vector<32x256xbf16>, vector<256x512xbf16>, vector<32x512xf32> -> vector<32x512xf32>
    %34 = arith.addf %28, %33 : vector<32x512xf32>
    %35 = vector.extract_strided_slice %11 {offsets = [16, 0], sizes = [32, 256], strides = [1, 1]} : vector<96x256xf32> to vector<32x256xf32>
    %36 = arith.truncf %35 : vector<32x256xf32> to vector<32x256xbf16>
    %c4 = arith.constant 4 : index
    %c0_18 = arith.constant 0 : index
    %c0_19 = arith.constant 0 : index
    %37 = vector.load %arg4[%c4, %c0_18, %c0_19] : memref<5x256x512xbf16, #tpu.memory_space<vmem>>, vector<1x256x512xbf16>
    %38 = vector.shape_cast %37 : vector<1x256x512xbf16> to vector<256x512xbf16>
    %cst_20 = arith.constant dense<0.000000e+00> : vector<32x512xf32>
    %39 = tpu.matmul %36, %38, %cst_20 {dimension_numbers = #tpu.dot_dimension_numbers<[1], [0], [0], [1], [0, 0, 1, 1], [], []>} : vector<32x256xbf16>, vector<256x512xbf16>, vector<32x512xf32> -> vector<32x512xf32>
    %40 = arith.addf %34, %39 : vector<32x512xf32>
    %41 = vector.extract_strided_slice %40 {offsets = [0, 0], sizes = [32, 256], strides = [1, 1]} : vector<32x512xf32> to vector<32x256xf32>
    %42 = vector.extract_strided_slice %40 {offsets = [0, 256], sizes = [32, 256], strides = [1, 1]} : vector<32x512xf32> to vector<32x256xf32>
    %43 = arith.maximumf %41, %42 : vector<32x256xf32>
    %44 = vector.extract_strided_slice %11 {offsets = [48, 0], sizes = [32, 256], strides = [1, 1]} : vector<96x256xf32> to vector<32x256xf32>
    %45 = arith.truncf %44 : vector<32x256xf32> to vector<32x256xbf16>
    %c0_21 = arith.constant 0 : index
    %c0_22 = arith.constant 0 : index
    %c0_23 = arith.constant 0 : index
    %46 = vector.load %arg4[%c0_21, %c0_22, %c0_23] : memref<5x256x512xbf16, #tpu.memory_space<vmem>>, vector<1x256x512xbf16>
    %47 = vector.shape_cast %46 : vector<1x256x512xbf16> to vector<256x512xbf16>
    %cst_24 = arith.constant dense<0.000000e+00> : vector<32x512xf32>
    %48 = tpu.matmul %45, %47, %cst_24 {dimension_numbers = #tpu.dot_dimension_numbers<[1], [0], [0], [1], [0, 0, 1, 1], [], []>} : vector<32x256xbf16>, vector<256x512xbf16>, vector<32x512xf32> -> vector<32x512xf32>
    %49 = vector.extract_strided_slice %11 {offsets = [8, 0], sizes = [32, 256], strides = [1, 1]} : vector<96x256xf32> to vector<32x256xf32>
    %50 = arith.truncf %49 : vector<32x256xf32> to vector<32x256xbf16>
    %c1_25 = arith.constant 1 : index
    %c0_26 = arith.constant 0 : index
    %c0_27 = arith.constant 0 : index
    %51 = vector.load %arg4[%c1_25, %c0_26, %c0_27] : memref<5x256x512xbf16, #tpu.memory_space<vmem>>, vector<1x256x512xbf16>
    %52 = vector.shape_cast %51 : vector<1x256x512xbf16> to vector<256x512xbf16>
    %cst_28 = arith.constant dense<0.000000e+00> : vector<32x512xf32>
    %53 = tpu.matmul %50, %52, %cst_28 {dimension_numbers = #tpu.dot_dimension_numbers<[1], [0], [0], [1], [0, 0, 1, 1], [], []>} : vector<32x256xbf16>, vector<256x512xbf16>, vector<32x512xf32> -> vector<32x512xf32>
    %54 = arith.addf %48, %53 : vector<32x512xf32>
    %55 = vector.extract_strided_slice %11 {offsets = [56, 0], sizes = [32, 256], strides = [1, 1]} : vector<96x256xf32> to vector<32x256xf32>
    %56 = arith.truncf %55 : vector<32x256xf32> to vector<32x256xbf16>
    %c2_29 = arith.constant 2 : index
    %c0_30 = arith.constant 0 : index
    %c0_31 = arith.constant 0 : index
    %57 = vector.load %arg4[%c2_29, %c0_30, %c0_31] : memref<5x256x512xbf16, #tpu.memory_space<vmem>>, vector<1x256x512xbf16>
    %58 = vector.shape_cast %57 : vector<1x256x512xbf16> to vector<256x512xbf16>
    %cst_32 = arith.constant dense<0.000000e+00> : vector<32x512xf32>
    %59 = tpu.matmul %56, %58, %cst_32 {dimension_numbers = #tpu.dot_dimension_numbers<[1], [0], [0], [1], [0, 0, 1, 1], [], []>} : vector<32x256xbf16>, vector<256x512xbf16>, vector<32x512xf32> -> vector<32x512xf32>
    %60 = arith.addf %54, %59 : vector<32x512xf32>
    %61 = vector.extract_strided_slice %11 {offsets = [16, 0], sizes = [32, 256], strides = [1, 1]} : vector<96x256xf32> to vector<32x256xf32>
    %62 = arith.truncf %61 : vector<32x256xf32> to vector<32x256xbf16>
    %c3_33 = arith.constant 3 : index
    %c0_34 = arith.constant 0 : index
    %c0_35 = arith.constant 0 : index
    %63 = vector.load %arg4[%c3_33, %c0_34, %c0_35] : memref<5x256x512xbf16, #tpu.memory_space<vmem>>, vector<1x256x512xbf16>
    %64 = vector.shape_cast %63 : vector<1x256x512xbf16> to vector<256x512xbf16>
    %cst_36 = arith.constant dense<0.000000e+00> : vector<32x512xf32>
    %65 = tpu.matmul %62, %64, %cst_36 {dimension_numbers = #tpu.dot_dimension_numbers<[1], [0], [0], [1], [0, 0, 1, 1], [], []>} : vector<32x256xbf16>, vector<256x512xbf16>, vector<32x512xf32> -> vector<32x512xf32>
    %66 = arith.addf %60, %65 : vector<32x512xf32>
    %67 = vector.extract_strided_slice %11 {offsets = [64, 0], sizes = [32, 256], strides = [1, 1]} : vector<96x256xf32> to vector<32x256xf32>
    %68 = arith.truncf %67 : vector<32x256xf32> to vector<32x256xbf16>
    %c4_37 = arith.constant 4 : index
    %c0_38 = arith.constant 0 : index
    %c0_39 = arith.constant 0 : index
    %69 = vector.load %arg4[%c4_37, %c0_38, %c0_39] : memref<5x256x512xbf16, #tpu.memory_space<vmem>>, vector<1x256x512xbf16>
    %70 = vector.shape_cast %69 : vector<1x256x512xbf16> to vector<256x512xbf16>
    %cst_40 = arith.constant dense<0.000000e+00> : vector<32x512xf32>
    %71 = tpu.matmul %68, %70, %cst_40 {dimension_numbers = #tpu.dot_dimension_numbers<[1], [0], [0], [1], [0, 0, 1, 1], [], []>} : vector<32x256xbf16>, vector<256x512xbf16>, vector<32x512xf32> -> vector<32x512xf32>
    %72 = arith.addf %66, %71 : vector<32x512xf32>
    %73 = vector.extract_strided_slice %72 {offsets = [0, 0], sizes = [32, 256], strides = [1, 1]} : vector<32x512xf32> to vector<32x256xf32>
    %74 = vector.extract_strided_slice %72 {offsets = [0, 256], sizes = [32, 256], strides = [1, 1]} : vector<32x512xf32> to vector<32x256xf32>
    %75 = arith.maximumf %73, %74 : vector<32x256xf32>
    %76 = arith.maximumf %43, %75 : vector<32x256xf32>
    %c0_41 = arith.constant 0 : index
    %c0_42 = arith.constant 0 : index
    %77 = vector.load %arg5[%c0_41, %c0_42] : memref<1x256xf32, #tpu.memory_space<vmem>>, vector<1x256xf32>
    %78 = vector.broadcast %77 : vector<1x256xf32> to vector<32x256xf32>
    %79 = arith.addf %76, %78 : vector<32x256xf32>
    %80 = vector.extract_strided_slice %79 {offsets = [0, 0], sizes = [8, 256], strides = [1, 1]} : vector<32x256xf32> to vector<8x256xf32>
    %81 = arith.truncf %80 : vector<8x256xf32> to vector<8x256xbf16>
    %c0_43 = arith.constant 0 : index
    %c0_44 = arith.constant 0 : index
    %c0_45 = arith.constant 0 : index
    %82 = vector.load %arg6[%c0_43, %c0_44, %c0_45] : memref<4x256x512xbf16, #tpu.memory_space<vmem>>, vector<1x256x512xbf16>
    %83 = vector.shape_cast %82 : vector<1x256x512xbf16> to vector<256x512xbf16>
    %cst_46 = arith.constant dense<0.000000e+00> : vector<8x512xf32>
    %84 = tpu.matmul %81, %83, %cst_46 {dimension_numbers = #tpu.dot_dimension_numbers<[1], [0], [0], [1], [0, 0, 1, 1], [], []>} : vector<8x256xbf16>, vector<256x512xbf16>, vector<8x512xf32> -> vector<8x512xf32>
    %85 = vector.extract_strided_slice %79 {offsets = [8, 0], sizes = [8, 256], strides = [1, 1]} : vector<32x256xf32> to vector<8x256xf32>
    %86 = arith.truncf %85 : vector<8x256xf32> to vector<8x256xbf16>
    %c1_47 = arith.constant 1 : index
    %c0_48 = arith.constant 0 : index
    %c0_49 = arith.constant 0 : index
    %87 = vector.load %arg6[%c1_47, %c0_48, %c0_49] : memref<4x256x512xbf16, #tpu.memory_space<vmem>>, vector<1x256x512xbf16>
    %88 = vector.shape_cast %87 : vector<1x256x512xbf16> to vector<256x512xbf16>
    %cst_50 = arith.constant dense<0.000000e+00> : vector<8x512xf32>
    %89 = tpu.matmul %86, %88, %cst_50 {dimension_numbers = #tpu.dot_dimension_numbers<[1], [0], [0], [1], [0, 0, 1, 1], [], []>} : vector<8x256xbf16>, vector<256x512xbf16>, vector<8x512xf32> -> vector<8x512xf32>
    %90 = arith.addf %84, %89 : vector<8x512xf32>
    %91 = vector.extract_strided_slice %79 {offsets = [16, 0], sizes = [8, 256], strides = [1, 1]} : vector<32x256xf32> to vector<8x256xf32>
    %92 = arith.truncf %91 : vector<8x256xf32> to vector<8x256xbf16>
    %c2_51 = arith.constant 2 : index
    %c0_52 = arith.constant 0 : index
    %c0_53 = arith.constant 0 : index
    %93 = vector.load %arg6[%c2_51, %c0_52, %c0_53] : memref<4x256x512xbf16, #tpu.memory_space<vmem>>, vector<1x256x512xbf16>
    %94 = vector.shape_cast %93 : vector<1x256x512xbf16> to vector<256x512xbf16>
    %cst_54 = arith.constant dense<0.000000e+00> : vector<8x512xf32>
    %95 = tpu.matmul %92, %94, %cst_54 {dimension_numbers = #tpu.dot_dimension_numbers<[1], [0], [0], [1], [0, 0, 1, 1], [], []>} : vector<8x256xbf16>, vector<256x512xbf16>, vector<8x512xf32> -> vector<8x512xf32>
    %96 = arith.addf %90, %95 : vector<8x512xf32>
    %97 = vector.extract_strided_slice %79 {offsets = [24, 0], sizes = [8, 256], strides = [1, 1]} : vector<32x256xf32> to vector<8x256xf32>
    %98 = arith.truncf %97 : vector<8x256xf32> to vector<8x256xbf16>
    %c3_55 = arith.constant 3 : index
    %c0_56 = arith.constant 0 : index
    %c0_57 = arith.constant 0 : index
    %99 = vector.load %arg6[%c3_55, %c0_56, %c0_57] : memref<4x256x512xbf16, #tpu.memory_space<vmem>>, vector<1x256x512xbf16>
    %100 = vector.shape_cast %99 : vector<1x256x512xbf16> to vector<256x512xbf16>
    %cst_58 = arith.constant dense<0.000000e+00> : vector<8x512xf32>
    %101 = tpu.matmul %98, %100, %cst_58 {dimension_numbers = #tpu.dot_dimension_numbers<[1], [0], [0], [1], [0, 0, 1, 1], [], []>} : vector<8x256xbf16>, vector<256x512xbf16>, vector<8x512xf32> -> vector<8x512xf32>
    %102 = arith.addf %96, %101 : vector<8x512xf32>
    %c0_59 = arith.constant 0 : index
    %c0_60 = arith.constant 0 : index
    %103 = vector.load %arg7[%c0_59, %c0_60] : memref<1x512xf32, #tpu.memory_space<vmem>>, vector<1x512xf32>
    %104 = vector.broadcast %103 : vector<1x512xf32> to vector<8x512xf32>
    %105 = arith.addf %102, %104 : vector<8x512xf32>
    %cst_61 = arith.constant 0.000000e+00 : f32
    %106 = vector.broadcast %cst_61 : f32 to vector<8x512xf32>
    %107 = arith.maximumf %105, %106 : vector<8x512xf32>
    %108 = arith.truncf %107 : vector<8x512xf32> to vector<8x512xbf16>
    %c0_62 = arith.constant 0 : index
    %c0_63 = arith.constant 0 : index
    %109 = vector.load %arg8[%c0_62, %c0_63] : memref<512x128xbf16, #tpu.memory_space<vmem>>, vector<512x128xbf16>
    %cst_64 = arith.constant dense<0.000000e+00> : vector<8x128xf32>
    %110 = tpu.matmul %108, %109, %cst_64 {dimension_numbers = #tpu.dot_dimension_numbers<[1], [0], [0], [1], [0, 0, 1, 1], [], []>} : vector<8x512xbf16>, vector<512x128xbf16>, vector<8x128xf32> -> vector<8x128xf32>
    %c0_65 = arith.constant 0 : index
    %c0_66 = arith.constant 0 : index
    %111 = vector.load %arg9[%c0_65, %c0_66] : memref<1x128xf32, #tpu.memory_space<vmem>>, vector<1x128xf32>
    %112 = vector.broadcast %111 : vector<1x128xf32> to vector<8x128xf32>
    %113 = arith.addf %110, %112 : vector<8x128xf32>
    %114 = arith.truncf %113 : vector<8x128xf32> to vector<8x128xbf16>
    %c0_67 = arith.constant 0 : index
    %c0_68 = arith.constant 0 : index
    %115 = vector.load %arg10[%c0_67, %c0_68] : memref<128x128xbf16, #tpu.memory_space<vmem>>, vector<128x128xbf16>
    %cst_69 = arith.constant dense<0.000000e+00> : vector<8x128xf32>
    %116 = tpu.matmul %114, %115, %cst_69 {dimension_numbers = #tpu.dot_dimension_numbers<[1], [0], [0], [1], [0, 0, 1, 1], [], []>} : vector<8x128xbf16>, vector<128x128xbf16>, vector<8x128xf32> -> vector<8x128xf32>
    %c0_70 = arith.constant 0 : index
    %c0_71 = arith.constant 0 : index
    %117 = vector.load %arg11[%c0_70, %c0_71] : memref<1x128xf32, #tpu.memory_space<vmem>>, vector<1x128xf32>
    %118 = vector.broadcast %117 : vector<1x128xf32> to vector<8x128xf32>
    %119 = arith.addf %116, %118 : vector<8x128xf32>
    %c0_72 = arith.constant 0 : index
    %c0_73 = arith.constant 0 : index
    %120 = vector.load %arg12[%c0_72, %c0_73] : memref<8x128xf32, #tpu.memory_space<vmem>>, vector<8x128xf32>
    tpu.vector_store %arg12[%c0_72, %c0_73], %119 {strides = array<i32>} : memref<8x128xf32, #tpu.memory_space<vmem>>, vector<8x128xf32>,
    return
  }
  func.func @transform_0(%arg0: i32) -> (i32, i32) {
    %c0_i32 = arith.constant 0 : i32
    %c0_i32_0 = arith.constant 0 : i32
    %c0_i32_1 = arith.constant 0 : i32
    return %c0_i32, %c0_i32_0 : i32, i32
  }
  func.func @transform_1(%arg0: i32) -> (i32, i32) {
    %c0_i32 = arith.constant 0 : i32
    %c0_i32_0 = arith.constant 0 : i32
    %c0_i32_1 = arith.constant 0 : i32
    return %c0_i32, %c0_i32_0 : i32, i32
  }
  func.func @transform_2(%arg0: i32) -> (i32, i32) {
    %c0_i32 = arith.constant 0 : i32
    %c0_i32_0 = arith.constant 0 : i32
    %c0_i32_1 = arith.constant 0 : i32
    return %c0_i32, %c0_i32_0 : i32, i32
  }
  func.func @transform_3(%arg0: i32) -> (i32, i32, i32) {
    %c0_i32 = arith.constant 0 : i32
    %c0_i32_0 = arith.constant 0 : i32
    %c0_i32_1 = arith.constant 0 : i32
    %c0_i32_2 = arith.constant 0 : i32
    return %c0_i32, %c0_i32_0, %c0_i32_1 : i32, i32, i32
  }
  func.func @transform_4(%arg0: i32) -> (i32, i32) {
    %c0_i32 = arith.constant 0 : i32
    %c0_i32_0 = arith.constant 0 : i32
    %c0_i32_1 = arith.constant 0 : i32
    return %c0_i32, %c0_i32_0 : i32, i32
  }
  func.func @transform_5(%arg0: i32) -> (i32, i32, i32) {
    %c0_i32 = arith.constant 0 : i32
    %c0_i32_0 = arith.constant 0 : i32
    %c0_i32_1 = arith.constant 0 : i32
    %c0_i32_2 = arith.constant 0 : i32
    return %c0_i32, %c0_i32_0, %c0_i32_1 : i32, i32, i32
  }
  func.func @transform_6(%arg0: i32) -> (i32, i32) {
    %c0_i32 = arith.constant 0 : i32
    %c0_i32_0 = arith.constant 0 : i32
    %c0_i32_1 = arith.constant 0 : i32
    return %c0_i32, %c0_i32_0 : i32, i32
  }
  func.func @transform_7(%arg0: i32) -> (i32, i32) {
    %c0_i32 = arith.constant 0 : i32
    %c0_i32_0 = arith.constant 0 : i32
    %c0_i32_1 = arith.constant 0 : i32
    return %c0_i32, %c0_i32_0 : i32, i32
  }
  func.func @transform_8(%arg0: i32) -> (i32, i32) {
    %c0_i32 = arith.constant 0 : i32
    %c0_i32_0 = arith.constant 0 : i32
    %c0_i32_1 = arith.constant 0 : i32
    return %c0_i32, %c0_i32_0 : i32, i32
  }
  func.func @transform_9(%arg0: i32) -> (i32, i32) {
    %c0_i32 = arith.constant 0 : i32
    %c0_i32_0 = arith.constant 0 : i32
    %c0_i32_1 = arith.constant 0 : i32
    return %c0_i32, %c0_i32_0 : i32, i32
  }
  func.func @transform_10(%arg0: i32) -> (i32, i32) {
    %c0_i32 = arith.constant 0 : i32
    %c0_i32_0 = arith.constant 0 : i32
    %c0_i32_1 = arith.constant 0 : i32
    return %c0_i32, %c0_i32_0 : i32, i32
  }
  func.func @transform_11(%arg0: i32) -> (i32, i32) {
    %c0_i32 = arith.constant 0 : i32
    %c0_i32_0 = arith.constant 0 : i32
    %c0_i32_1 = arith.constant 0 : i32
    return %c0_i32, %c0_i32_0 : i32, i32
  }
}

</mosaic_0001>

<llo_original>
// kernel: siamese_forward.1
$region0: #{siamese_forward.1}
  #allocation0 [shape = 'u32[]', space=smem, size = 0x4, offset = 0x4, fixed_abs, tag = 'smem constant byte address 0x4 - core index']
  #allocation1 [shape = 'u32[144,128]{1,0:T(1,128)}', space=vmem, size = 0x12000, scoped, tag = 'internal scratch']
  %s0 = inlined_call_operand.vmem [shape: bf16[192,256], index: 0, kind: input, shape index: {}]
  %s1 = inlined_call_operand.hbm [shape: bf16[256,512], index: 1, kind: input, shape index: {}]
  %s2 = inlined_call_operand.hbm [shape: f32[1,256], index: 2, kind: input, shape index: {}]
  %s3 = inlined_call_operand.hbm [shape: bf16[5,256,512], index: 3, kind: input, shape index: {}]
  %s4 = inlined_call_operand.hbm [shape: f32[1,256], index: 4, kind: input, shape index: {}]
  %s5 = inlined_call_operand.vmem [shape: bf16[4,256,512], index: 5, kind: input, shape index: {}]
  %s6 = inlined_call_operand.hbm [shape: f32[1,512], index: 6, kind: input, shape index: {}]
  %s7 = inlined_call_operand.hbm [shape: bf16[512,128], index: 7, kind: input, shape index: {}]
  %s8 = inlined_call_operand.hbm [shape: f32[1,128], index: 8, kind: input, shape index: {}]
  %s9 = inlined_call_operand.hbm [shape: bf16[128,128], index: 9, kind: input, shape index: {}]
  %s10 = inlined_call_operand.hbm [shape: f32[1,128], index: 10, kind: input, shape index: {}]
  %s11 = inlined_call_operand.vmem [shape: f32[8,128], index: 11, kind: output, shape index: {}]
  %s12 = sld [smem:[#allocation0]]
  $region90: #{siamese_forward.1} parent=0
    _
  %s14 = ssub.s32 1, %s12
  %s15 = scalar_select 0, %s14, %s12
  $region1: #{siamese_forward.1} parent=0
    #allocation2 [shape = 'u8[262144]{0}', space=vmem, size = 0x40000, scoped, tag = 'input window, operand 1, single buffered']
    #allocation3 [shape = 's32[1]{0}', space=sflag, size = 0x4, scoped, tag = 'scoped memory for siamese_forward.1']
    #allocation4 [shape = 'u8[1024]{0}', space=vmem, size = 0x400, scoped, tag = 'input window, operand 2, single buffered']
    #allocation5 [shape = 's32[1]{0}', space=sflag, size = 0x4, scoped, tag = 'scoped memory for siamese_forward.1']
    #allocation6 [shape = 'u8[1310720]{0}', space=vmem, size = 0x140000, scoped, tag = 'input window, operand 3, single buffered']
    #allocation7 [shape = 'u8[1024]{0}', space=vmem, size = 0x400, scoped, tag = 'input window, operand 4, single buffered']
    #allocation8 [shape = 's32[1]{0}', space=sflag, size = 0x4, scoped, tag = 'scoped memory for siamese_forward.1']
    #allocation9 [shape = 'u8[2048]{0}', space=vmem, size = 0x800, scoped, tag = 'input window, operand 6, single buffered']
    #allocation10 [shape = 'u8[131072]{0}', space=vmem, size = 0x20000, scoped, tag = 'input window, operand 7, single buffered']
    #allocation11 [shape = 's32[1]{0}', space=sflag, size = 0x4, scoped, tag = 'scoped memory for siamese_forward.1']
    #allocation12 [shape = 'u8[512]{0}', space=vmem, size = 0x400, scoped, tag = 'input window, operand 8, single buffered']
    #allocation13 [shape = 'u8[32768]{0}', space=vmem, size = 0x8000, scoped, tag = 'input window, operand 9, single buffered']
    #allocation14 [shape = 's32[1]{0}', space=sflag, size = 0x4, scoped, tag = 'scoped memory for siamese_forward.1']
    #allocation15 [shape = 'u8[512]{0}', space=vmem, size = 0x400, scoped, tag = 'input window, operand 10, single buffered']
    %16 = vsyncpa [#allocation3], 0
    %17 = vsyncpa [#allocation5], 0
    %18 = vsyncpa [#allocation8], 0
    %19 = vsyncpa [#allocation11], 0
    %20 = vsyncpa [#allocation14], 0
    // Predicated region
    $region2: #{siamese_forward.1} parent=1 // pred_check
      _
    $region3: #{siamese_forward.1} parent=1 // pred_check_branch
      %22 = sbr.rel (0) target = $region5
    $region4: #{siamese_forward.1} parent=1 // pred_region
      _
    $region5: #{siamese_forward.1} parent=1 // pred_fallthru
      _
    // Predicated region
    $region6: #{siamese_forward.1} parent=1 // pred_check
      _
    $region7: #{siamese_forward.1} parent=1 // pred_check_branch
      %24 = sbr.rel (0) target = $region9
    $region8: #{siamese_forward.1} parent=1 // pred_region
      %s26 = ssub.s32 8192, 8192
      %27 = vsyncadd [#allocation3], %s26
      %s28 = sshll.u32 [#allocation2], 4
      %s29 = int_to_ptr.vmem [resolvable:$true] %s28
      %34 = dma.hbm_to_vmem [thread:$0]  %s1, 8192, %s29, [#allocation3], 256, 256, 16
    $region9: #{siamese_forward.1} parent=1 // pred_fallthru
      _
    // Predicated region
    $region10: #{siamese_forward.1} parent=1 // pred_check
      _
    $region11: #{siamese_forward.1} parent=1 // pred_check_branch
      %36 = sbr.rel (0) target = $region13
    $region12: #{siamese_forward.1} parent=1 // pred_region
      %s38 = ssub.s32 32, 32
      %39 = vsyncadd [#allocation5], %s38
      %s41 = sshll.u32 [#allocation4], 4
      %s42 = int_to_ptr.vmem [resolvable:$true] %s41
      %44 = dma.hbm_to_vmem [thread:$0]  %s2, 32, %s42, [#allocation5]
    $region13: #{siamese_forward.1} parent=1 // pred_fallthru
      _
    // Predicated region
    $region14: #{siamese_forward.1} parent=1 // pred_check
      _
    $region15: #{siamese_forward.1} parent=1 // pred_check_branch
      %46 = sbr.rel (0) target = $region17
    $region16: #{siamese_forward.1} parent=1 // pred_region
      %s48 = ssub.s32 40960, 40960
      %49 = vsyncadd [#allocation5], %s48
      %s50 = sshll.u32 [#allocation6], 4
      %s51 = int_to_ptr.vmem [resolvable:$true] %s50
      %56 = dma.hbm_to_vmem [thread:$0]  %s3, 40960, %s51, [#allocation5], 256, 256, 16
    $region17: #{siamese_forward.1} parent=1 // pred_fallthru
      _
    // Predicated region
    $region18: #{siamese_forward.1} parent=1 // pred_check
      _
    $region19: #{siamese_forward.1} parent=1 // pred_check_branch
      %58 = sbr.rel (0) target = $region21
    $region20: #{siamese_forward.1} parent=1 // pred_region
      %s60 = ssub.s32 32, 32
      %61 = vsyncadd [#allocation8], %s60
      %s63 = sshll.u32 [#allocation7], 4
      %s64 = int_to_ptr.vmem [resolvable:$true] %s63
      %66 = dma.hbm_to_vmem [thread:$0]  %s4, 32, %s64, [#allocation8]
    $region21: #{siamese_forward.1} parent=1 // pred_fallthru
      _
    // Predicated region
    $region22: #{siamese_forward.1} parent=1 // pred_check
      _
    $region23: #{siamese_forward.1} parent=1 // pred_check_branch
      %68 = sbr.rel (0) target = $region25
    $region24: #{siamese_forward.1} parent=1 // pred_region
      _
    $region25: #{siamese_forward.1} parent=1 // pred_fallthru
      _
    // Predicated region
    $region26: #{siamese_forward.1} parent=1 // pred_check
      _
    $region27: #{siamese_forward.1} parent=1 // pred_check_branch
      %70 = sbr.rel (0) target = $region29
    $region28: #{siamese_forward.1} parent=1 // pred_region
      %s72 = ssub.s32 64, 64
      %73 = vsyncadd [#allocation8], %s72
      %s75 = sshll.u32 [#allocation9], 4
      %s76 = int_to_ptr.vmem [resolvable:$true] %s75
      %78 = dma.hbm_to_vmem [thread:$0]  %s6, 64, %s76, [#allocation8]
    $region29: #{siamese_forward.1} parent=1 // pred_fallthru
      _
    // Predicated region
    $region30: #{siamese_forward.1} parent=1 // pred_check
      _
    $region31: #{siamese_forward.1} parent=1 // pred_check_branch
      %80 = sbr.rel (0) target = $region33
    $region32: #{siamese_forward.1} parent=1 // pred_region
      %s82 = ssub.s32 4096, 4096
      %83 = vsyncadd [#allocation11], %s82
      %s84 = sshll.u32 [#allocation10], 4
      %s85 = int_to_ptr.vmem [resolvable:$true] %s84
      %90 = dma.hbm_to_vmem [thread:$0]  %s7, 4096, %s85, [#allocation11], 64, 64, 4
    $region33: #{siamese_forward.1} parent=1 // pred_fallthru
      _
    // Predicated region
    $region34: #{siamese_forward.1} parent=1 // pred_check
      _
    $region35: #{siamese_forward.1} parent=1 // pred_check_branch
      %92 = sbr.rel (0) target = $region37
    $region36: #{siamese_forward.1} parent=1 // pred_region
      %s94 = ssub.s32 16, 16
      %95 = vsyncadd [#allocation11], %s94
      %s97 = sshll.u32 [#allocation12], 4
      %s98 = int_to_ptr.vmem [resolvable:$true] %s97
      %100 = dma.hbm_to_vmem [thread:$0]  %s8, 16, %s98, [#allocation11]
    $region37: #{siamese_forward.1} parent=1 // pred_fallthru
      _
    // Predicated region
    $region38: #{siamese_forward.1} parent=1 // pred_check
      _
    $region39: #{siamese_forward.1} parent=1 // pred_check_branch
      %102 = sbr.rel (0) target = $region41
    $region40: #{siamese_forward.1} parent=1 // pred_region
      %s104 = ssub.s32 1024, 1024
      %105 = vsyncadd [#allocation14], %s104
      %s106 = sshll.u32 [#allocation13], 4
      %s107 = int_to_ptr.vmem [resolvable:$true] %s106
      %112 = dma.hbm_to_vmem [thread:$0]  %s9, 1024, %s107, [#allocation14], 64, 64, 4
    $region41: #{siamese_forward.1} parent=1 // pred_fallthru
      _
    // Predicated region
    $region42: #{siamese_forward.1} parent=1 // pred_check
      _
    $region43: #{siamese_forward.1} parent=1 // pred_check_branch
      %114 = sbr.rel (0) target = $region45
    $region44: #{siamese_forward.1} parent=1 // pred_region
      %s116 = ssub.s32 16, 16
      %117 = vsyncadd [#allocation14], %s116
      %s119 = sshll.u32 [#allocation15], 4
      %s120 = int_to_ptr.vmem [resolvable:$true] %s119
      %122 = dma.hbm_to_vmem [thread:$0]  %s10, 16, %s120, [#allocation14]
    $region45: #{siamese_forward.1} parent=1 // pred_fallthru
      _
    // Predicated region
    $region46: #{siamese_forward.1} parent=1 // pred_check
      _
    $region47: #{siamese_forward.1} parent=1 // pred_check_branch
      %124 = sbr.rel (0) target = $region49
    $region48: #{siamese_forward.1} parent=1 // pred_region
      %125 = dma.done [#allocation3], 8192
    $region49: #{siamese_forward.1} parent=1 // pred_fallthru
      _
    // Predicated region
    $region50: #{siamese_forward.1} parent=1 // pred_check
      _
    $region51: #{siamese_forward.1} parent=1 // pred_check_branch
      %127 = sbr.rel (0) target = $region53
    $region52: #{siamese_forward.1} parent=1 // pred_region
      %128 = dma.done [#allocation5], 32
    $region53: #{siamese_forward.1} parent=1 // pred_fallthru
      _
    // Predicated region
    $region54: #{siamese_forward.1} parent=1 // pred_check
      _
    $region55: #{siamese_forward.1} parent=1 // pred_check_branch
      %130 = sbr.rel (0) target = $region57
    $region56: #{siamese_forward.1} parent=1 // pred_region
      %131 = dma.done [#allocation5], 40960
    $region57: #{siamese_forward.1} parent=1 // pred_fallthru
      _
    // Predicated region
    $region58: #{siamese_forward.1} parent=1 // pred_check
      _
    $region59: #{siamese_forward.1} parent=1 // pred_check_branch
      %133 = sbr.rel (0) target = $region61
    $region60: #{siamese_forward.1} parent=1 // pred_region
      %134 = dma.done [#allocation8], 32
    $region61: #{siamese_forward.1} parent=1 // pred_fallthru
      _
    // Predicated region
    $region62: #{siamese_forward.1} parent=1 // pred_check
      _
    $region63: #{siamese_forward.1} parent=1 // pred_check_branch
      %136 = sbr.rel (0) target = $region65
    $region64: #{siamese_forward.1} parent=1 // pred_region
      %137 = dma.done [#allocation8], 64
    $region65: #{siamese_forward.1} parent=1 // pred_fallthru
      _
    // Predicated region
    $region66: #{siamese_forward.1} parent=1 // pred_check
      _
    $region67: #{siamese_forward.1} parent=1 // pred_check_branch
      %139 = sbr.rel (0) target = $region69
    $region68: #{siamese_forward.1} parent=1 // pred_region
      %140 = dma.done [#allocation11], 4096
    $region69: #{siamese_forward.1} parent=1 // pred_fallthru
      _
    // Predicated region
    $region70: #{siamese_forward.1} parent=1 // pred_check
      _
    $region71: #{siamese_forward.1} parent=1 // pred_check_branch
      %142 = sbr.rel (0) target = $region73
    $region72: #{siamese_forward.1} parent=1 // pred_region
      %143 = dma.done [#allocation11], 16
    $region73: #{siamese_forward.1} parent=1 // pred_fallthru
      _
    // Predicated region
    $region74: #{siamese_forward.1} parent=1 // pred_check
      _
    $region75: #{siamese_forward.1} parent=1 // pred_check_branch
      %145 = sbr.rel (0) target = $region77
    $region76: #{siamese_forward.1} parent=1 // pred_region
      %146 = dma.done [#allocation14], 1024
    $region77: #{siamese_forward.1} parent=1 // pred_fallthru
      _
    // Predicated region
    $region78: #{siamese_forward.1} parent=1 // pred_check
      _
    $region79: #{siamese_forward.1} parent=1 // pred_check_branch
      %148 = sbr.rel (0) target = $region81
    $region80: #{siamese_forward.1} parent=1 // pred_region
      %149 = dma.done [#allocation14], 16
    $region81: #{siamese_forward.1} parent=1 // pred_fallthru
      _
    %v151 = vld [vmem:[%s0] sm:$0xff]
    %v152 = vld [vmem:[%s0 + $0x8] sm:$0xff]
    %v153 = vld [vmem:[%s0 + $0x10] sm:$0xff]
    %v154 = vld [vmem:[%s0 + $0x18] sm:$0xff]
    %v155 = vld [vmem:[%s0 + $0x20] sm:$0xff]
    %v156 = vld [vmem:[%s0 + $0x28] sm:$0xff]
    %v157 = vld [vmem:[%s0 + $0x30] sm:$0xff]
    %v158 = vld [vmem:[%s0 + $0x38] sm:$0xff]
    %v159 = vld [vmem:[%s0 + $0x40] sm:$0xff]
    %v160 = vld [vmem:[%s0 + $0x48] sm:$0xff]
    %v161 = vld [vmem:[%s0 + $0x50] sm:$0xff]
    %v162 = vld [vmem:[%s0 + $0x58] sm:$0xff]
    %v163 = vld [vmem:[%s0 + $0x60] sm:$0xff]
    %v164 = vld [vmem:[%s0 + $0x68] sm:$0xff]
    %v165 = vld [vmem:[%s0 + $0x70] sm:$0xff]
    %v166 = vld [vmem:[%s0 + $0x78] sm:$0xff]
    %v167 = vld [vmem:[%s0 + $0x80] sm:$0xff]
    %v168 = vld [vmem:[%s0 + $0x88] sm:$0xff]
    %v169 = vld [vmem:[%s0 + $0x90] sm:$0xff]
    %v170 = vld [vmem:[%s0 + $0x98] sm:$0xff]
    %v171 = vld [vmem:[%s0 + $0xa0] sm:$0xff]
    %v172 = vld [vmem:[%s0 + $0xa8] sm:$0xff]
    %v173 = vld [vmem:[%s0 + $0xb0] sm:$0xff]
    %v174 = vld [vmem:[%s0 + $0xb8] sm:$0xff]
    %v175 = vld [vmem:[#allocation2] sm:$0xff]
    %v176 = vld [vmem:[#allocation2 + $0x8] sm:$0xff]
    %v177 = vld [vmem:[#allocation2 + $0x10] sm:$0xff]
    %v178 = vld [vmem:[#allocation2 + $0x18] sm:$0xff]
    %v179 = vld [vmem:[#allocation2 + $0x20] sm:$0xff]
    %v180 = vld [vmem:[#allocation2 + $0x28] sm:$0xff]
    %v181 = vld [vmem:[#allocation2 + $0x30] sm:$0xff]
    %v182 = vld [vmem:[#allocation2 + $0x38] sm:$0xff]
    %v183 = vld [vmem:[#allocation2 + $0x40] sm:$0xff]
    %v184 = vld [vmem:[#allocation2 + $0x48] sm:$0xff]
    %v185 = vld [vmem:[#allocation2 + $0x50] sm:$0xff]
    %v186 = vld [vmem:[#allocation2 + $0x58] sm:$0xff]
    %v187 = vld [vmem:[#allocation2 + $0x60] sm:$0xff]
    %v188 = vld [vmem:[#allocation2 + $0x68] sm:$0xff]
    %v189 = vld [vmem:[#allocation2 + $0x70] sm:$0xff]
    %v190 = vld [vmem:[#allocation2 + $0x78] sm:$0xff]
    %v191 = vld [vmem:[#allocation2 + $0x80] sm:$0xff]
    %v192 = vld [vmem:[#allocation2 + $0x88] sm:$0xff]
    %v193 = vld [vmem:[#allocation2 + $0x90] sm:$0xff]
    %v194 = vld [vmem:[#allocation2 + $0x98] sm:$0xff]
    %v195 = vld [vmem:[#allocation2 + $0xa0] sm:$0xff]
    %v196 = vld [vmem:[#allocation2 + $0xa8] sm:$0xff]
    %v197 = vld [vmem:[#allocation2 + $0xb0] sm:$0xff]
    %v198 = vld [vmem:[#allocation2 + $0xb8] sm:$0xff]
    %v199 = vld [vmem:[#allocation2 + $0xc0] sm:$0xff]
    %v200 = vld [vmem:[#allocation2 + $0xc8] sm:$0xff]
    %v201 = vld [vmem:[#allocation2 + $0xd0] sm:$0xff]
    %v202 = vld [vmem:[#allocation2 + $0xd8] sm:$0xff]
    %v203 = vld [vmem:[#allocation2 + $0xe0] sm:$0xff]
    %v204 = vld [vmem:[#allocation2 + $0xe8] sm:$0xff]
    %v205 = vld [vmem:[#allocation2 + $0xf0] sm:$0xff]
    %v206 = vld [vmem:[#allocation2 + $0xf8] sm:$0xff]
    %v207 = vld [vmem:[#allocation2 + $0x100] sm:$0xff]
    %v208 = vld [vmem:[#allocation2 + $0x108] sm:$0xff]
    %v209 = vld [vmem:[#allocation2 + $0x110] sm:$0xff]
    %v210 = vld [vmem:[#allocation2 + $0x118] sm:$0xff]
    %v211 = vld [vmem:[#allocation2 + $0x120] sm:$0xff]
    %v212 = vld [vmem:[#allocation2 + $0x128] sm:$0xff]
    %v213 = vld [vmem:[#allocation2 + $0x130] sm:$0xff]
    %v214 = vld [vmem:[#allocation2 + $0x138] sm:$0xff]
    %v215 = vld [vmem:[#allocation2 + $0x140] sm:$0xff]
    %v216 = vld [vmem:[#allocation2 + $0x148] sm:$0xff]
    %v217 = vld [vmem:[#allocation2 + $0x150] sm:$0xff]
    %v218 = vld [vmem:[#allocation2 + $0x158] sm:$0xff]
    %v219 = vld [vmem:[#allocation2 + $0x160] sm:$0xff]
    %v220 = vld [vmem:[#allocation2 + $0x168] sm:$0xff]
    %v221 = vld [vmem:[#allocation2 + $0x170] sm:$0xff]
    %v222 = vld [vmem:[#allocation2 + $0x178] sm:$0xff]
    %v223 = vld [vmem:[#allocation2 + $0x180] sm:$0xff]
    %v224 = vld [vmem:[#allocation2 + $0x188] sm:$0xff]
    %v225 = vld [vmem:[#allocation2 + $0x190] sm:$0xff]
    %v226 = vld [vmem:[#allocation2 + $0x198] sm:$0xff]
    %v227 = vld [vmem:[#allocation2 + $0x1a0] sm:$0xff]
    %v228 = vld [vmem:[#allocation2 + $0x1a8] sm:$0xff]
    %v229 = vld [vmem:[#allocation2 + $0x1b0] sm:$0xff]
    %v230 = vld [vmem:[#allocation2 + $0x1b8] sm:$0xff]
    %v231 = vld [vmem:[#allocation2 + $0x1c0] sm:$0xff]
    %v232 = vld [vmem:[#allocation2 + $0x1c8] sm:$0xff]
    %v233 = vld [vmem:[#allocation2 + $0x1d0] sm:$0xff]
    %v234 = vld [vmem:[#allocation2 + $0x1d8] sm:$0xff]
    %v235 = vld [vmem:[#allocation2 + $0x1e0] sm:$0xff]
    %v236 = vld [vmem:[#allocation2 + $0x1e8] sm:$0xff]
    %v237 = vld [vmem:[#allocation2 + $0x1f0] sm:$0xff]
    %v238 = vld [vmem:[#allocation2 + $0x1f8] sm:$0xff]
    %v263 = vunpack.c.l.b16 %v151
    %v264 = vunpack.c.h.b16 %v151
    %v265 = vunpack.c.l.b16 %v152
    %v266 = vunpack.c.h.b16 %v152
    %v267 = vunpack.c.l.b16 %v153
    %v268 = vunpack.c.h.b16 %v153
    %v269 = vunpack.c.l.b16 %v154
    %v270 = vunpack.c.h.b16 %v154
    %v271 = vunpack.c.l.b16 %v155
    %v272 = vunpack.c.h.b16 %v155
    %v273 = vunpack.c.l.b16 %v156
    %v274 = vunpack.c.h.b16 %v156
    %v275 = vunpack.c.l.b16 %v157
    %v276 = vunpack.c.h.b16 %v157
    %v277 = vunpack.c.l.b16 %v158
    %v278 = vunpack.c.h.b16 %v158
    %v279 = vunpack.c.l.b16 %v159
    %v280 = vunpack.c.h.b16 %v159
    %v281 = vunpack.c.l.b16 %v160
    %v282 = vunpack.c.h.b16 %v160
    %v283 = vunpack.c.l.b16 %v161
    %v284 = vunpack.c.h.b16 %v161
    %v285 = vunpack.c.l.b16 %v162
    %v286 = vunpack.c.h.b16 %v162
    %v287 = vunpack.c.l.b16 %v163
    %v288 = vunpack.c.h.b16 %v163
    %v289 = vunpack.c.l.b16 %v164
    %v290 = vunpack.c.h.b16 %v164
    %v291 = vunpack.c.l.b16 %v165
    %v292 = vunpack.c.h.b16 %v165
    %v293 = vunpack.c.l.b16 %v166
    %v294 = vunpack.c.h.b16 %v166
    %v295 = vunpack.c.l.b16 %v167
    %v296 = vunpack.c.h.b16 %v167
    %v297 = vunpack.c.l.b16 %v168
    %v298 = vunpack.c.h.b16 %v168
    %v299 = vunpack.c.l.b16 %v169
    %v300 = vunpack.c.h.b16 %v169
    %v301 = vunpack.c.l.b16 %v170
    %v302 = vunpack.c.h.b16 %v170
    %v303 = vunpack.c.l.b16 %v171
    %v304 = vunpack.c.h.b16 %v171
    %v305 = vunpack.c.l.b16 %v172
    %v306 = vunpack.c.h.b16 %v172
    %v307 = vunpack.c.l.b16 %v173
    %v308 = vunpack.c.h.b16 %v173
    %v309 = vunpack.c.l.b16 %v174
    %v310 = vunpack.c.h.b16 %v174
    %v311 = vpack.c.b16 %v265, %v263
    %v312 = vpack.c.b16 %v266, %v264
    %v313 = vpack.c.b16 %v269, %v267
    %v314 = vpack.c.b16 %v270, %v268
    %v315 = vpack.c.b16 %v273, %v271
    %v316 = vpack.c.b16 %v274, %v272
    %v317 = vpack.c.b16 %v277, %v275
    %v318 = vpack.c.b16 %v278, %v276
    %v319 = vpack.c.b16 %v281, %v279
    %v320 = vpack.c.b16 %v282, %v280
    %v321 = vpack.c.b16 %v285, %v283
    %v322 = vpack.c.b16 %v286, %v284
    %v323 = vpack.c.b16 %v289, %v287
    %v324 = vpack.c.b16 %v290, %v288
    %v325 = vpack.c.b16 %v293, %v291
    %v326 = vpack.c.b16 %v294, %v292
    %v327 = vpack.c.b16 %v297, %v295
    %v328 = vpack.c.b16 %v298, %v296
    %v329 = vpack.c.b16 %v301, %v299
    %v330 = vpack.c.b16 %v302, %v300
    %v331 = vpack.c.b16 %v305, %v303
    %v332 = vpack.c.b16 %v306, %v304
    %v333 = vpack.c.b16 %v309, %v307
    %v334 = vpack.c.b16 %v310, %v308
    %v423 = vunpack.c.l.b16 %v175
    %v424 = vunpack.c.h.b16 %v175
    %v425 = vunpack.c.l.b16 %v176
    %v426 = vunpack.c.h.b16 %v176
    %v427 = vunpack.c.l.b16 %v177
    %v428 = vunpack.c.h.b16 %v177
    %v429 = vunpack.c.l.b16 %v178
    %v430 = vunpack.c.h.b16 %v178
    %v431 = vunpack.c.l.b16 %v179
    %v432 = vunpack.c.h.b16 %v179
    %v433 = vunpack.c.l.b16 %v180
    %v434 = vunpack.c.h.b16 %v180
    %v435 = vunpack.c.l.b16 %v181
    %v436 = vunpack.c.h.b16 %v181
    %v437 = vunpack.c.l.b16 %v182
    %v438 = vunpack.c.h.b16 %v182
    %v439 = vunpack.c.l.b16 %v183
    %v440 = vunpack.c.h.b16 %v183
    %v441 = vunpack.c.l.b16 %v184
    %v442 = vunpack.c.h.b16 %v184
    %v443 = vunpack.c.l.b16 %v185
    %v444 = vunpack.c.h.b16 %v185
    %v445 = vunpack.c.l.b16 %v186
    %v446 = vunpack.c.h.b16 %v186
    %v447 = vunpack.c.l.b16 %v187
    %v448 = vunpack.c.h.b16 %v187
    %v449 = vunpack.c.l.b16 %v188
    %v450 = vunpack.c.h.b16 %v188
    %v451 = vunpack.c.l.b16 %v189
    %v452 = vunpack.c.h.b16 %v189
    %v453 = vunpack.c.l.b16 %v190
    %v454 = vunpack.c.h.b16 %v190
    %v455 = vunpack.c.l.b16 %v191
    %v456 = vunpack.c.h.b16 %v191
    %v457 = vunpack.c.l.b16 %v192
    %v458 = vunpack.c.h.b16 %v192
    %v459 = vunpack.c.l.b16 %v193
    %v460 = vunpack.c.h.b16 %v193
    %v461 = vunpack.c.l.b16 %v194
    %v462 = vunpack.c.h.b16 %v194
    %v463 = vunpack.c.l.b16 %v195
    %v464 = vunpack.c.h.b16 %v195
    %v465 = vunpack.c.l.b16 %v196
    %v466 = vunpack.c.h.b16 %v196
    %v467 = vunpack.c.l.b16 %v197
    %v468 = vunpack.c.h.b16 %v197
    %v469 = vunpack.c.l.b16 %v198
    %v470 = vunpack.c.h.b16 %v198
    %v471 = vunpack.c.l.b16 %v199
    %v472 = vunpack.c.h.b16 %v199
    %v473 = vunpack.c.l.b16 %v200
    %v474 = vunpack.c.h.b16 %v200
    %v475 = vunpack.c.l.b16 %v201
    %v476 = vunpack.c.h.b16 %v201
    %v477 = vunpack.c.l.b16 %v202
    %v478 = vunpack.c.h.b16 %v202
    %v479 = vunpack.c.l.b16 %v203
    %v480 = vunpack.c.h.b16 %v203
    %v481 = vunpack.c.l.b16 %v204
    %v482 = vunpack.c.h.b16 %v204
    %v483 = vunpack.c.l.b16 %v205
    %v484 = vunpack.c.h.b16 %v205
    %v485 = vunpack.c.l.b16 %v206
    %v486 = vunpack.c.h.b16 %v206
    %v487 = vunpack.c.l.b16 %v207
    %v488 = vunpack.c.h.b16 %v207
    %v489 = vunpack.c.l.b16 %v208
    %v490 = vunpack.c.h.b16 %v208
    %v491 = vunpack.c.l.b16 %v209
    %v492 = vunpack.c.h.b16 %v209
    %v493 = vunpack.c.l.b16 %v210
    %v494 = vunpack.c.h.b16 %v210
    %v495 = vunpack.c.l.b16 %v211
    %v496 = vunpack.c.h.b16 %v211
    %v497 = vunpack.c.l.b16 %v212
    %v498 = vunpack.c.h.b16 %v212
    %v499 = vunpack.c.l.b16 %v213
    %v500 = vunpack.c.h.b16 %v213
    %v501 = vunpack.c.l.b16 %v214
    %v502 = vunpack.c.h.b16 %v214
    %v503 = vunpack.c.l.b16 %v215
    %v504 = vunpack.c.h.b16 %v215
    %v505 = vunpack.c.l.b16 %v216
    %v506 = vunpack.c.h.b16 %v216
    %v507 = vunpack.c.l.b16 %v217
    %v508 = vunpack.c.h.b16 %v217
    %v509 = vunpack.c.l.b16 %v218
    %v510 = vunpack.c.h.b16 %v218
    %v511 = vunpack.c.l.b16 %v219
    %v512 = vunpack.c.h.b16 %v219
    %v513 = vunpack.c.l.b16 %v220
    %v514 = vunpack.c.h.b16 %v220
    %v515 = vunpack.c.l.b16 %v221
    %v516 = vunpack.c.h.b16 %v221
    %v517 = vunpack.c.l.b16 %v222
    %v518 = vunpack.c.h.b16 %v222
    %v519 = vunpack.c.l.b16 %v223
    %v520 = vunpack.c.h.b16 %v223
    %v521 = vunpack.c.l.b16 %v224
    %v522 = vunpack.c.h.b16 %v224
    %v523 = vunpack.c.l.b16 %v225
    %v524 = vunpack.c.h.b16 %v225
    %v525 = vunpack.c.l.b16 %v226
    %v526 = vunpack.c.h.b16 %v226
    %v527 = vunpack.c.l.b16 %v227
    %v528 = vunpack.c.h.b16 %v227
    %v529 = vunpack.c.l.b16 %v228
    %v530 = vunpack.c.h.b16 %v228
    %v531 = vunpack.c.l.b16 %v229
    %v532 = vunpack.c.h.b16 %v229
    %v533 = vunpack.c.l.b16 %v230
    %v534 = vunpack.c.h.b16 %v230
    %v535 = vunpack.c.l.b16 %v231
    %v536 = vunpack.c.h.b16 %v231
    %v537 = vunpack.c.l.b16 %v232
    %v538 = vunpack.c.h.b16 %v232
    %v539 = vunpack.c.l.b16 %v233
    %v540 = vunpack.c.h.b16 %v233
    %v541 = vunpack.c.l.b16 %v234
    %v542 = vunpack.c.h.b16 %v234
    %v543 = vunpack.c.l.b16 %v235
    %v544 = vunpack.c.h.b16 %v235
    %v545 = vunpack.c.l.b16 %v236
    %v546 = vunpack.c.h.b16 %v236
    %v547 = vunpack.c.l.b16 %v237
    %v548 = vunpack.c.h.b16 %v237
    %v549 = vunpack.c.l.b16 %v238
    %v550 = vunpack.c.h.b16 %v238
    %v551 = vpack.c.b16 %v427, %v423
    %v552 = vpack.c.b16 %v428, %v424
    %v553 = vpack.c.b16 %v429, %v425
    %v554 = vpack.c.b16 %v430, %v426
    %v555 = vpack.c.b16 %v435, %v431
    %v556 = vpack.c.b16 %v436, %v432
    %v557 = vpack.c.b16 %v437, %v433
    %v558 = vpack.c.b16 %v438, %v434
    %v559 = vpack.c.b16 %v443, %v439
    %v560 = vpack.c.b16 %v444, %v440
    %v561 = vpack.c.b16 %v445, %v441
    %v562 = vpack.c.b16 %v446, %v442
    %v563 = vpack.c.b16 %v451, %v447
    %v564 = vpack.c.b16 %v452, %v448
    %v565 = vpack.c.b16 %v453, %v449
    %v566 = vpack.c.b16 %v454, %v450
    %v567 = vpack.c.b16 %v459, %v455
    %v568 = vpack.c.b16 %v460, %v456
    %v569 = vpack.c.b16 %v461, %v457
    %v570 = vpack.c.b16 %v462, %v458
    %v571 = vpack.c.b16 %v467, %v463
    %v572 = vpack.c.b16 %v468, %v464
    %v573 = vpack.c.b16 %v469, %v465
    %v574 = vpack.c.b16 %v470, %v466
    %v575 = vpack.c.b16 %v475, %v471
    %v576 = vpack.c.b16 %v476, %v472
    %v577 = vpack.c.b16 %v477, %v473
    %v578 = vpack.c.b16 %v478, %v474
    %v579 = vpack.c.b16 %v483, %v479
    %v580 = vpack.c.b16 %v484, %v480
    %v581 = vpack.c.b16 %v485, %v481
    %v582 = vpack.c.b16 %v486, %v482
    %v583 = vpack.c.b16 %v491, %v487
    %v584 = vpack.c.b16 %v492, %v488
    %v585 = vpack.c.b16 %v493, %v489
    %v586 = vpack.c.b16 %v494, %v490
    %v587 = vpack.c.b16 %v499, %v495
    %v588 = vpack.c.b16 %v500, %v496
    %v589 = vpack.c.b16 %v501, %v497
    %v590 = vpack.c.b16 %v502, %v498
    %v591 = vpack.c.b16 %v507, %v503
    %v592 = vpack.c.b16 %v508, %v504
    %v593 = vpack.c.b16 %v509, %v505
    %v594 = vpack.c.b16 %v510, %v506
    %v595 = vpack.c.b16 %v515, %v511
    %v596 = vpack.c.b16 %v516, %v512
    %v597 = vpack.c.b16 %v517, %v513
    %v598 = vpack.c.b16 %v518, %v514
    %v599 = vpack.c.b16 %v523, %v519
    %v600 = vpack.c.b16 %v524, %v520
    %v601 = vpack.c.b16 %v525, %v521
    %v602 = vpack.c.b16 %v526, %v522
    %v603 = vpack.c.b16 %v531, %v527
    %v604 = vpack.c.b16 %v532, %v528
    %v605 = vpack.c.b16 %v533, %v529
    %v606 = vpack.c.b16 %v534, %v530
    %v607 = vpack.c.b16 %v539, %v535
    %v608 = vpack.c.b16 %v540, %v536
    %v609 = vpack.c.b16 %v541, %v537
    %v610 = vpack.c.b16 %v542, %v538
    %v611 = vpack.c.b16 %v547, %v543
    %v612 = vpack.c.b16 %v548, %v544
    %v613 = vpack.c.b16 %v549, %v545
    %v614 = vpack.c.b16 %v550, %v546
    %679 = vmatprep.subr.bf16.mxu0 %v552
    %680 = vmatpush1.bf16.msra.mxu0 %v551
    %681 = vmatprep.subr.bf16.mxu0 %v556
    %682 = vmatpush1.bf16.msra.mxu0 %v555
    %683 = vmatprep.subr.bf16.mxu0 %v560
    %684 = vmatpush1.bf16.msra.mxu0 %v559
    %685 = vmatprep.subr.bf16.mxu0 %v564
    %686 = vmatpush1.bf16.msra.mxu0 %v563
    %687 = vmatprep.subr.bf16.mxu0 %v568
    %688 = vmatpush1.bf16.msra.mxu0 %v567
    %689 = vmatprep.subr.bf16.mxu0 %v572
    %690 = vmatpush1.bf16.msra.mxu0 %v571
    %691 = vmatprep.subr.bf16.mxu0 %v576
    %692 = vmatpush1.bf16.msra.mxu0 %v575
    %693 = vmatprep.subr.bf16.mxu0 %v580
    %694 = vmatpush1.bf16.msra.mxu0 %v579
    %695 = vmatprep.subr.bf16.mxu0 %v584
    %696 = vmatpush1.bf16.msra.mxu0 %v583
    %697 = vmatprep.subr.bf16.mxu0 %v588
    %698 = vmatpush1.bf16.msra.mxu0 %v587
    %699 = vmatprep.subr.bf16.mxu0 %v592
    %700 = vmatpush1.bf16.msra.mxu0 %v591
    %701 = vmatprep.subr.bf16.mxu0 %v596
    %702 = vmatpush1.bf16.msra.mxu0 %v595
    %703 = vmatprep.subr.bf16.mxu0 %v600
    %704 = vmatpush1.bf16.msra.mxu0 %v599
    %705 = vmatprep.subr.bf16.mxu0 %v604
    %706 = vmatpush1.bf16.msra.mxu0 %v603
    %707 = vmatprep.subr.bf16.mxu0 %v608
    %708 = vmatpush1.bf16.msra.mxu0 %v607
    %709 = vmatprep.subr.bf16.mxu0 %v612
    %710 = vmatpush1.bf16.msra.mxu0 %v611
    %711 = vmatprep.mubr.bf16.mxu0 %v312
    %712 = vmatmul.mubr.bf16.gmra.mrb[0].mxu0 %v311
    %v713 = vpop.f32.mrb[0].mxu0
    %v714 = vadd.f32 0.0, %v713
    %v715 = vpop.f32.mrb[0].mxu0
    %v716 = vadd.f32 0.0, %v715
    %v717 = vpop.f32.mrb[0].mxu0
    %v718 = vadd.f32 0.0, %v717
    %v719 = vpop.f32.mrb[0].mxu0
    %v720 = vadd.f32 0.0, %v719
    %721 = vmatprep.mubr.bf16.mxu0 %v314
    %722 = vmatmul.mubr.bf16.gmra.mrb[0].mxu0 %v313
    %v723 = vpop.f32.mrb[0].mxu0
    %v724 = vadd.f32 0.0, %v723
    %v725 = vpop.f32.mrb[0].mxu0
    %v726 = vadd.f32 0.0, %v725
    %v727 = vpop.f32.mrb[0].mxu0
    %v728 = vadd.f32 0.0, %v727
    %v729 = vpop.f32.mrb[0].mxu0
    %v730 = vadd.f32 0.0, %v729
    %731 = vmatprep.mubr.bf16.mxu0 %v316
    %732 = vmatmul.mubr.bf16.gmra.mrb[0].mxu0 %v315
    %v733 = vpop.f32.mrb[0].mxu0
    %v734 = vadd.f32 0.0, %v733
    %v735 = vpop.f32.mrb[0].mxu0
    %v736 = vadd.f32 0.0, %v735
    %v737 = vpop.f32.mrb[0].mxu0
    %v738 = vadd.f32 0.0, %v737
    %v739 = vpop.f32.mrb[0].mxu0
    %v740 = vadd.f32 0.0, %v739
    %741 = vmatprep.mubr.bf16.mxu0 %v318
    %742 = vmatmul.mubr.bf16.gmra.mrb[0].mxu0 %v317
    %v743 = vpop.f32.mrb[0].mxu0
    %v744 = vadd.f32 0.0, %v743
    %v745 = vpop.f32.mrb[0].mxu0
    %v746 = vadd.f32 0.0, %v745
    %v747 = vpop.f32.mrb[0].mxu0
    %v748 = vadd.f32 0.0, %v747
    %v749 = vpop.f32.mrb[0].mxu0
    %v750 = vadd.f32 0.0, %v749
    %751 = vmatprep.mubr.bf16.mxu0 %v320
    %752 = vmatmul.mubr.bf16.gmra.mrb[0].mxu0 %v319
    %v753 = vpop.f32.mrb[0].mxu0
    %v754 = vadd.f32 0.0, %v753
    %v755 = vpop.f32.mrb[0].mxu0
    %v756 = vadd.f32 0.0, %v755
    %v757 = vpop.f32.mrb[0].mxu0
    %v758 = vadd.f32 0.0, %v757
    %v759 = vpop.f32.mrb[0].mxu0
    %v760 = vadd.f32 0.0, %v759
    %761 = vmatprep.mubr.bf16.mxu0 %v322
    %762 = vmatmul.mubr.bf16.gmra.mrb[0].mxu0 %v321
    %v763 = vpop.f32.mrb[0].mxu0
    %v764 = vadd.f32 0.0, %v763
    %v765 = vpop.f32.mrb[0].mxu0
    %v766 = vadd.f32 0.0, %v765
    %v767 = vpop.f32.mrb[0].mxu0
    %v768 = vadd.f32 0.0, %v767
    %v769 = vpop.f32.mrb[0].mxu0
    %v770 = vadd.f32 0.0, %v769
    %771 = vmatprep.mubr.bf16.mxu0 %v324
    %772 = vmatmul.mubr.bf16.gmra.mrb[0].mxu0 %v323
    %v773 = vpop.f32.mrb[0].mxu0
    %v774 = vadd.f32 0.0, %v773
    %v775 = vpop.f32.mrb[0].mxu0
    %v776 = vadd.f32 0.0, %v775
    %v777 = vpop.f32.mrb[0].mxu0
    %v778 = vadd.f32 0.0, %v777
    %v779 = vpop.f32.mrb[0].mxu0
    %v780 = vadd.f32 0.0, %v779
    %781 = vmatprep.mubr.bf16.mxu0 %v326
    %782 = vmatmul.mubr.bf16.gmra.mrb[0].mxu0 %v325
    %v783 = vpop.f32.mrb[0].mxu0
    %v784 = vadd.f32 0.0, %v783
    %v785 = vpop.f32.mrb[0].mxu0
    %v786 = vadd.f32 0.0, %v785
    %v787 = vpop.f32.mrb[0].mxu0
    %v788 = vadd.f32 0.0, %v787
    %v789 = vpop.f32.mrb[0].mxu0
    %v790 = vadd.f32 0.0, %v789
    %791 = vmatprep.mubr.bf16.mxu0 %v328
    %792 = vmatmul.mubr.bf16.gmra.mrb[0].mxu0 %v327
    %v793 = vpop.f32.mrb[0].mxu0
    %v794 = vadd.f32 0.0, %v793
    %v795 = vpop.f32.mrb[0].mxu0
    %v796 = vadd.f32 0.0, %v795
    %v797 = vpop.f32.mrb[0].mxu0
    %v798 = vadd.f32 0.0, %v797
    %v799 = vpop.f32.mrb[0].mxu0
    %v800 = vadd.f32 0.0, %v799
    %801 = vmatprep.mubr.bf16.mxu0 %v330
    %802 = vmatmul.mubr.bf16.gmra.mrb[0].mxu0 %v329
    %v803 = vpop.f32.mrb[0].mxu0
    %v804 = vadd.f32 0.0, %v803
    %v805 = vpop.f32.mrb[0].mxu0
    %v806 = vadd.f32 0.0, %v805
    %v807 = vpop.f32.mrb[0].mxu0
    %v808 = vadd.f32 0.0, %v807
    %v809 = vpop.f32.mrb[0].mxu0
    %v810 = vadd.f32 0.0, %v809
    %811 = vmatprep.mubr.bf16.mxu0 %v332
    %812 = vmatmul.mubr.bf16.gmra.mrb[0].mxu0 %v331
    %v813 = vpop.f32.mrb[0].mxu0
    %v814 = vadd.f32 0.0, %v813
    %v815 = vpop.f32.mrb[0].mxu0
    %v816 = vadd.f32 0.0, %v815
    %v817 = vpop.f32.mrb[0].mxu0
    %v818 = vadd.f32 0.0, %v817
    %v819 = vpop.f32.mrb[0].mxu0
    %v820 = vadd.f32 0.0, %v819
    %821 = vmatprep.mubr.bf16.mxu0 %v334
    %822 = vmatmul.mubr.bf16.gmra.mrb[0].mxu0 %v333
    %v823 = vpop.f32.mrb[0].mxu0
    %v824 = vadd.f32 0.0, %v823
    %v825 = vpop.f32.mrb[0].mxu0
    %v826 = vadd.f32 0.0, %v825
    %v827 = vpop.f32.mrb[0].mxu0
    %v828 = vadd.f32 0.0, %v827
    %v829 = vpop.f32.mrb[0].mxu0
    %v830 = vadd.f32 0.0, %v829
    %831 = vdwg.mxu0
    %832 = vmatprep.subr.bf16.mxu0 %v554
    %833 = vmatpush1.bf16.msra.mxu0 %v553
    %834 = vmatprep.subr.bf16.mxu0 %v558
    %835 = vmatpush1.bf16.msra.mxu0 %v557
    %836 = vmatprep.subr.bf16.mxu0 %v562
    %837 = vmatpush1.bf16.msra.mxu0 %v561
    %838 = vmatprep.subr.bf16.mxu0 %v566
    %839 = vmatpush1.bf16.msra.mxu0 %v565
    %840 = vmatprep.subr.bf16.mxu0 %v570
    %841 = vmatpush1.bf16.msra.mxu0 %v569
    %842 = vmatprep.subr.bf16.mxu0 %v574
    %843 = vmatpush1.bf16.msra.mxu0 %v573
    %844 = vmatprep.subr.bf16.mxu0 %v578
    %845 = vmatpush1.bf16.msra.mxu0 %v577
    %846 = vmatprep.subr.bf16.mxu0 %v582
    %847 = vmatpush1.bf16.msra.mxu0 %v581
    %848 = vmatprep.subr.bf16.mxu0 %v586
    %849 = vmatpush1.bf16.msra.mxu0 %v585
    %850 = vmatprep.subr.bf16.mxu0 %v590
    %851 = vmatpush1.bf16.msra.mxu0 %v589
    %852 = vmatprep.subr.bf16.mxu0 %v594
    %853 = vmatpush1.bf16.msra.mxu0 %v593
    %854 = vmatprep.subr.bf16.mxu0 %v598
    %855 = vmatpush1.bf16.msra.mxu0 %v597
    %856 = vmatprep.subr.bf16.mxu0 %v602
    %857 = vmatpush1.bf16.msra.mxu0 %v601
    %858 = vmatprep.subr.bf16.mxu0 %v606
    %859 = vmatpush1.bf16.msra.mxu0 %v605
    %860 = vmatprep.subr.bf16.mxu0 %v610
    %861 = vmatpush1.bf16.msra.mxu0 %v609
    %862 = vmatprep.subr.bf16.mxu0 %v614
    %863 = vmatpush1.bf16.msra.mxu0 %v613
    %864 = vmatprep.mubr.bf16.mxu0 %v312
    %865 = vmatmul.mubr.bf16.gmra.mrb[0].mxu0 %v311
    %v866 = vpop.f32.mrb[0].mxu0
    %v867 = vadd.f32 0.0, %v866
    %v868 = vpop.f32.mrb[0].mxu0
    %v869 = vadd.f32 0.0, %v868
    %v870 = vpop.f32.mrb[0].mxu0
    %v871 = vadd.f32 0.0, %v870
    %v872 = vpop.f32.mrb[0].mxu0
    %v873 = vadd.f32 0.0, %v872
    %874 = vmatprep.mubr.bf16.mxu0 %v314
    %875 = vmatmul.mubr.bf16.gmra.mrb[0].mxu0 %v313
    %v876 = vpop.f32.mrb[0].mxu0
    %v877 = vadd.f32 0.0, %v876
    %v878 = vpop.f32.mrb[0].mxu0
    %v879 = vadd.f32 0.0, %v878
    %v880 = vpop.f32.mrb[0].mxu0
    %v881 = vadd.f32 0.0, %v880
    %v882 = vpop.f32.mrb[0].mxu0
    %v883 = vadd.f32 0.0, %v882
    %884 = vmatprep.mubr.bf16.mxu0 %v316
    %885 = vmatmul.mubr.bf16.gmra.mrb[0].mxu0 %v315
    %v886 = vpop.f32.mrb[0].mxu0
    %v887 = vadd.f32 0.0, %v886
    %v888 = vpop.f32.mrb[0].mxu0
    %v889 = vadd.f32 0.0, %v888
    %v890 = vpop.f32.mrb[0].mxu0
    %v891 = vadd.f32 0.0, %v890
    %v892 = vpop.f32.mrb[0].mxu0
    %v893 = vadd.f32 0.0, %v892
    %894 = vmatprep.mubr.bf16.mxu0 %v318
    %895 = vmatmul.mubr.bf16.gmra.mrb[0].mxu0 %v317
    %v896 = vpop.f32.mrb[0].mxu0
    %v897 = vadd.f32 0.0, %v896
    %v898 = vpop.f32.mrb[0].mxu0
    %v899 = vadd.f32 0.0, %v898
    %v900 = vpop.f32.mrb[0].mxu0
    %v901 = vadd.f32 0.0, %v900
    %v902 = vpop.f32.mrb[0].mxu0
    %v903 = vadd.f32 0.0, %v902
    %904 = vmatprep.mubr.bf16.mxu0 %v320
    %905 = vmatmul.mubr.bf16.gmra.mrb[0].mxu0 %v319
    %v906 = vpop.f32.mrb[0].mxu0
    %v907 = vadd.f32 0.0, %v906
    %v908 = vpop.f32.mrb[0].mxu0
    %v909 = vadd.f32 0.0, %v908
    %v910 = vpop.f32.mrb[0].mxu0
    %v911 = vadd.f32 0.0, %v910
    %v912 = vpop.f32.mrb[0].mxu0
    %v913 = vadd.f32 0.0, %v912
    %914 = vmatprep.mubr.bf16.mxu0 %v322
    %915 = vmatmul.mubr.bf16.gmra.mrb[0].mxu0 %v321
    %v916 = vpop.f32.mrb[0].mxu0
    %v917 = vadd.f32 0.0, %v916
    %v918 = vpop.f32.mrb[0].mxu0
    %v919 = vadd.f32 0.0, %v918
    %v920 = vpop.f32.mrb[0].mxu0
    %v921 = vadd.f32 0.0, %v920
    %v922 = vpop.f32.mrb[0].mxu0
    %v923 = vadd.f32 0.0, %v922
    %924 = vmatprep.mubr.bf16.mxu0 %v324
    %925 = vmatmul.mubr.bf16.gmra.mrb[0].mxu0 %v323
    %v926 = vpop.f32.mrb[0].mxu0
    %v927 = vadd.f32 0.0, %v926
    %v928 = vpop.f32.mrb[0].mxu0
    %v929 = vadd.f32 0.0, %v928
    %v930 = vpop.f32.mrb[0].mxu0
    %v931 = vadd.f32 0.0, %v930
    %v932 = vpop.f32.mrb[0].mxu0
    %v933 = vadd.f32 0.0, %v932
    %934 = vmatprep.mubr.bf16.mxu0 %v326
    %935 = vmatmul.mubr.bf16.gmra.mrb[0].mxu0 %v325
    %v936 = vpop.f32.mrb[0].mxu0
    %v937 = vadd.f32 0.0, %v936
    %v938 = vpop.f32.mrb[0].mxu0
    %v939 = vadd.f32 0.0, %v938
    %v940 = vpop.f32.mrb[0].mxu0
    %v941 = vadd.f32 0.0, %v940
    %v942 = vpop.f32.mrb[0].mxu0
    %v943 = vadd.f32 0.0, %v942
    %944 = vmatprep.mubr.bf16.mxu0 %v328
    %945 = vmatmul.mubr.bf16.gmra.mrb[0].mxu0 %v327
    %v946 = vpop.f32.mrb[0].mxu0
    %v947 = vadd.f32 0.0, %v946
    %v948 = vpop.f32.mrb[0].mxu0
    %v949 = vadd.f32 0.0, %v948
    %v950 = vpop.f32.mrb[0].mxu0
    %v951 = vadd.f32 0.0, %v950
    %v952 = vpop.f32.mrb[0].mxu0
    %v953 = vadd.f32 0.0, %v952
    %954 = vmatprep.mubr.bf16.mxu0 %v330
    %955 = vmatmul.mubr.bf16.gmra.mrb[0].mxu0 %v329
    %v956 = vpop.f32.mrb[0].mxu0
    %v957 = vadd.f32 0.0, %v956
    %v958 = vpop.f32.mrb[0].mxu0
    %v959 = vadd.f32 0.0, %v958
    %v960 = vpop.f32.mrb[0].mxu0
    %v961 = vadd.f32 0.0, %v960
    %v962 = vpop.f32.mrb[0].mxu0
    %v963 = vadd.f32 0.0, %v962
    %964 = vmatprep.mubr.bf16.mxu0 %v332
    %965 = vmatmul.mubr.bf16.gmra.mrb[0].mxu0 %v331
    %v966 = vpop.f32.mrb[0].mxu0
    %v967 = vadd.f32 0.0, %v966
    %v968 = vpop.f32.mrb[0].mxu0
    %v969 = vadd.f32 0.0, %v968
    %v970 = vpop.f32.mrb[0].mxu0
    %v971 = vadd.f32 0.0, %v970
    %v972 = vpop.f32.mrb[0].mxu0
    %v973 = vadd.f32 0.0, %v972
    %974 = vmatprep.mubr.bf16.mxu0 %v334
    %975 = vmatmul.mubr.bf16.gmra.mrb[0].mxu0 %v333
    %v976 = vpop.f32.mrb[0].mxu0
    %v977 = vadd.f32 0.0, %v976
    %v978 = vpop.f32.mrb[0].mxu0
    %v979 = vadd.f32 0.0, %v978
    %v980 = vpop.f32.mrb[0].mxu0
    %v981 = vadd.f32 0.0, %v980
    %v982 = vpop.f32.mrb[0].mxu0
    %v983 = vadd.f32 0.0, %v982
    %984 = vdwg.mxu0
    %v985 = vmax.f32 %v714, %v774
    %v986 = vmax.f32 %v716, %v776
    %v987 = vmax.f32 %v867, %v927
    %v988 = vmax.f32 %v869, %v929
    %v989 = vmax.f32 %v718, %v778
    %v990 = vmax.f32 %v720, %v780
    %v991 = vmax.f32 %v871, %v931
    %v992 = vmax.f32 %v873, %v933
    %v993 = vmax.f32 %v724, %v784
    %v994 = vmax.f32 %v726, %v786
    %v995 = vmax.f32 %v877, %v937
    %v996 = vmax.f32 %v879, %v939
    %v997 = vmax.f32 %v728, %v788
    %v998 = vmax.f32 %v730, %v790
    %v999 = vmax.f32 %v881, %v941
    %v1000 = vmax.f32 %v883, %v943
    %v1001 = vmax.f32 %v734, %v794
    %v1002 = vmax.f32 %v736, %v796
    %v1003 = vmax.f32 %v887, %v947
    %v1004 = vmax.f32 %v889, %v949
    %v1005 = vmax.f32 %v738, %v798
    %v1006 = vmax.f32 %v740, %v800
    %v1007 = vmax.f32 %v891, %v951
    %v1008 = vmax.f32 %v893, %v953
    %v1009 = vmax.f32 %v744, %v804
    %v1010 = vmax.f32 %v746, %v806
    %v1011 = vmax.f32 %v897, %v957
    %v1012 = vmax.f32 %v899, %v959
    %v1013 = vmax.f32 %v748, %v808
    %v1014 = vmax.f32 %v750, %v810
    %v1015 = vmax.f32 %v901, %v961
    %v1016 = vmax.f32 %v903, %v963
    %v1017 = vmax.f32 %v754, %v814
    %v1018 = vmax.f32 %v756, %v816
    %v1019 = vmax.f32 %v907, %v967
    %v1020 = vmax.f32 %v909, %v969
    %v1021 = vmax.f32 %v758, %v818
    %v1022 = vmax.f32 %v760, %v820
    %v1023 = vmax.f32 %v911, %v971
    %v1024 = vmax.f32 %v913, %v973
    %v1025 = vmax.f32 %v764, %v824
    %v1026 = vmax.f32 %v766, %v826
    %v1027 = vmax.f32 %v917, %v977
    %v1028 = vmax.f32 %v919, %v979
    %v1029 = vmax.f32 %v768, %v828
    %v1030 = vmax.f32 %v770, %v830
    %v1031 = vmax.f32 %v921, %v981
    %v1032 = vmax.f32 %v923, %v983
    %v1033 = vmax.f32 %v985, %v987
    %v1034 = vmax.f32 %v986, %v988
    %v1035 = vmax.f32 %v989, %v991
    %v1036 = vmax.f32 %v990, %v992
    %v1037 = vmax.f32 %v993, %v995
    %v1038 = vmax.f32 %v994, %v996
    %v1039 = vmax.f32 %v997, %v999
    %v1040 = vmax.f32 %v998, %v1000
    %v1041 = vmax.f32 %v1001, %v1003
    %v1042 = vmax.f32 %v1002, %v1004
    %v1043 = vmax.f32 %v1005, %v1007
    %v1044 = vmax.f32 %v1006, %v1008
    %v1045 = vmax.f32 %v1009, %v1011
    %v1046 = vmax.f32 %v1010, %v1012
    %v1047 = vmax.f32 %v1013, %v1015
    %v1048 = vmax.f32 %v1014, %v1016
    %v1049 = vmax.f32 %v1017, %v1019
    %v1050 = vmax.f32 %v1018, %v1020
    %v1051 = vmax.f32 %v1021, %v1023
    %v1052 = vmax.f32 %v1022, %v1024
    %v1053 = vmax.f32 %v1025, %v1027
    %v1054 = vmax.f32 %v1026, %v1028
    %v1055 = vmax.f32 %v1029, %v1031
    %v1056 = vmax.f32 %v1030, %v1032
    %v1057 = vld [vmem:[#allocation4] sm:$0x3]
    %v1059 = vlaneseq
    %v1060 = vshrl.u32 %v1059, 7
    %v1061 = vsub.s32 0, %v1060
    %v1062 = vrot.slane %v1057, %v1061
    %v1063 = vlaneseq
    %v1064 = vshrl.u32 %v1063, 7
    %v1065 = vsub.s32 1, %v1064
    %v1066 = vrot.slane %v1057, %v1065
    %v1069 = vadd.f32 %v1033, %v1062
    %v1070 = vadd.f32 %v1034, %v1066
    %v1071 = vadd.f32 %v1035, %v1062
    %v1072 = vadd.f32 %v1036, %v1066
    %v1073 = vadd.f32 %v1037, %v1062
    %v1074 = vadd.f32 %v1038, %v1066
    %v1075 = vadd.f32 %v1039, %v1062
    %v1076 = vadd.f32 %v1040, %v1066
    %v1077 = vadd.f32 %v1041, %v1062
    %v1078 = vadd.f32 %v1042, %v1066
    %v1079 = vadd.f32 %v1043, %v1062
    %v1080 = vadd.f32 %v1044, %v1066
    %v1081 = vadd.f32 %v1045, %v1062
    %v1082 = vadd.f32 %v1046, %v1066
    %v1083 = vadd.f32 %v1047, %v1062
    %v1084 = vadd.f32 %v1048, %v1066
    %v1085 = vadd.f32 %v1049, %v1062
    %v1086 = vadd.f32 %v1050, %v1066
    %v1087 = vadd.f32 %v1051, %v1062
    %v1088 = vadd.f32 %v1052, %v1066
    %v1089 = vadd.f32 %v1053, %v1062
    %v1090 = vadd.f32 %v1054, %v1066
    %v1091 = vadd.f32 %v1055, %v1062
    %v1092 = vadd.f32 %v1056, %v1066
    %v1093 = vpack.c.bf16 %v1071, %v1069
    %v1094 = vpack.c.bf16 %v1072, %v1070
    %v1095 = vpack.c.bf16 %v1075, %v1073
    %v1096 = vpack.c.bf16 %v1076, %v1074
    %v1097 = vld [vmem:[#allocation6] sm:$0xff]
    %v1098 = vld [vmem:[#allocation6 + $0x8] sm:$0xff]
    %v1099 = vld [vmem:[#allocation6 + $0x10] sm:$0xff]
    %v1100 = vld [vmem:[#allocation6 + $0x18] sm:$0xff]
    %v1101 = vld [vmem:[#allocation6 + $0x20] sm:$0xff]
    %v1102 = vld [vmem:[#allocation6 + $0x28] sm:$0xff]
    %v1103 = vld [vmem:[#allocation6 + $0x30] sm:$0xff]
    %v1104 = vld [vmem:[#allocation6 + $0x38] sm:$0xff]
    %v1105 = vld [vmem:[#allocation6 + $0x40] sm:$0xff]
    %v1106 = vld [vmem:[#allocation6 + $0x48] sm:$0xff]
    %v1107 = vld [vmem:[#allocation6 + $0x50] sm:$0xff]
    %v1108 = vld [vmem:[#allocation6 + $0x58] sm:$0xff]
    %v1109 = vld [vmem:[#allocation6 + $0x60] sm:$0xff]
    %v1110 = vld [vmem:[#allocation6 + $0x68] sm:$0xff]
    %v1111 = vld [vmem:[#allocation6 + $0x70] sm:$0xff]
    %v1112 = vld [vmem:[#allocation6 + $0x78] sm:$0xff]
    %v1113 = vld [vmem:[#allocation6 + $0x80] sm:$0xff]
    %v1114 = vld [vmem:[#allocation6 + $0x88] sm:$0xff]
    %v1115 = vld [vmem:[#allocation6 + $0x90] sm:$0xff]
    %v1116 = vld [vmem:[#allocation6 + $0x98] sm:$0xff]
    %v1117 = vld [vmem:[#allocation6 + $0xa0] sm:$0xff]
    %v1118 = vld [vmem:[#allocation6 + $0xa8] sm:$0xff]
    %v1119 = vld [vmem:[#allocation6 + $0xb0] sm:$0xff]
    %v1120 = vld [vmem:[#allocation6 + $0xb8] sm:$0xff]
    %v1121 = vld [vmem:[#allocation6 + $0xc0] sm:$0xff]
    %v1122 = vld [vmem:[#allocation6 + $0xc8] sm:$0xff]
    %v1123 = vld [vmem:[#allocation6 + $0xd0] sm:$0xff]
    %v1124 = vld [vmem:[#allocation6 + $0xd8] sm:$0xff]
    %v1125 = vld [vmem:[#allocation6 + $0xe0] sm:$0xff]
    %v1126 = vld [vmem:[#allocation6 + $0xe8] sm:$0xff]
    %v1127 = vld [vmem:[#allocation6 + $0xf0] sm:$0xff]
    %v1128 = vld [vmem:[#allocation6 + $0xf8] sm:$0xff]
    %v1129 = vld [vmem:[#allocation6 + $0x100] sm:$0xff]
    %v1130 = vld [vmem:[#allocation6 + $0x108] sm:$0xff]
    %v1131 = vld [vmem:[#allocation6 + $0x110] sm:$0xff]
    %v1132 = vld [vmem:[#allocation6 + $0x118] sm:$0xff]
    %v1133 = vld [vmem:[#allocation6 + $0x120] sm:$0xff]
    %v1134 = vld [vmem:[#allocation6 + $0x128] sm:$0xff]
    %v1135 = vld [vmem:[#allocation6 + $0x130] sm:$0xff]
    %v1136 = vld [vmem:[#allocation6 + $0x138] sm:$0xff]
    %v1137 = vld [vmem:[#allocation6 + $0x140] sm:$0xff]
    %v1138 = vld [vmem:[#allocation6 + $0x148] sm:$0xff]
    %v1139 = vld [vmem:[#allocation6 + $0x150] sm:$0xff]
    %v1140 = vld [vmem:[#allocation6 + $0x158] sm:$0xff]
    %v1141 = vld [vmem:[#allocation6 + $0x160] sm:$0xff]
    %v1142 = vld [vmem:[#allocation6 + $0x168] sm:$0xff]
    %v1143 = vld [vmem:[#allocation6 + $0x170] sm:$0xff]
    %v1144 = vld [vmem:[#allocation6 + $0x178] sm:$0xff]
    %v1145 = vld [vmem:[#allocation6 + $0x180] sm:$0xff]
    %v1146 = vld [vmem:[#allocation6 + $0x188] sm:$0xff]
    %v1147 = vld [vmem:[#allocation6 + $0x190] sm:$0xff]
    %v1148 = vld [vmem:[#allocation6 + $0x198] sm:$0xff]
    %v1149 = vld [vmem:[#allocation6 + $0x1a0] sm:$0xff]
    %v1150 = vld [vmem:[#allocation6 + $0x1a8] sm:$0xff]
    %v1151 = vld [vmem:[#allocation6 + $0x1b0] sm:$0xff]
    %v1152 = vld [vmem:[#allocation6 + $0x1b8] sm:$0xff]
    %v1153 = vld [vmem:[#allocation6 + $0x1c0] sm:$0xff]
    %v1154 = vld [vmem:[#allocation6 + $0x1c8] sm:$0xff]
    %v1155 = vld [vmem:[#allocation6 + $0x1d0] sm:$0xff]
    %v1156 = vld [vmem:[#allocation6 + $0x1d8] sm:$0xff]
    %v1157 = vld [vmem:[#allocation6 + $0x1e0] sm:$0xff]
    %v1158 = vld [vmem:[#allocation6 + $0x1e8] sm:$0xff]
    %v1159 = vld [vmem:[#allocation6 + $0x1f0] sm:$0xff]
    %v1160 = vld [vmem:[#allocation6 + $0x1f8] sm:$0xff]
    %v1161 = vpack.c.bf16 %v1083, %v1081
    %v1162 = vpack.c.bf16 %v1084, %v1082
    %v1163 = vpack.c.bf16 %v1087, %v1085
    %v1164 = vpack.c.bf16 %v1088, %v1086
    %s1165 = scalar_lea.vmem [#allocation6], 512
    %v1166 = vld [vmem:[%s1165] sm:$0xff]
    %v1167 = vld [vmem:[%s1165 + $0x8] sm:$0xff]
    %v1168 = vld [vmem:[%s1165 + $0x10] sm:$0xff]
    %v1169 = vld [vmem:[%s1165 + $0x18] sm:$0xff]
    %v1170 = vld [vmem:[%s1165 + $0x20] sm:$0xff]
    %v1171 = vld [vmem:[%s1165 + $0x28] sm:$0xff]
    %v1172 = vld [vmem:[%s1165 + $0x30] sm:$0xff]
    %v1173 = vld [vmem:[%s1165 + $0x38] sm:$0xff]
    %v1174 = vld [vmem:[%s1165 + $0x40] sm:$0xff]
    %v1175 = vld [vmem:[%s1165 + $0x48] sm:$0xff]
    %v1176 = vld [vmem:[%s1165 + $0x50] sm:$0xff]
    %v1177 = vld [vmem:[%s1165 + $0x58] sm:$0xff]
    %v1178 = vld [vmem:[%s1165 + $0x60] sm:$0xff]
    %v1179 = vld [vmem:[%s1165 + $0x68] sm:$0xff]
    %v1180 = vld [vmem:[%s1165 + $0x70] sm:$0xff]
    %v1181 = vld [vmem:[%s1165 + $0x78] sm:$0xff]
    %v1182 = vld [vmem:[%s1165 + $0x80] sm:$0xff]
    %v1183 = vld [vmem:[%s1165 + $0x88] sm:$0xff]
    %v1184 = vld [vmem:[%s1165 + $0x90] sm:$0xff]
    %v1185 = vld [vmem:[%s1165 + $0x98] sm:$0xff]
    %v1186 = vld [vmem:[%s1165 + $0xa0] sm:$0xff]
    %v1187 = vld [vmem:[%s1165 + $0xa8] sm:$0xff]
    %v1188 = vld [vmem:[%s1165 + $0xb0] sm:$0xff]
    %v1189 = vld [vmem:[%s1165 + $0xb8] sm:$0xff]
    %v1190 = vld [vmem:[%s1165 + $0xc0] sm:$0xff]
    %v1191 = vld [vmem:[%s1165 + $0xc8] sm:$0xff]
    %v1192 = vld [vmem:[%s1165 + $0xd0] sm:$0xff]
    %v1193 = vld [vmem:[%s1165 + $0xd8] sm:$0xff]
    %v1194 = vld [vmem:[%s1165 + $0xe0] sm:$0xff]
    %v1195 = vld [vmem:[%s1165 + $0xe8] sm:$0xff]
    %v1196 = vld [vmem:[%s1165 + $0xf0] sm:$0xff]
    %v1197 = vld [vmem:[%s1165 + $0xf8] sm:$0xff]
    %v1198 = vld [vmem:[%s1165 + $0x100] sm:$0xff]
    %v1199 = vld [vmem:[%s1165 + $0x108] sm:$0xff]
    %v1200 = vld [vmem:[%s1165 + $0x110] sm:$0xff]
    %v1201 = vld [vmem:[%s1165 + $0x118] sm:$0xff]
    %v1202 = vld [vmem:[%s1165 + $0x120] sm:$0xff]
    %v1203 = vld [vmem:[%s1165 + $0x128] sm:$0xff]
    %v1204 = vld [vmem:[%s1165 + $0x130] sm:$0xff]
    %v1205 = vld [vmem:[%s1165 + $0x138] sm:$0xff]
    %v1206 = vld [vmem:[%s1165 + $0x140] sm:$0xff]
    %v1207 = vld [vmem:[%s1165 + $0x148] sm:$0xff]
    %v1208 = vld [vmem:[%s1165 + $0x150] sm:$0xff]
    %v1209 = vld [vmem:[%s1165 + $0x158] sm:$0xff]
    %v1210 = vld [vmem:[%s1165 + $0x160] sm:$0xff]
    %v1211 = vld [vmem:[%s1165 + $0x168] sm:$0xff]
    %v1212 = vld [vmem:[%s1165 + $0x170] sm:$0xff]
    %v1213 = vld [vmem:[%s1165 + $0x178] sm:$0xff]
    %v1214 = vld [vmem:[%s1165 + $0x180] sm:$0xff]
    %v1215 = vld [vmem:[%s1165 + $0x188] sm:$0xff]
    %v1216 = vld [vmem:[%s1165 + $0x190] sm:$0xff]
    %v1217 = vld [vmem:[%s1165 + $0x198] sm:$0xff]
    %v1218 = vld [vmem:[%s1165 + $0x1a0] sm:$0xff]
    %v1219 = vld [vmem:[%s1165 + $0x1a8] sm:$0xff]
    %v1220 = vld [vmem:[%s1165 + $0x1b0] sm:$0xff]
    %v1221 = vld [vmem:[%s1165 + $0x1b8] sm:$0xff]
    %v1222 = vld [vmem:[%s1165 + $0x1c0] sm:$0xff]
    %v1223 = vld [vmem:[%s1165 + $0x1c8] sm:$0xff]
    %v1224 = vld [vmem:[%s1165 + $0x1d0] sm:$0xff]
    %v1225 = vld [vmem:[%s1165 + $0x1d8] sm:$0xff]
    %v1226 = vld [vmem:[%s1165 + $0x1e0] sm:$0xff]
    %v1227 = vld [vmem:[%s1165 + $0x1e8] sm:$0xff]
    %v1228 = vld [vmem:[%s1165 + $0x1f0] sm:$0xff]
    %v1229 = vld [vmem:[%s1165 + $0x1f8] sm:$0xff]
    %v1294 = vunpack.c.l.b16 %v1166
    %v1295 = vunpack.c.h.b16 %v1166
    %v1296 = vunpack.c.l.b16 %v1167
    %v1297 = vunpack.c.h.b16 %v1167
    %v1298 = vunpack.c.l.b16 %v1168
    %v1299 = vunpack.c.h.b16 %v1168
    %v1300 = vunpack.c.l.b16 %v1169
    %v1301 = vunpack.c.h.b16 %v1169
    %v1302 = vunpack.c.l.b16 %v1170
    %v1303 = vunpack.c.h.b16 %v1170
    %v1304 = vunpack.c.l.b16 %v1171
    %v1305 = vunpack.c.h.b16 %v1171
    %v1306 = vunpack.c.l.b16 %v1172
    %v1307 = vunpack.c.h.b16 %v1172
    %v1308 = vunpack.c.l.b16 %v1173
    %v1309 = vunpack.c.h.b16 %v1173
    %v1310 = vunpack.c.l.b16 %v1174
    %v1311 = vunpack.c.h.b16 %v1174
    %v1312 = vunpack.c.l.b16 %v1175
    %v1313 = vunpack.c.h.b16 %v1175
    %v1314 = vunpack.c.l.b16 %v1176
    %v1315 = vunpack.c.h.b16 %v1176
    %v1316 = vunpack.c.l.b16 %v1177
    %v1317 = vunpack.c.h.b16 %v1177
    %v1318 = vunpack.c.l.b16 %v1178
    %v1319 = vunpack.c.h.b16 %v1178
    %v1320 = vunpack.c.l.b16 %v1179
    %v1321 = vunpack.c.h.b16 %v1179
    %v1322 = vunpack.c.l.b16 %v1180
    %v1323 = vunpack.c.h.b16 %v1180
    %v1324 = vunpack.c.l.b16 %v1181
    %v1325 = vunpack.c.h.b16 %v1181
    %v1326 = vunpack.c.l.b16 %v1182
    %v1327 = vunpack.c.h.b16 %v1182
    %v1328 = vunpack.c.l.b16 %v1183
    %v1329 = vunpack.c.h.b16 %v1183
    %v1330 = vunpack.c.l.b16 %v1184
    %v1331 = vunpack.c.h.b16 %v1184
    %v1332 = vunpack.c.l.b16 %v1185
    %v1333 = vunpack.c.h.b16 %v1185
    %v1334 = vunpack.c.l.b16 %v1186
    %v1335 = vunpack.c.h.b16 %v1186
    %v1336 = vunpack.c.l.b16 %v1187
    %v1337 = vunpack.c.h.b16 %v1187
    %v1338 = vunpack.c.l.b16 %v1188
    %v1339 = vunpack.c.h.b16 %v1188
    %v1340 = vunpack.c.l.b16 %v1189
    %v1341 = vunpack.c.h.b16 %v1189
    %v1342 = vunpack.c.l.b16 %v1190
    %v1343 = vunpack.c.h.b16 %v1190
    %v1344 = vunpack.c.l.b16 %v1191
    %v1345 = vunpack.c.h.b16 %v1191
    %v1346 = vunpack.c.l.b16 %v1192
    %v1347 = vunpack.c.h.b16 %v1192
    %v1348 = vunpack.c.l.b16 %v1193
    %v1349 = vunpack.c.h.b16 %v1193
    %v1350 = vunpack.c.l.b16 %v1194
    %v1351 = vunpack.c.h.b16 %v1194
    %v1352 = vunpack.c.l.b16 %v1195
    %v1353 = vunpack.c.h.b16 %v1195
    %v1354 = vunpack.c.l.b16 %v1196
    %v1355 = vunpack.c.h.b16 %v1196
    %v1356 = vunpack.c.l.b16 %v1197
    %v1357 = vunpack.c.h.b16 %v1197
    %v1358 = vunpack.c.l.b16 %v1198
    %v1359 = vunpack.c.h.b16 %v1198
    %v1360 = vunpack.c.l.b16 %v1199
    %v1361 = vunpack.c.h.b16 %v1199
    %v1362 = vunpack.c.l.b16 %v1200
    %v1363 = vunpack.c.h.b16 %v1200
    %v1364 = vunpack.c.l.b16 %v1201
    %v1365 = vunpack.c.h.b16 %v1201
    %v1366 = vunpack.c.l.b16 %v1202
    %v1367 = vunpack.c.h.b16 %v1202
    %v1368 = vunpack.c.l.b16 %v1203
    %v1369 = vunpack.c.h.b16 %v1203
    %v1370 = vunpack.c.l.b16 %v1204
    %v1371 = vunpack.c.h.b16 %v1204
    %v1372 = vunpack.c.l.b16 %v1205
    %v1373 = vunpack.c.h.b16 %v1205
    %v1374 = vunpack.c.l.b16 %v1206
    %v1375 = vunpack.c.h.b16 %v1206
    %v1376 = vunpack.c.l.b16 %v1207
    %v1377 = vunpack.c.h.b16 %v1207
    %v1378 = vunpack.c.l.b16 %v1208
    %v1379 = vunpack.c.h.b16 %v1208
    %v1380 = vunpack.c.l.b16 %v1209
    %v1381 = vunpack.c.h.b16 %v1209
    %v1382 = vunpack.c.l.b16 %v1210
    %v1383 = vunpack.c.h.b16 %v1210
    %v1384 = vunpack.c.l.b16 %v1211
    %v1385 = vunpack.c.h.b16 %v1211
    %v1386 = vunpack.c.l.b16 %v1212
    %v1387 = vunpack.c.h.b16 %v1212
    %v1388 = vunpack.c.l.b16 %v1213
    %v1389 = vunpack.c.h.b16 %v1213
    %v1390 = vunpack.c.l.b16 %v1214
    %v1391 = vunpack.c.h.b16 %v1214
    %v1392 = vunpack.c.l.b16 %v1215
    %v1393 = vunpack.c.h.b16 %v1215
    %v1394 = vunpack.c.l.b16 %v1216
    %v1395 = vunpack.c.h.b16 %v1216
    %v1396 = vunpack.c.l.b16 %v1217
    %v1397 = vunpack.c.h.b16 %v1217
    %v1398 = vunpack.c.l.b16 %v1218
    %v1399 = vunpack.c.h.b16 %v1218
    %v1400 = vunpack.c.l.b16 %v1219
    %v1401 = vunpack.c.h.b16 %v1219
    %v1402 = vunpack.c.l.b16 %v1220
    %v1403 = vunpack.c.h.b16 %v1220
    %v1404 = vunpack.c.l.b16 %v1221
    %v1405 = vunpack.c.h.b16 %v1221
    %v1406 = vunpack.c.l.b16 %v1222
    %v1407 = vunpack.c.h.b16 %v1222
    %v1408 = vunpack.c.l.b16 %v1223
    %v1409 = vunpack.c.h.b16 %v1223
    %v1410 = vunpack.c.l.b16 %v1224
    %v1411 = vunpack.c.h.b16 %v1224
    %v1412 = vunpack.c.l.b16 %v1225
    %v1413 = vunpack.c.h.b16 %v1225
    %v1414 = vunpack.c.l.b16 %v1226
    %v1415 = vunpack.c.h.b16 %v1226
    %v1416 = vunpack.c.l.b16 %v1227
    %v1417 = vunpack.c.h.b16 %v1227
    %v1418 = vunpack.c.l.b16 %v1228
    %v1419 = vunpack.c.h.b16 %v1228
    %v1420 = vunpack.c.l.b16 %v1229
    %v1421 = vunpack.c.h.b16 %v1229
    %v1422 = vpack.c.b16 %v1298, %v1294
    %v1423 = vpack.c.b16 %v1299, %v1295
    %v1424 = vpack.c.b16 %v1300, %v1296
    %v1425 = vpack.c.b16 %v1301, %v1297
    %v1426 = vpack.c.b16 %v1306, %v1302
    %v1427 = vpack.c.b16 %v1307, %v1303
    %v1428 = vpack.c.b16 %v1308, %v1304
    %v1429 = vpack.c.b16 %v1309, %v1305
    %v1430 = vpack.c.b16 %v1314, %v1310
    %v1431 = vpack.c.b16 %v1315, %v1311
    %v1432 = vpack.c.b16 %v1316, %v1312
    %v1433 = vpack.c.b16 %v1317, %v1313
    %v1434 = vpack.c.b16 %v1322, %v1318
    %v1435 = vpack.c.b16 %v1323, %v1319
    %v1436 = vpack.c.b16 %v1324, %v1320
    %v1437 = vpack.c.b16 %v1325, %v1321
    %v1438 = vpack.c.b16 %v1330, %v1326
    %v1439 = vpack.c.b16 %v1331, %v1327
    %v1440 = vpack.c.b16 %v1332, %v1328
    %v1441 = vpack.c.b16 %v1333, %v1329
    %v1442 = vpack.c.b16 %v1338, %v1334
    %v1443 = vpack.c.b16 %v1339, %v1335
    %v1444 = vpack.c.b16 %v1340, %v1336
    %v1445 = vpack.c.b16 %v1341, %v1337
    %v1446 = vpack.c.b16 %v1346, %v1342
    %v1447 = vpack.c.b16 %v1347, %v1343
    %v1448 = vpack.c.b16 %v1348, %v1344
    %v1449 = vpack.c.b16 %v1349, %v1345
    %v1450 = vpack.c.b16 %v1354, %v1350
    %v1451 = vpack.c.b16 %v1355, %v1351
    %v1452 = vpack.c.b16 %v1356, %v1352
    %v1453 = vpack.c.b16 %v1357, %v1353
    %v1454 = vpack.c.b16 %v1362, %v1358
    %v1455 = vpack.c.b16 %v1363, %v1359
    %v1456 = vpack.c.b16 %v1364, %v1360
    %v1457 = vpack.c.b16 %v1365, %v1361
    %v1458 = vpack.c.b16 %v1370, %v1366
    %v1459 = vpack.c.b16 %v1371, %v1367
    %v1460 = vpack.c.b16 %v1372, %v1368
    %v1461 = vpack.c.b16 %v1373, %v1369
    %v1462 = vpack.c.b16 %v1378, %v1374
    %v1463 = vpack.c.b16 %v1379, %v1375
    %v1464 = vpack.c.b16 %v1380, %v1376
    %v1465 = vpack.c.b16 %v1381, %v1377
    %v1466 = vpack.c.b16 %v1386, %v1382
    %v1467 = vpack.c.b16 %v1387, %v1383
    %v1468 = vpack.c.b16 %v1388, %v1384
    %v1469 = vpack.c.b16 %v1389, %v1385
    %v1470 = vpack.c.b16 %v1394, %v1390
    %v1471 = vpack.c.b16 %v1395, %v1391
    %v1472 = vpack.c.b16 %v1396, %v1392
    %v1473 = vpack.c.b16 %v1397, %v1393
    %v1474 = vpack.c.b16 %v1402, %v1398
    %v1475 = vpack.c.b16 %v1403, %v1399
    %v1476 = vpack.c.b16 %v1404, %v1400
    %v1477 = vpack.c.b16 %v1405, %v1401
    %v1478 = vpack.c.b16 %v1410, %v1406
    %v1479 = vpack.c.b16 %v1411, %v1407
    %v1480 = vpack.c.b16 %v1412, %v1408
    %v1481 = vpack.c.b16 %v1413, %v1409
    %v1482 = vpack.c.b16 %v1418, %v1414
    %v1483 = vpack.c.b16 %v1419, %v1415
    %v1484 = vpack.c.b16 %v1420, %v1416
    %v1485 = vpack.c.b16 %v1421, %v1417
    %1550 = vmatprep.subr.bf16.mxu0 %v1423
    %1551 = vmatpush1.bf16.msra.mxu0 %v1422
    %1552 = vmatprep.subr.bf16.mxu0 %v1427
    %1553 = vmatpush1.bf16.msra.mxu0 %v1426
    %1554 = vmatprep.subr.bf16.mxu0 %v1431
    %1555 = vmatpush1.bf16.msra.mxu0 %v1430
    %1556 = vmatprep.subr.bf16.mxu0 %v1435
    %1557 = vmatpush1.bf16.msra.mxu0 %v1434
    %1558 = vmatprep.subr.bf16.mxu0 %v1439
    %1559 = vmatpush1.bf16.msra.mxu0 %v1438
    %1560 = vmatprep.subr.bf16.mxu0 %v1443
    %1561 = vmatpush1.bf16.msra.mxu0 %v1442
    %1562 = vmatprep.subr.bf16.mxu0 %v1447
    %1563 = vmatpush1.bf16.msra.mxu0 %v1446
    %1564 = vmatprep.subr.bf16.mxu0 %v1451
    %1565 = vmatpush1.bf16.msra.mxu0 %v1450
    %1566 = vmatprep.subr.bf16.mxu0 %v1455
    %1567 = vmatpush1.bf16.msra.mxu0 %v1454
    %1568 = vmatprep.subr.bf16.mxu0 %v1459
    %1569 = vmatpush1.bf16.msra.mxu0 %v1458
    %1570 = vmatprep.subr.bf16.mxu0 %v1463
    %1571 = vmatpush1.bf16.msra.mxu0 %v1462
    %1572 = vmatprep.subr.bf16.mxu0 %v1467
    %1573 = vmatpush1.bf16.msra.mxu0 %v1466
    %1574 = vmatprep.subr.bf16.mxu0 %v1471
    %1575 = vmatpush1.bf16.msra.mxu0 %v1470
    %1576 = vmatprep.subr.bf16.mxu0 %v1475
    %1577 = vmatpush1.bf16.msra.mxu0 %v1474
    %1578 = vmatprep.subr.bf16.mxu0 %v1479
    %1579 = vmatpush1.bf16.msra.mxu0 %v1478
    %1580 = vmatprep.subr.bf16.mxu0 %v1483
    %1581 = vmatpush1.bf16.msra.mxu0 %v1482
    %1582 = vmatprep.mubr.bf16.mxu0 %v1162
    %1583 = vmatmul.mubr.bf16.gmra.mrb[0].mxu0 %v1161
    %v1584 = vpop.f32.mrb[0].mxu0
    %v1585 = vadd.f32 0.0, %v1584
    %v1586 = vpop.f32.mrb[0].mxu0
    %v1587 = vadd.f32 0.0, %v1586
    %v1588 = vpop.f32.mrb[0].mxu0
    %v1589 = vadd.f32 0.0, %v1588
    %v1590 = vpop.f32.mrb[0].mxu0
    %v1591 = vadd.f32 0.0, %v1590
    %1592 = vmatprep.mubr.bf16.mxu0 %v1164
    %1593 = vmatmul.mubr.bf16.gmra.mrb[0].mxu0 %v1163
    %v1594 = vpop.f32.mrb[0].mxu0
    %v1595 = vadd.f32 0.0, %v1594
    %v1596 = vpop.f32.mrb[0].mxu0
    %v1597 = vadd.f32 0.0, %v1596
    %v1598 = vpop.f32.mrb[0].mxu0
    %v1599 = vadd.f32 0.0, %v1598
    %v1600 = vpop.f32.mrb[0].mxu0
    %v1601 = vadd.f32 0.0, %v1600
    %1602 = vdwg.mxu0
    %1603 = vmatprep.subr.bf16.mxu0 %v1425
    %1604 = vmatpush1.bf16.msra.mxu0 %v1424
    %1605 = vmatprep.subr.bf16.mxu0 %v1429
    %1606 = vmatpush1.bf16.msra.mxu0 %v1428
    %1607 = vmatprep.subr.bf16.mxu0 %v1433
    %1608 = vmatpush1.bf16.msra.mxu0 %v1432
    %1609 = vmatprep.subr.bf16.mxu0 %v1437
    %1610 = vmatpush1.bf16.msra.mxu0 %v1436
    %1611 = vmatprep.subr.bf16.mxu0 %v1441
    %1612 = vmatpush1.bf16.msra.mxu0 %v1440
    %1613 = vmatprep.subr.bf16.mxu0 %v1445
    %1614 = vmatpush1.bf16.msra.mxu0 %v1444
    %1615 = vmatprep.subr.bf16.mxu0 %v1449
    %1616 = vmatpush1.bf16.msra.mxu0 %v1448
    %1617 = vmatprep.subr.bf16.mxu0 %v1453
    %1618 = vmatpush1.bf16.msra.mxu0 %v1452
    %1619 = vmatprep.subr.bf16.mxu0 %v1457
    %1620 = vmatpush1.bf16.msra.mxu0 %v1456
    %1621 = vmatprep.subr.bf16.mxu0 %v1461
    %1622 = vmatpush1.bf16.msra.mxu0 %v1460
    %1623 = vmatprep.subr.bf16.mxu0 %v1465
    %1624 = vmatpush1.bf16.msra.mxu0 %v1464
    %1625 = vmatprep.subr.bf16.mxu0 %v1469
    %1626 = vmatpush1.bf16.msra.mxu0 %v1468
    %1627 = vmatprep.subr.bf16.mxu0 %v1473
    %1628 = vmatpush1.bf16.msra.mxu0 %v1472
    %1629 = vmatprep.subr.bf16.mxu0 %v1477
    %1630 = vmatpush1.bf16.msra.mxu0 %v1476
    %1631 = vmatprep.subr.bf16.mxu0 %v1481
    %1632 = vmatpush1.bf16.msra.mxu0 %v1480
    %1633 = vmatprep.subr.bf16.mxu0 %v1485
    %1634 = vmatpush1.bf16.msra.mxu0 %v1484
    %1635 = vmatprep.mubr.bf16.mxu0 %v1162
    %1636 = vmatmul.mubr.bf16.gmra.mrb[0].mxu0 %v1161
    %v1637 = vpop.f32.mrb[0].mxu0
    %v1638 = vadd.f32 0.0, %v1637
    %v1639 = vpop.f32.mrb[0].mxu0
    %v1640 = vadd.f32 0.0, %v1639
    %v1641 = vpop.f32.mrb[0].mxu0
    %v1642 = vadd.f32 0.0, %v1641
    %v1643 = vpop.f32.mrb[0].mxu0
    %v1644 = vadd.f32 0.0, %v1643
    %1645 = vmatprep.mubr.bf16.mxu0 %v1164
    %1646 = vmatmul.mubr.bf16.gmra.mrb[0].mxu0 %v1163
    %v1647 = vpop.f32.mrb[0].mxu0
    %v1648 = vadd.f32 0.0, %v1647
    %v1649 = vpop.f32.mrb[0].mxu0
    %v1650 = vadd.f32 0.0, %v1649
    %v1651 = vpop.f32.mrb[0].mxu0
    %v1652 = vadd.f32 0.0, %v1651
    %v1653 = vpop.f32.mrb[0].mxu0
    %v1654 = vadd.f32 0.0, %v1653
    %1655 = vdwg.mxu0
    %v1720 = vunpack.c.l.b16 %v1097
    %v1721 = vunpack.c.h.b16 %v1097
    %v1722 = vunpack.c.l.b16 %v1098
    %v1723 = vunpack.c.h.b16 %v1098
    %v1724 = vunpack.c.l.b16 %v1099
    %v1725 = vunpack.c.h.b16 %v1099
    %v1726 = vunpack.c.l.b16 %v1100
    %v1727 = vunpack.c.h.b16 %v1100
    %v1728 = vunpack.c.l.b16 %v1101
    %v1729 = vunpack.c.h.b16 %v1101
    %v1730 = vunpack.c.l.b16 %v1102
    %v1731 = vunpack.c.h.b16 %v1102
    %v1732 = vunpack.c.l.b16 %v1103
    %v1733 = vunpack.c.h.b16 %v1103
    %v1734 = vunpack.c.l.b16 %v1104
    %v1735 = vunpack.c.h.b16 %v1104
    %v1736 = vunpack.c.l.b16 %v1105
    %v1737 = vunpack.c.h.b16 %v1105
    %v1738 = vunpack.c.l.b16 %v1106
    %v1739 = vunpack.c.h.b16 %v1106
    %v1740 = vunpack.c.l.b16 %v1107
    %v1741 = vunpack.c.h.b16 %v1107
    %v1742 = vunpack.c.l.b16 %v1108
    %v1743 = vunpack.c.h.b16 %v1108
    %v1744 = vunpack.c.l.b16 %v1109
    %v1745 = vunpack.c.h.b16 %v1109
    %v1746 = vunpack.c.l.b16 %v1110
    %v1747 = vunpack.c.h.b16 %v1110
    %v1748 = vunpack.c.l.b16 %v1111
    %v1749 = vunpack.c.h.b16 %v1111
    %v1750 = vunpack.c.l.b16 %v1112
    %v1751 = vunpack.c.h.b16 %v1112
    %v1752 = vunpack.c.l.b16 %v1113
    %v1753 = vunpack.c.h.b16 %v1113
    %v1754 = vunpack.c.l.b16 %v1114
    %v1755 = vunpack.c.h.b16 %v1114
    %v1756 = vunpack.c.l.b16 %v1115
    %v1757 = vunpack.c.h.b16 %v1115
    %v1758 = vunpack.c.l.b16 %v1116
    %v1759 = vunpack.c.h.b16 %v1116
    %v1760 = vunpack.c.l.b16 %v1117
    %v1761 = vunpack.c.h.b16 %v1117
    %v1762 = vunpack.c.l.b16 %v1118
    %v1763 = vunpack.c.h.b16 %v1118
    %v1764 = vunpack.c.l.b16 %v1119
    %v1765 = vunpack.c.h.b16 %v1119
    %v1766 = vunpack.c.l.b16 %v1120
    %v1767 = vunpack.c.h.b16 %v1120
    %v1768 = vunpack.c.l.b16 %v1121
    %v1769 = vunpack.c.h.b16 %v1121
    %v1770 = vunpack.c.l.b16 %v1122
    %v1771 = vunpack.c.h.b16 %v1122
    %v1772 = vunpack.c.l.b16 %v1123
    %v1773 = vunpack.c.h.b16 %v1123
    %v1774 = vunpack.c.l.b16 %v1124
    %v1775 = vunpack.c.h.b16 %v1124
    %v1776 = vunpack.c.l.b16 %v1125
    %v1777 = vunpack.c.h.b16 %v1125
    %v1778 = vunpack.c.l.b16 %v1126
    %v1779 = vunpack.c.h.b16 %v1126
    %v1780 = vunpack.c.l.b16 %v1127
    %v1781 = vunpack.c.h.b16 %v1127
    %v1782 = vunpack.c.l.b16 %v1128
    %v1783 = vunpack.c.h.b16 %v1128
    %v1784 = vunpack.c.l.b16 %v1129
    %v1785 = vunpack.c.h.b16 %v1129
    %v1786 = vunpack.c.l.b16 %v1130
    %v1787 = vunpack.c.h.b16 %v1130
    %v1788 = vunpack.c.l.b16 %v1131
    %v1789 = vunpack.c.h.b16 %v1131
    %v1790 = vunpack.c.l.b16 %v1132
    %v1791 = vunpack.c.h.b16 %v1132
    %v1792 = vunpack.c.l.b16 %v1133
    %v1793 = vunpack.c.h.b16 %v1133
    %v1794 = vunpack.c.l.b16 %v1134
    %v1795 = vunpack.c.h.b16 %v1134
    %v1796 = vunpack.c.l.b16 %v1135
    %v1797 = vunpack.c.h.b16 %v1135
    %v1798 = vunpack.c.l.b16 %v1136
    %v1799 = vunpack.c.h.b16 %v1136
    %v1800 = vunpack.c.l.b16 %v1137
    %v1801 = vunpack.c.h.b16 %v1137
    %v1802 = vunpack.c.l.b16 %v1138
    %v1803 = vunpack.c.h.b16 %v1138
    %v1804 = vunpack.c.l.b16 %v1139
    %v1805 = vunpack.c.h.b16 %v1139
    %v1806 = vunpack.c.l.b16 %v1140
    %v1807 = vunpack.c.h.b16 %v1140
    %v1808 = vunpack.c.l.b16 %v1141
    %v1809 = vunpack.c.h.b16 %v1141
    %v1810 = vunpack.c.l.b16 %v1142
    %v1811 = vunpack.c.h.b16 %v1142
    %v1812 = vunpack.c.l.b16 %v1143
    %v1813 = vunpack.c.h.b16 %v1143
    %v1814 = vunpack.c.l.b16 %v1144
    %v1815 = vunpack.c.h.b16 %v1144
    %v1816 = vunpack.c.l.b16 %v1145
    %v1817 = vunpack.c.h.b16 %v1145
    %v1818 = vunpack.c.l.b16 %v1146
    %v1819 = vunpack.c.h.b16 %v1146
    %v1820 = vunpack.c.l.b16 %v1147
    %v1821 = vunpack.c.h.b16 %v1147
    %v1822 = vunpack.c.l.b16 %v1148
    %v1823 = vunpack.c.h.b16 %v1148
    %v1824 = vunpack.c.l.b16 %v1149
    %v1825 = vunpack.c.h.b16 %v1149
    %v1826 = vunpack.c.l.b16 %v1150
    %v1827 = vunpack.c.h.b16 %v1150
    %v1828 = vunpack.c.l.b16 %v1151
    %v1829 = vunpack.c.h.b16 %v1151
    %v1830 = vunpack.c.l.b16 %v1152
    %v1831 = vunpack.c.h.b16 %v1152
    %v1832 = vunpack.c.l.b16 %v1153
    %v1833 = vunpack.c.h.b16 %v1153
    %v1834 = vunpack.c.l.b16 %v1154
    %v1835 = vunpack.c.h.b16 %v1154
    %v1836 = vunpack.c.l.b16 %v1155
    %v1837 = vunpack.c.h.b16 %v1155
    %v1838 = vunpack.c.l.b16 %v1156
    %v1839 = vunpack.c.h.b16 %v1156
    %v1840 = vunpack.c.l.b16 %v1157
    %v1841 = vunpack.c.h.b16 %v1157
    %v1842 = vunpack.c.l.b16 %v1158
    %v1843 = vunpack.c.h.b16 %v1158
    %v1844 = vunpack.c.l.b16 %v1159
    %v1845 = vunpack.c.h.b16 %v1159
    %v1846 = vunpack.c.l.b16 %v1160
    %v1847 = vunpack.c.h.b16 %v1160
    %v1848 = vpack.c.b16 %v1724, %v1720
    %v1849 = vpack.c.b16 %v1725, %v1721
    %v1850 = vpack.c.b16 %v1726, %v1722
    %v1851 = vpack.c.b16 %v1727, %v1723
    %v1852 = vpack.c.b16 %v1732, %v1728
    %v1853 = vpack.c.b16 %v1733, %v1729
    %v1854 = vpack.c.b16 %v1734, %v1730
    %v1855 = vpack.c.b16 %v1735, %v1731
    %v1856 = vpack.c.b16 %v1740, %v1736
    %v1857 = vpack.c.b16 %v1741, %v1737
    %v1858 = vpack.c.b16 %v1742, %v1738
    %v1859 = vpack.c.b16 %v1743, %v1739
    %v1860 = vpack.c.b16 %v1748, %v1744
    %v1861 = vpack.c.b16 %v1749, %v1745
    %v1862 = vpack.c.b16 %v1750, %v1746
    %v1863 = vpack.c.b16 %v1751, %v1747
    %v1864 = vpack.c.b16 %v1756, %v1752
    %v1865 = vpack.c.b16 %v1757, %v1753
    %v1866 = vpack.c.b16 %v1758, %v1754
    %v1867 = vpack.c.b16 %v1759, %v1755
    %v1868 = vpack.c.b16 %v1764, %v1760
    %v1869 = vpack.c.b16 %v1765, %v1761
    %v1870 = vpack.c.b16 %v1766, %v1762
    %v1871 = vpack.c.b16 %v1767, %v1763
    %v1872 = vpack.c.b16 %v1772, %v1768
    %v1873 = vpack.c.b16 %v1773, %v1769
    %v1874 = vpack.c.b16 %v1774, %v1770
    %v1875 = vpack.c.b16 %v1775, %v1771
    %v1876 = vpack.c.b16 %v1780, %v1776
    %v1877 = vpack.c.b16 %v1781, %v1777
    %v1878 = vpack.c.b16 %v1782, %v1778
    %v1879 = vpack.c.b16 %v1783, %v1779
    %v1880 = vpack.c.b16 %v1788, %v1784
    %v1881 = vpack.c.b16 %v1789, %v1785
    %v1882 = vpack.c.b16 %v1790, %v1786
    %v1883 = vpack.c.b16 %v1791, %v1787
    %v1884 = vpack.c.b16 %v1796, %v1792
    %v1885 = vpack.c.b16 %v1797, %v1793
    %v1886 = vpack.c.b16 %v1798, %v1794
    %v1887 = vpack.c.b16 %v1799, %v1795
    %v1888 = vpack.c.b16 %v1804, %v1800
    %v1889 = vpack.c.b16 %v1805, %v1801
    %v1890 = vpack.c.b16 %v1806, %v1802
    %v1891 = vpack.c.b16 %v1807, %v1803
    %v1892 = vpack.c.b16 %v1812, %v1808
    %v1893 = vpack.c.b16 %v1813, %v1809
    %v1894 = vpack.c.b16 %v1814, %v1810
    %v1895 = vpack.c.b16 %v1815, %v1811
    %v1896 = vpack.c.b16 %v1820, %v1816
    %v1897 = vpack.c.b16 %v1821, %v1817
    %v1898 = vpack.c.b16 %v1822, %v1818
    %v1899 = vpack.c.b16 %v1823, %v1819
    %v1900 = vpack.c.b16 %v1828, %v1824
    %v1901 = vpack.c.b16 %v1829, %v1825
    %v1902 = vpack.c.b16 %v1830, %v1826
    %v1903 = vpack.c.b16 %v1831, %v1827
    %v1904 = vpack.c.b16 %v1836, %v1832
    %v1905 = vpack.c.b16 %v1837, %v1833
    %v1906 = vpack.c.b16 %v1838, %v1834
    %v1907 = vpack.c.b16 %v1839, %v1835
    %v1908 = vpack.c.b16 %v1844, %v1840
    %v1909 = vpack.c.b16 %v1845, %v1841
    %v1910 = vpack.c.b16 %v1846, %v1842
    %v1911 = vpack.c.b16 %v1847, %v1843
    %1976 = vmatprep.subr.bf16.mxu0 %v1849
    %1977 = vmatpush1.bf16.msra.mxu0 %v1848
    %1978 = vmatprep.subr.bf16.mxu0 %v1853
    %1979 = vmatpush1.bf16.msra.mxu0 %v1852
    %1980 = vmatprep.subr.bf16.mxu0 %v1857
    %1981 = vmatpush1.bf16.msra.mxu0 %v1856
    %1982 = vmatprep.subr.bf16.mxu0 %v1861
    %1983 = vmatpush1.bf16.msra.mxu0 %v1860
    %1984 = vmatprep.subr.bf16.mxu0 %v1865
    %1985 = vmatpush1.bf16.msra.mxu0 %v1864
    %1986 = vmatprep.subr.bf16.mxu0 %v1869
    %1987 = vmatpush1.bf16.msra.mxu0 %v1868
    %1988 = vmatprep.subr.bf16.mxu0 %v1873
    %1989 = vmatpush1.bf16.msra.mxu0 %v1872
    %1990 = vmatprep.subr.bf16.mxu0 %v1877
    %1991 = vmatpush1.bf16.msra.mxu0 %v1876
    %1992 = vmatprep.subr.bf16.mxu0 %v1881
    %1993 = vmatpush1.bf16.msra.mxu0 %v1880
    %1994 = vmatprep.subr.bf16.mxu0 %v1885
    %1995 = vmatpush1.bf16.msra.mxu0 %v1884
    %1996 = vmatprep.subr.bf16.mxu0 %v1889
    %1997 = vmatpush1.bf16.msra.mxu0 %v1888
    %1998 = vmatprep.subr.bf16.mxu0 %v1893
    %1999 = vmatpush1.bf16.msra.mxu0 %v1892
    %2000 = vmatprep.subr.bf16.mxu0 %v1897
    %2001 = vmatpush1.bf16.msra.mxu0 %v1896
    %2002 = vmatprep.subr.bf16.mxu0 %v1901
    %2003 = vmatpush1.bf16.msra.mxu0 %v1900
    %2004 = vmatprep.subr.bf16.mxu0 %v1905
    %2005 = vmatpush1.bf16.msra.mxu0 %v1904
    %2006 = vmatprep.subr.bf16.mxu0 %v1909
    %2007 = vmatpush1.bf16.msra.mxu0 %v1908
    %2008 = vmatprep.mubr.bf16.mxu0 %v1094
    %2009 = vmatmul.mubr.bf16.gmra.mrb[0].mxu0 %v1093
    %v2010 = vpop.f32.mrb[0].mxu0
    %v2011 = vadd.f32 %v1585, %v2010
    %v2012 = vpop.f32.mrb[0].mxu0
    %v2013 = vadd.f32 %v1587, %v2012
    %v2014 = vpop.f32.mrb[0].mxu0
    %v2015 = vadd.f32 %v1589, %v2014
    %v2016 = vpop.f32.mrb[0].mxu0
    %v2017 = vadd.f32 %v1591, %v2016
    %2018 = vmatprep.mubr.bf16.mxu0 %v1096
    %2019 = vmatmul.mubr.bf16.gmra.mrb[0].mxu0 %v1095
    %v2020 = vpop.f32.mrb[0].mxu0
    %v2021 = vadd.f32 %v1595, %v2020
    %v2022 = vpop.f32.mrb[0].mxu0
    %v2023 = vadd.f32 %v1597, %v2022
    %v2024 = vpop.f32.mrb[0].mxu0
    %v2025 = vadd.f32 %v1599, %v2024
    %v2026 = vpop.f32.mrb[0].mxu0
    %v2027 = vadd.f32 %v1601, %v2026
    %2028 = vdwg.mxu0
    %2029 = vmatprep.subr.bf16.mxu0 %v1851
    %2030 = vmatpush1.bf16.msra.mxu0 %v1850
    %2031 = vmatprep.subr.bf16.mxu0 %v1855
    %2032 = vmatpush1.bf16.msra.mxu0 %v1854
    %2033 = vmatprep.subr.bf16.mxu0 %v1859
    %2034 = vmatpush1.bf16.msra.mxu0 %v1858
    %2035 = vmatprep.subr.bf16.mxu0 %v1863
    %2036 = vmatpush1.bf16.msra.mxu0 %v1862
    %2037 = vmatprep.subr.bf16.mxu0 %v1867
    %2038 = vmatpush1.bf16.msra.mxu0 %v1866
    %2039 = vmatprep.subr.bf16.mxu0 %v1871
    %2040 = vmatpush1.bf16.msra.mxu0 %v1870
    %2041 = vmatprep.subr.bf16.mxu0 %v1875
    %2042 = vmatpush1.bf16.msra.mxu0 %v1874
    %2043 = vmatprep.subr.bf16.mxu0 %v1879
    %2044 = vmatpush1.bf16.msra.mxu0 %v1878
    %2045 = vmatprep.subr.bf16.mxu0 %v1883
    %2046 = vmatpush1.bf16.msra.mxu0 %v1882
    %2047 = vmatprep.subr.bf16.mxu0 %v1887
    %2048 = vmatpush1.bf16.msra.mxu0 %v1886
    %2049 = vmatprep.subr.bf16.mxu0 %v1891
    %2050 = vmatpush1.bf16.msra.mxu0 %v1890
    %2051 = vmatprep.subr.bf16.mxu0 %v1895
    %2052 = vmatpush1.bf16.msra.mxu0 %v1894
    %2053 = vmatprep.subr.bf16.mxu0 %v1899
    %2054 = vmatpush1.bf16.msra.mxu0 %v1898
    %2055 = vmatprep.subr.bf16.mxu0 %v1903
    %2056 = vmatpush1.bf16.msra.mxu0 %v1902
    %2057 = vmatprep.subr.bf16.mxu0 %v1907
    %2058 = vmatpush1.bf16.msra.mxu0 %v1906
    %2059 = vmatprep.subr.bf16.mxu0 %v1911
    %2060 = vmatpush1.bf16.msra.mxu0 %v1910
    %2061 = vmatprep.mubr.bf16.mxu0 %v1094
    %2062 = vmatmul.mubr.bf16.gmra.mrb[0].mxu0 %v1093
    %v2063 = vpop.f32.mrb[0].mxu0
    %v2064 = vadd.f32 %v1638, %v2063
    %v2065 = vpop.f32.mrb[0].mxu0
    %v2066 = vadd.f32 %v1640, %v2065
    %v2067 = vpop.f32.mrb[0].mxu0
    %v2068 = vadd.f32 %v1642, %v2067
    %v2069 = vpop.f32.mrb[0].mxu0
    %v2070 = vadd.f32 %v1644, %v2069
    %2071 = vmatprep.mubr.bf16.mxu0 %v1096
    %2072 = vmatmul.mubr.bf16.gmra.mrb[0].mxu0 %v1095
    %v2073 = vpop.f32.mrb[0].mxu0
    %v2074 = vadd.f32 %v1648, %v2073
    %v2075 = vpop.f32.mrb[0].mxu0
    %v2076 = vadd.f32 %v1650, %v2075
    %v2077 = vpop.f32.mrb[0].mxu0
    %v2078 = vadd.f32 %v1652, %v2077
    %v2079 = vpop.f32.mrb[0].mxu0
    %v2080 = vadd.f32 %v1654, %v2079
    %2081 = vdwg.mxu0
    %v2082 = vpack.c.bf16 %v1073, %v1071
    %v2083 = vpack.c.bf16 %v1074, %v1072
    %v2084 = vpack.c.bf16 %v1077, %v1075
    %v2085 = vpack.c.bf16 %v1078, %v1076
    %s2086 = scalar_lea.vmem [#allocation6], 1024
    %v2087 = vld [vmem:[%s2086] sm:$0xff]
    %v2088 = vld [vmem:[%s2086 + $0x8] sm:$0xff]
    %v2089 = vld [vmem:[%s2086 + $0x10] sm:$0xff]
    %v2090 = vld [vmem:[%s2086 + $0x18] sm:$0xff]
    %v2091 = vld [vmem:[%s2086 + $0x20] sm:$0xff]
    %v2092 = vld [vmem:[%s2086 + $0x28] sm:$0xff]
    %v2093 = vld [vmem:[%s2086 + $0x30] sm:$0xff]
    %v2094 = vld [vmem:[%s2086 + $0x38] sm:$0xff]
    %v2095 = vld [vmem:[%s2086 + $0x40] sm:$0xff]
    %v2096 = vld [vmem:[%s2086 + $0x48] sm:$0xff]
    %v2097 = vld [vmem:[%s2086 + $0x50] sm:$0xff]
    %v2098 = vld [vmem:[%s2086 + $0x58] sm:$0xff]
    %v2099 = vld [vmem:[%s2086 + $0x60] sm:$0xff]
    %v2100 = vld [vmem:[%s2086 + $0x68] sm:$0xff]
    %v2101 = vld [vmem:[%s2086 + $0x70] sm:$0xff]
    %v2102 = vld [vmem:[%s2086 + $0x78] sm:$0xff]
    %v2103 = vld [vmem:[%s2086 + $0x80] sm:$0xff]
    %v2104 = vld [vmem:[%s2086 + $0x88] sm:$0xff]
    %v2105 = vld [vmem:[%s2086 + $0x90] sm:$0xff]
    %v2106 = vld [vmem:[%s2086 + $0x98] sm:$0xff]
    %v2107 = vld [vmem:[%s2086 + $0xa0] sm:$0xff]
    %v2108 = vld [vmem:[%s2086 + $0xa8] sm:$0xff]
    %v2109 = vld [vmem:[%s2086 + $0xb0] sm:$0xff]
    %v2110 = vld [vmem:[%s2086 + $0xb8] sm:$0xff]
    %v2111 = vld [vmem:[%s2086 + $0xc0] sm:$0xff]
    %v2112 = vld [vmem:[%s2086 + $0xc8] sm:$0xff]
    %v2113 = vld [vmem:[%s2086 + $0xd0] sm:$0xff]
    %v2114 = vld [vmem:[%s2086 + $0xd8] sm:$0xff]
    %v2115 = vld [vmem:[%s2086 + $0xe0] sm:$0xff]
    %v2116 = vld [vmem:[%s2086 + $0xe8] sm:$0xff]
    %v2117 = vld [vmem:[%s2086 + $0xf0] sm:$0xff]
    %v2118 = vld [vmem:[%s2086 + $0xf8] sm:$0xff]
    %v2119 = vld [vmem:[%s2086 + $0x100] sm:$0xff]
    %v2120 = vld [vmem:[%s2086 + $0x108] sm:$0xff]
    %v2121 = vld [vmem:[%s2086 + $0x110] sm:$0xff]
    %v2122 = vld [vmem:[%s2086 + $0x118] sm:$0xff]
    %v2123 = vld [vmem:[%s2086 + $0x120] sm:$0xff]
    %v2124 = vld [vmem:[%s2086 + $0x128] sm:$0xff]
    %v2125 = vld [vmem:[%s2086 + $0x130] sm:$0xff]
    %v2126 = vld [vmem:[%s2086 + $0x138] sm:$0xff]
    %v2127 = vld [vmem:[%s2086 + $0x140] sm:$0xff]
    %v2128 = vld [vmem:[%s2086 + $0x148] sm:$0xff]
    %v2129 = vld [vmem:[%s2086 + $0x150] sm:$0xff]
    %v2130 = vld [vmem:[%s2086 + $0x158] sm:$0xff]
    %v2131 = vld [vmem:[%s2086 + $0x160] sm:$0xff]
    %v2132 = vld [vmem:[%s2086 + $0x168] sm:$0xff]
    %v2133 = vld [vmem:[%s2086 + $0x170] sm:$0xff]
    %v2134 = vld [vmem:[%s2086 + $0x178] sm:$0xff]
    %v2135 = vld [vmem:[%s2086 + $0x180] sm:$0xff]
    %v2136 = vld [vmem:[%s2086 + $0x188] sm:$0xff]
    %v2137 = vld [vmem:[%s2086 + $0x190] sm:$0xff]
    %v2138 = vld [vmem:[%s2086 + $0x198] sm:$0xff]
    %v2139 = vld [vmem:[%s2086 + $0x1a0] sm:$0xff]
    %v2140 = vld [vmem:[%s2086 + $0x1a8] sm:$0xff]
    %v2141 = vld [vmem:[%s2086 + $0x1b0] sm:$0xff]
    %v2142 = vld [vmem:[%s2086 + $0x1b8] sm:$0xff]
    %v2143 = vld [vmem:[%s2086 + $0x1c0] sm:$0xff]
    %v2144 = vld [vmem:[%s2086 + $0x1c8] sm:$0xff]
    %v2145 = vld [vmem:[%s2086 + $0x1d0] sm:$0xff]
    %v2146 = vld [vmem:[%s2086 + $0x1d8] sm:$0xff]
    %v2147 = vld [vmem:[%s2086 + $0x1e0] sm:$0xff]
    %v2148 = vld [vmem:[%s2086 + $0x1e8] sm:$0xff]
    %v2149 = vld [vmem:[%s2086 + $0x1f0] sm:$0xff]
    %v2150 = vld [vmem:[%s2086 + $0x1f8] sm:$0xff]
    %v2215 = vunpack.c.l.b16 %v2087
    %v2216 = vunpack.c.h.b16 %v2087
    %v2217 = vunpack.c.l.b16 %v2088
    %v2218 = vunpack.c.h.b16 %v2088
    %v2219 = vunpack.c.l.b16 %v2089
    %v2220 = vunpack.c.h.b16 %v2089
    %v2221 = vunpack.c.l.b16 %v2090
    %v2222 = vunpack.c.h.b16 %v2090
    %v2223 = vunpack.c.l.b16 %v2091
    %v2224 = vunpack.c.h.b16 %v2091
    %v2225 = vunpack.c.l.b16 %v2092
    %v2226 = vunpack.c.h.b16 %v2092
    %v2227 = vunpack.c.l.b16 %v2093
    %v2228 = vunpack.c.h.b16 %v2093
    %v2229 = vunpack.c.l.b16 %v2094
    %v2230 = vunpack.c.h.b16 %v2094
    %v2231 = vunpack.c.l.b16 %v2095
    %v2232 = vunpack.c.h.b16 %v2095
    %v2233 = vunpack.c.l.b16 %v2096
    %v2234 = vunpack.c.h.b16 %v2096
    %v2235 = vunpack.c.l.b16 %v2097
    %v2236 = vunpack.c.h.b16 %v2097
    %v2237 = vunpack.c.l.b16 %v2098
    %v2238 = vunpack.c.h.b16 %v2098
    %v2239 = vunpack.c.l.b16 %v2099
    %v2240 = vunpack.c.h.b16 %v2099
    %v2241 = vunpack.c.l.b16 %v2100
    %v2242 = vunpack.c.h.b16 %v2100
    %v2243 = vunpack.c.l.b16 %v2101
    %v2244 = vunpack.c.h.b16 %v2101
    %v2245 = vunpack.c.l.b16 %v2102
    %v2246 = vunpack.c.h.b16 %v2102
    %v2247 = vunpack.c.l.b16 %v2103
    %v2248 = vunpack.c.h.b16 %v2103
    %v2249 = vunpack.c.l.b16 %v2104
    %v2250 = vunpack.c.h.b16 %v2104
    %v2251 = vunpack.c.l.b16 %v2105
    %v2252 = vunpack.c.h.b16 %v2105
    %v2253 = vunpack.c.l.b16 %v2106
    %v2254 = vunpack.c.h.b16 %v2106
    %v2255 = vunpack.c.l.b16 %v2107
    %v2256 = vunpack.c.h.b16 %v2107
    %v2257 = vunpack.c.l.b16 %v2108
    %v2258 = vunpack.c.h.b16 %v2108
    %v2259 = vunpack.c.l.b16 %v2109
    %v2260 = vunpack.c.h.b16 %v2109
    %v2261 = vunpack.c.l.b16 %v2110
    %v2262 = vunpack.c.h.b16 %v2110
    %v2263 = vunpack.c.l.b16 %v2111
    %v2264 = vunpack.c.h.b16 %v2111
    %v2265 = vunpack.c.l.b16 %v2112
    %v2266 = vunpack.c.h.b16 %v2112
    %v2267 = vunpack.c.l.b16 %v2113
    %v2268 = vunpack.c.h.b16 %v2113
    %v2269 = vunpack.c.l.b16 %v2114
    %v2270 = vunpack.c.h.b16 %v2114
    %v2271 = vunpack.c.l.b16 %v2115
    %v2272 = vunpack.c.h.b16 %v2115
    %v2273 = vunpack.c.l.b16 %v2116
    %v2274 = vunpack.c.h.b16 %v2116
    %v2275 = vunpack.c.l.b16 %v2117
    %v2276 = vunpack.c.h.b16 %v2117
    %v2277 = vunpack.c.l.b16 %v2118
    %v2278 = vunpack.c.h.b16 %v2118
    %v2279 = vunpack.c.l.b16 %v2119
    %v2280 = vunpack.c.h.b16 %v2119
    %v2281 = vunpack.c.l.b16 %v2120
    %v2282 = vunpack.c.h.b16 %v2120
    %v2283 = vunpack.c.l.b16 %v2121
    %v2284 = vunpack.c.h.b16 %v2121
    %v2285 = vunpack.c.l.b16 %v2122
    %v2286 = vunpack.c.h.b16 %v2122
    %v2287 = vunpack.c.l.b16 %v2123
    %v2288 = vunpack.c.h.b16 %v2123
    %v2289 = vunpack.c.l.b16 %v2124
    %v2290 = vunpack.c.h.b16 %v2124
    %v2291 = vunpack.c.l.b16 %v2125
    %v2292 = vunpack.c.h.b16 %v2125
    %v2293 = vunpack.c.l.b16 %v2126
    %v2294 = vunpack.c.h.b16 %v2126
    %v2295 = vunpack.c.l.b16 %v2127
    %v2296 = vunpack.c.h.b16 %v2127
    %v2297 = vunpack.c.l.b16 %v2128
    %v2298 = vunpack.c.h.b16 %v2128
    %v2299 = vunpack.c.l.b16 %v2129
    %v2300 = vunpack.c.h.b16 %v2129
    %v2301 = vunpack.c.l.b16 %v2130
    %v2302 = vunpack.c.h.b16 %v2130
    %v2303 = vunpack.c.l.b16 %v2131
    %v2304 = vunpack.c.h.b16 %v2131
    %v2305 = vunpack.c.l.b16 %v2132
    %v2306 = vunpack.c.h.b16 %v2132
    %v2307 = vunpack.c.l.b16 %v2133
    %v2308 = vunpack.c.h.b16 %v2133
    %v2309 = vunpack.c.l.b16 %v2134
    %v2310 = vunpack.c.h.b16 %v2134
    %v2311 = vunpack.c.l.b16 %v2135
    %v2312 = vunpack.c.h.b16 %v2135
    %v2313 = vunpack.c.l.b16 %v2136
    %v2314 = vunpack.c.h.b16 %v2136
    %v2315 = vunpack.c.l.b16 %v2137
    %v2316 = vunpack.c.h.b16 %v2137
    %v2317 = vunpack.c.l.b16 %v2138
    %v2318 = vunpack.c.h.b16 %v2138
    %v2319 = vunpack.c.l.b16 %v2139
    %v2320 = vunpack.c.h.b16 %v2139
    %v2321 = vunpack.c.l.b16 %v2140
    %v2322 = vunpack.c.h.b16 %v2140
    %v2323 = vunpack.c.l.b16 %v2141
    %v2324 = vunpack.c.h.b16 %v2141
    %v2325 = vunpack.c.l.b16 %v2142
    %v2326 = vunpack.c.h.b16 %v2142
    %v2327 = vunpack.c.l.b16 %v2143
    %v2328 = vunpack.c.h.b16 %v2143
    %v2329 = vunpack.c.l.b16 %v2144
    %v2330 = vunpack.c.h.b16 %v2144
    %v2331 = vunpack.c.l.b16 %v2145
    %v2332 = vunpack.c.h.b16 %v2145
    %v2333 = vunpack.c.l.b16 %v2146
    %v2334 = vunpack.c.h.b16 %v2146
    %v2335 = vunpack.c.l.b16 %v2147
    %v2336 = vunpack.c.h.b16 %v2147
    %v2337 = vunpack.c.l.b16 %v2148
    %v2338 = vunpack.c.h.b16 %v2148
    %v2339 = vunpack.c.l.b16 %v2149
    %v2340 = vunpack.c.h.b16 %v2149
    %v2341 = vunpack.c.l.b16 %v2150
    %v2342 = vunpack.c.h.b16 %v2150
    %v2343 = vpack.c.b16 %v2219, %v2215
    %v2344 = vpack.c.b16 %v2220, %v2216
    %v2345 = vpack.c.b16 %v2221, %v2217
    %v2346 = vpack.c.b16 %v2222, %v2218
    %v2347 = vpack.c.b16 %v2227, %v2223
    %v2348 = vpack.c.b16 %v2228, %v2224
    %v2349 = vpack.c.b16 %v2229, %v2225
    %v2350 = vpack.c.b16 %v2230, %v2226
    %v2351 = vpack.c.b16 %v2235, %v2231
    %v2352 = vpack.c.b16 %v2236, %v2232
    %v2353 = vpack.c.b16 %v2237, %v2233
    %v2354 = vpack.c.b16 %v2238, %v2234
    %v2355 = vpack.c.b16 %v2243, %v2239
    %v2356 = vpack.c.b16 %v2244, %v2240
    %v2357 = vpack.c.b16 %v2245, %v2241
    %v2358 = vpack.c.b16 %v2246, %v2242
    %v2359 = vpack.c.b16 %v2251, %v2247
    %v2360 = vpack.c.b16 %v2252, %v2248
    %v2361 = vpack.c.b16 %v2253, %v2249
    %v2362 = vpack.c.b16 %v2254, %v2250
    %v2363 = vpack.c.b16 %v2259, %v2255
    %v2364 = vpack.c.b16 %v2260, %v2256
    %v2365 = vpack.c.b16 %v2261, %v2257
    %v2366 = vpack.c.b16 %v2262, %v2258
    %v2367 = vpack.c.b16 %v2267, %v2263
    %v2368 = vpack.c.b16 %v2268, %v2264
    %v2369 = vpack.c.b16 %v2269, %v2265
    %v2370 = vpack.c.b16 %v2270, %v2266
    %v2371 = vpack.c.b16 %v2275, %v2271
    %v2372 = vpack.c.b16 %v2276, %v2272
    %v2373 = vpack.c.b16 %v2277, %v2273
    %v2374 = vpack.c.b16 %v2278, %v2274
    %v2375 = vpack.c.b16 %v2283, %v2279
    %v2376 = vpack.c.b16 %v2284, %v2280
    %v2377 = vpack.c.b16 %v2285, %v2281
    %v2378 = vpack.c.b16 %v2286, %v2282
    %v2379 = vpack.c.b16 %v2291, %v2287
    %v2380 = vpack.c.b16 %v2292, %v2288
    %v2381 = vpack.c.b16 %v2293, %v2289
    %v2382 = vpack.c.b16 %v2294, %v2290
    %v2383 = vpack.c.b16 %v2299, %v2295
    %v2384 = vpack.c.b16 %v2300, %v2296
    %v2385 = vpack.c.b16 %v2301, %v2297
    %v2386 = vpack.c.b16 %v2302, %v2298
    %v2387 = vpack.c.b16 %v2307, %v2303
    %v2388 = vpack.c.b16 %v2308, %v2304
    %v2389 = vpack.c.b16 %v2309, %v2305
    %v2390 = vpack.c.b16 %v2310, %v2306
    %v2391 = vpack.c.b16 %v2315, %v2311
    %v2392 = vpack.c.b16 %v2316, %v2312
    %v2393 = vpack.c.b16 %v2317, %v2313
    %v2394 = vpack.c.b16 %v2318, %v2314
    %v2395 = vpack.c.b16 %v2323, %v2319
    %v2396 = vpack.c.b16 %v2324, %v2320
    %v2397 = vpack.c.b16 %v2325, %v2321
    %v2398 = vpack.c.b16 %v2326, %v2322
    %v2399 = vpack.c.b16 %v2331, %v2327
    %v2400 = vpack.c.b16 %v2332, %v2328
    %v2401 = vpack.c.b16 %v2333, %v2329
    %v2402 = vpack.c.b16 %v2334, %v2330
    %v2403 = vpack.c.b16 %v2339, %v2335
    %v2404 = vpack.c.b16 %v2340, %v2336
    %v2405 = vpack.c.b16 %v2341, %v2337
    %v2406 = vpack.c.b16 %v2342, %v2338
    %2471 = vmatprep.subr.bf16.mxu0 %v2344
    %2472 = vmatpush1.bf16.msra.mxu0 %v2343
    %2473 = vmatprep.subr.bf16.mxu0 %v2348
    %2474 = vmatpush1.bf16.msra.mxu0 %v2347
    %2475 = vmatprep.subr.bf16.mxu0 %v2352
    %2476 = vmatpush1.bf16.msra.mxu0 %v2351
    %2477 = vmatprep.subr.bf16.mxu0 %v2356
    %2478 = vmatpush1.bf16.msra.mxu0 %v2355
    %2479 = vmatprep.subr.bf16.mxu0 %v2360
    %2480 = vmatpush1.bf16.msra.mxu0 %v2359
    %2481 = vmatprep.subr.bf16.mxu0 %v2364
    %2482 = vmatpush1.bf16.msra.mxu0 %v2363
    %2483 = vmatprep.subr.bf16.mxu0 %v2368
    %2484 = vmatpush1.bf16.msra.mxu0 %v2367
    %2485 = vmatprep.subr.bf16.mxu0 %v2372
    %2486 = vmatpush1.bf16.msra.mxu0 %v2371
    %2487 = vmatprep.subr.bf16.mxu0 %v2376
    %2488 = vmatpush1.bf16.msra.mxu0 %v2375
    %2489 = vmatprep.subr.bf16.mxu0 %v2380
    %2490 = vmatpush1.bf16.msra.mxu0 %v2379
    %2491 = vmatprep.subr.bf16.mxu0 %v2384
    %2492 = vmatpush1.bf16.msra.mxu0 %v2383
    %2493 = vmatprep.subr.bf16.mxu0 %v2388
    %2494 = vmatpush1.bf16.msra.mxu0 %v2387
    %2495 = vmatprep.subr.bf16.mxu0 %v2392
    %2496 = vmatpush1.bf16.msra.mxu0 %v2391
    %2497 = vmatprep.subr.bf16.mxu0 %v2396
    %2498 = vmatpush1.bf16.msra.mxu0 %v2395
    %2499 = vmatprep.subr.bf16.mxu0 %v2400
    %2500 = vmatpush1.bf16.msra.mxu0 %v2399
    %2501 = vmatprep.subr.bf16.mxu0 %v2404
    %2502 = vmatpush1.bf16.msra.mxu0 %v2403
    %2503 = vmatprep.mubr.bf16.mxu0 %v2083
    %2504 = vmatmul.mubr.bf16.gmra.mrb[0].mxu0 %v2082
    %v2505 = vpop.f32.mrb[0].mxu0
    %v2506 = vadd.f32 0.0, %v2505
    %v2507 = vpop.f32.mrb[0].mxu0
    %v2508 = vadd.f32 0.0, %v2507
    %v2509 = vpop.f32.mrb[0].mxu0
    %v2510 = vadd.f32 0.0, %v2509
    %v2511 = vpop.f32.mrb[0].mxu0
    %v2512 = vadd.f32 0.0, %v2511
    %2513 = vmatprep.mubr.bf16.mxu0 %v2085
    %2514 = vmatmul.mubr.bf16.gmra.mrb[0].mxu0 %v2084
    %v2515 = vpop.f32.mrb[0].mxu0
    %v2516 = vadd.f32 0.0, %v2515
    %v2517 = vpop.f32.mrb[0].mxu0
    %v2518 = vadd.f32 0.0, %v2517
    %v2519 = vpop.f32.mrb[0].mxu0
    %v2520 = vadd.f32 0.0, %v2519
    %v2521 = vpop.f32.mrb[0].mxu0
    %v2522 = vadd.f32 0.0, %v2521
    %2523 = vdwg.mxu0
    %2524 = vmatprep.subr.bf16.mxu0 %v2346
    %2525 = vmatpush1.bf16.msra.mxu0 %v2345
    %2526 = vmatprep.subr.bf16.mxu0 %v2350
    %2527 = vmatpush1.bf16.msra.mxu0 %v2349
    %2528 = vmatprep.subr.bf16.mxu0 %v2354
    %2529 = vmatpush1.bf16.msra.mxu0 %v2353
    %2530 = vmatprep.subr.bf16.mxu0 %v2358
    %2531 = vmatpush1.bf16.msra.mxu0 %v2357
    %2532 = vmatprep.subr.bf16.mxu0 %v2362
    %2533 = vmatpush1.bf16.msra.mxu0 %v2361
    %2534 = vmatprep.subr.bf16.mxu0 %v2366
    %2535 = vmatpush1.bf16.msra.mxu0 %v2365
    %2536 = vmatprep.subr.bf16.mxu0 %v2370
    %2537 = vmatpush1.bf16.msra.mxu0 %v2369
    %2538 = vmatprep.subr.bf16.mxu0 %v2374
    %2539 = vmatpush1.bf16.msra.mxu0 %v2373
    %2540 = vmatprep.subr.bf16.mxu0 %v2378
    %2541 = vmatpush1.bf16.msra.mxu0 %v2377
    %2542 = vmatprep.subr.bf16.mxu0 %v2382
    %2543 = vmatpush1.bf16.msra.mxu0 %v2381
    %2544 = vmatprep.subr.bf16.mxu0 %v2386
    %2545 = vmatpush1.bf16.msra.mxu0 %v2385
    %2546 = vmatprep.subr.bf16.mxu0 %v2390
    %2547 = vmatpush1.bf16.msra.mxu0 %v2389
    %2548 = vmatprep.subr.bf16.mxu0 %v2394
    %2549 = vmatpush1.bf16.msra.mxu0 %v2393
    %2550 = vmatprep.subr.bf16.mxu0 %v2398
    %2551 = vmatpush1.bf16.msra.mxu0 %v2397
    %2552 = vmatprep.subr.bf16.mxu0 %v2402
    %2553 = vmatpush1.bf16.msra.mxu0 %v2401
    %2554 = vmatprep.subr.bf16.mxu0 %v2406
    %2555 = vmatpush1.bf16.msra.mxu0 %v2405
    %2556 = vmatprep.mubr.bf16.mxu0 %v2083
    %2557 = vmatmul.mubr.bf16.gmra.mrb[0].mxu0 %v2082
    %v2558 = vpop.f32.mrb[0].mxu0
    %v2559 = vadd.f32 0.0, %v2558
    %v2560 = vpop.f32.mrb[0].mxu0
    %v2561 = vadd.f32 0.0, %v2560
    %v2562 = vpop.f32.mrb[0].mxu0
    %v2563 = vadd.f32 0.0, %v2562
    %v2564 = vpop.f32.mrb[0].mxu0
    %v2565 = vadd.f32 0.0, %v2564
    %2566 = vmatprep.mubr.bf16.mxu0 %v2085
    %2567 = vmatmul.mubr.bf16.gmra.mrb[0].mxu0 %v2084
    %v2568 = vpop.f32.mrb[0].mxu0
    %v2569 = vadd.f32 0.0, %v2568
    %v2570 = vpop.f32.mrb[0].mxu0
    %v2571 = vadd.f32 0.0, %v2570
    %v2572 = vpop.f32.mrb[0].mxu0
    %v2573 = vadd.f32 0.0, %v2572
    %v2574 = vpop.f32.mrb[0].mxu0
    %v2575 = vadd.f32 0.0, %v2574
    %2576 = vdwg.mxu0
    %v2577 = vadd.f32 %v2011, %v2506
    %v2578 = vadd.f32 %v2013, %v2508
    %v2579 = vadd.f32 %v2064, %v2559
    %v2580 = vadd.f32 %v2066, %v2561
    %v2581 = vadd.f32 %v2015, %v2510
    %v2582 = vadd.f32 %v2017, %v2512
    %v2583 = vadd.f32 %v2068, %v2563
    %v2584 = vadd.f32 %v2070, %v2565
    %v2585 = vadd.f32 %v2021, %v2516
    %v2586 = vadd.f32 %v2023, %v2518
    %v2587 = vadd.f32 %v2074, %v2569
    %v2588 = vadd.f32 %v2076, %v2571
    %v2589 = vadd.f32 %v2025, %v2520
    %v2590 = vadd.f32 %v2027, %v2522
    %v2591 = vadd.f32 %v2078, %v2573
    %v2592 = vadd.f32 %v2080, %v2575
    %v2593 = vpack.c.bf16 %v1085, %v1083
    %v2594 = vpack.c.bf16 %v1086, %v1084
    %v2595 = vpack.c.bf16 %v1089, %v1087
    %v2596 = vpack.c.bf16 %v1090, %v1088
    %s2597 = scalar_lea.vmem [#allocation6], 1536
    %v2598 = vld [vmem:[%s2597] sm:$0xff]
    %v2599 = vld [vmem:[%s2597 + $0x8] sm:$0xff]
    %v2600 = vld [vmem:[%s2597 + $0x10] sm:$0xff]
    %v2601 = vld [vmem:[%s2597 + $0x18] sm:$0xff]
    %v2602 = vld [vmem:[%s2597 + $0x20] sm:$0xff]
    %v2603 = vld [vmem:[%s2597 + $0x28] sm:$0xff]
    %v2604 = vld [vmem:[%s2597 + $0x30] sm:$0xff]
    %v2605 = vld [vmem:[%s2597 + $0x38] sm:$0xff]
    %v2606 = vld [vmem:[%s2597 + $0x40] sm:$0xff]
    %v2607 = vld [vmem:[%s2597 + $0x48] sm:$0xff]
    %v2608 = vld [vmem:[%s2597 + $0x50] sm:$0xff]
    %v2609 = vld [vmem:[%s2597 + $0x58] sm:$0xff]
    %v2610 = vld [vmem:[%s2597 + $0x60] sm:$0xff]
    %v2611 = vld [vmem:[%s2597 + $0x68] sm:$0xff]
    %v2612 = vld [vmem:[%s2597 + $0x70] sm:$0xff]
    %v2613 = vld [vmem:[%s2597 + $0x78] sm:$0xff]
    %v2614 = vld [vmem:[%s2597 + $0x80] sm:$0xff]
    %v2615 = vld [vmem:[%s2597 + $0x88] sm:$0xff]
    %v2616 = vld [vmem:[%s2597 + $0x90] sm:$0xff]
    %v2617 = vld [vmem:[%s2597 + $0x98] sm:$0xff]
    %v2618 = vld [vmem:[%s2597 + $0xa0] sm:$0xff]
    %v2619 = vld [vmem:[%s2597 + $0xa8] sm:$0xff]
    %v2620 = vld [vmem:[%s2597 + $0xb0] sm:$0xff]
    %v2621 = vld [vmem:[%s2597 + $0xb8] sm:$0xff]
    %v2622 = vld [vmem:[%s2597 + $0xc0] sm:$0xff]
    %v2623 = vld [vmem:[%s2597 + $0xc8] sm:$0xff]
    %v2624 = vld [vmem:[%s2597 + $0xd0] sm:$0xff]
    %v2625 = vld [vmem:[%s2597 + $0xd8] sm:$0xff]
    %v2626 = vld [vmem:[%s2597 + $0xe0] sm:$0xff]
    %v2627 = vld [vmem:[%s2597 + $0xe8] sm:$0xff]
    %v2628 = vld [vmem:[%s2597 + $0xf0] sm:$0xff]
    %v2629 = vld [vmem:[%s2597 + $0xf8] sm:$0xff]
    %v2630 = vld [vmem:[%s2597 + $0x100] sm:$0xff]
    %v2631 = vld [vmem:[%s2597 + $0x108] sm:$0xff]
    %v2632 = vld [vmem:[%s2597 + $0x110] sm:$0xff]
    %v2633 = vld [vmem:[%s2597 + $0x118] sm:$0xff]
    %v2634 = vld [vmem:[%s2597 + $0x120] sm:$0xff]
    %v2635 = vld [vmem:[%s2597 + $0x128] sm:$0xff]
    %v2636 = vld [vmem:[%s2597 + $0x130] sm:$0xff]
    %v2637 = vld [vmem:[%s2597 + $0x138] sm:$0xff]
    %v2638 = vld [vmem:[%s2597 + $0x140] sm:$0xff]
    %v2639 = vld [vmem:[%s2597 + $0x148] sm:$0xff]
    %v2640 = vld [vmem:[%s2597 + $0x150] sm:$0xff]
    %v2641 = vld [vmem:[%s2597 + $0x158] sm:$0xff]
    %v2642 = vld [vmem:[%s2597 + $0x160] sm:$0xff]
    %v2643 = vld [vmem:[%s2597 + $0x168] sm:$0xff]
    %v2644 = vld [vmem:[%s2597 + $0x170] sm:$0xff]
    %v2645 = vld [vmem:[%s2597 + $0x178] sm:$0xff]
    %v2646 = vld [vmem:[%s2597 + $0x180] sm:$0xff]
    %v2647 = vld [vmem:[%s2597 + $0x188] sm:$0xff]
    %v2648 = vld [vmem:[%s2597 + $0x190] sm:$0xff]
    %v2649 = vld [vmem:[%s2597 + $0x198] sm:$0xff]
    %v2650 = vld [vmem:[%s2597 + $0x1a0] sm:$0xff]
    %v2651 = vld [vmem:[%s2597 + $0x1a8] sm:$0xff]
    %v2652 = vld [vmem:[%s2597 + $0x1b0] sm:$0xff]
    %v2653 = vld [vmem:[%s2597 + $0x1b8] sm:$0xff]
    %v2654 = vld [vmem:[%s2597 + $0x1c0] sm:$0xff]
    %v2655 = vld [vmem:[%s2597 + $0x1c8] sm:$0xff]
    %v2656 = vld [vmem:[%s2597 + $0x1d0] sm:$0xff]
    %v2657 = vld [vmem:[%s2597 + $0x1d8] sm:$0xff]
    %v2658 = vld [vmem:[%s2597 + $0x1e0] sm:$0xff]
    %v2659 = vld [vmem:[%s2597 + $0x1e8] sm:$0xff]
    %v2660 = vld [vmem:[%s2597 + $0x1f0] sm:$0xff]
    %v2661 = vld [vmem:[%s2597 + $0x1f8] sm:$0xff]
    %v2726 = vunpack.c.l.b16 %v2598
    %v2727 = vunpack.c.h.b16 %v2598
    %v2728 = vunpack.c.l.b16 %v2599
    %v2729 = vunpack.c.h.b16 %v2599
    %v2730 = vunpack.c.l.b16 %v2600
    %v2731 = vunpack.c.h.b16 %v2600
    %v2732 = vunpack.c.l.b16 %v2601
    %v2733 = vunpack.c.h.b16 %v2601
    %v2734 = vunpack.c.l.b16 %v2602
    %v2735 = vunpack.c.h.b16 %v2602
    %v2736 = vunpack.c.l.b16 %v2603
    %v2737 = vunpack.c.h.b16 %v2603
    %v2738 = vunpack.c.l.b16 %v2604
    %v2739 = vunpack.c.h.b16 %v2604
    %v2740 = vunpack.c.l.b16 %v2605
    %v2741 = vunpack.c.h.b16 %v2605
    %v2742 = vunpack.c.l.b16 %v2606
    %v2743 = vunpack.c.h.b16 %v2606
    %v2744 = vunpack.c.l.b16 %v2607
    %v2745 = vunpack.c.h.b16 %v2607
    %v2746 = vunpack.c.l.b16 %v2608
    %v2747 = vunpack.c.h.b16 %v2608
    %v2748 = vunpack.c.l.b16 %v2609
    %v2749 = vunpack.c.h.b16 %v2609
    %v2750 = vunpack.c.l.b16 %v2610
    %v2751 = vunpack.c.h.b16 %v2610
    %v2752 = vunpack.c.l.b16 %v2611
    %v2753 = vunpack.c.h.b16 %v2611
    %v2754 = vunpack.c.l.b16 %v2612
    %v2755 = vunpack.c.h.b16 %v2612
    %v2756 = vunpack.c.l.b16 %v2613
    %v2757 = vunpack.c.h.b16 %v2613
    %v2758 = vunpack.c.l.b16 %v2614
    %v2759 = vunpack.c.h.b16 %v2614
    %v2760 = vunpack.c.l.b16 %v2615
    %v2761 = vunpack.c.h.b16 %v2615
    %v2762 = vunpack.c.l.b16 %v2616
    %v2763 = vunpack.c.h.b16 %v2616
    %v2764 = vunpack.c.l.b16 %v2617
    %v2765 = vunpack.c.h.b16 %v2617
    %v2766 = vunpack.c.l.b16 %v2618
    %v2767 = vunpack.c.h.b16 %v2618
    %v2768 = vunpack.c.l.b16 %v2619
    %v2769 = vunpack.c.h.b16 %v2619
    %v2770 = vunpack.c.l.b16 %v2620
    %v2771 = vunpack.c.h.b16 %v2620
    %v2772 = vunpack.c.l.b16 %v2621
    %v2773 = vunpack.c.h.b16 %v2621
    %v2774 = vunpack.c.l.b16 %v2622
    %v2775 = vunpack.c.h.b16 %v2622
    %v2776 = vunpack.c.l.b16 %v2623
    %v2777 = vunpack.c.h.b16 %v2623
    %v2778 = vunpack.c.l.b16 %v2624
    %v2779 = vunpack.c.h.b16 %v2624
    %v2780 = vunpack.c.l.b16 %v2625
    %v2781 = vunpack.c.h.b16 %v2625
    %v2782 = vunpack.c.l.b16 %v2626
    %v2783 = vunpack.c.h.b16 %v2626
    %v2784 = vunpack.c.l.b16 %v2627
    %v2785 = vunpack.c.h.b16 %v2627
    %v2786 = vunpack.c.l.b16 %v2628
    %v2787 = vunpack.c.h.b16 %v2628
    %v2788 = vunpack.c.l.b16 %v2629
    %v2789 = vunpack.c.h.b16 %v2629
    %v2790 = vunpack.c.l.b16 %v2630
    %v2791 = vunpack.c.h.b16 %v2630
    %v2792 = vunpack.c.l.b16 %v2631
    %v2793 = vunpack.c.h.b16 %v2631
    %v2794 = vunpack.c.l.b16 %v2632
    %v2795 = vunpack.c.h.b16 %v2632
    %v2796 = vunpack.c.l.b16 %v2633
    %v2797 = vunpack.c.h.b16 %v2633
    %v2798 = vunpack.c.l.b16 %v2634
    %v2799 = vunpack.c.h.b16 %v2634
    %v2800 = vunpack.c.l.b16 %v2635
    %v2801 = vunpack.c.h.b16 %v2635
    %v2802 = vunpack.c.l.b16 %v2636
    %v2803 = vunpack.c.h.b16 %v2636
    %v2804 = vunpack.c.l.b16 %v2637
    %v2805 = vunpack.c.h.b16 %v2637
    %v2806 = vunpack.c.l.b16 %v2638
    %v2807 = vunpack.c.h.b16 %v2638
    %v2808 = vunpack.c.l.b16 %v2639
    %v2809 = vunpack.c.h.b16 %v2639
    %v2810 = vunpack.c.l.b16 %v2640
    %v2811 = vunpack.c.h.b16 %v2640
    %v2812 = vunpack.c.l.b16 %v2641
    %v2813 = vunpack.c.h.b16 %v2641
    %v2814 = vunpack.c.l.b16 %v2642
    %v2815 = vunpack.c.h.b16 %v2642
    %v2816 = vunpack.c.l.b16 %v2643
    %v2817 = vunpack.c.h.b16 %v2643
    %v2818 = vunpack.c.l.b16 %v2644
    %v2819 = vunpack.c.h.b16 %v2644
    %v2820 = vunpack.c.l.b16 %v2645
    %v2821 = vunpack.c.h.b16 %v2645
    %v2822 = vunpack.c.l.b16 %v2646
    %v2823 = vunpack.c.h.b16 %v2646
    %v2824 = vunpack.c.l.b16 %v2647
    %v2825 = vunpack.c.h.b16 %v2647
    %v2826 = vunpack.c.l.b16 %v2648
    %v2827 = vunpack.c.h.b16 %v2648
    %v2828 = vunpack.c.l.b16 %v2649
    %v2829 = vunpack.c.h.b16 %v2649
    %v2830 = vunpack.c.l.b16 %v2650
    %v2831 = vunpack.c.h.b16 %v2650
    %v2832 = vunpack.c.l.b16 %v2651
    %v2833 = vunpack.c.h.b16 %v2651
    %v2834 = vunpack.c.l.b16 %v2652
    %v2835 = vunpack.c.h.b16 %v2652
    %v2836 = vunpack.c.l.b16 %v2653
    %v2837 = vunpack.c.h.b16 %v2653
    %v2838 = vunpack.c.l.b16 %v2654
    %v2839 = vunpack.c.h.b16 %v2654
    %v2840 = vunpack.c.l.b16 %v2655
    %v2841 = vunpack.c.h.b16 %v2655
    %v2842 = vunpack.c.l.b16 %v2656
    %v2843 = vunpack.c.h.b16 %v2656
    %v2844 = vunpack.c.l.b16 %v2657
    %v2845 = vunpack.c.h.b16 %v2657
    %v2846 = vunpack.c.l.b16 %v2658
    %v2847 = vunpack.c.h.b16 %v2658
    %v2848 = vunpack.c.l.b16 %v2659
    %v2849 = vunpack.c.h.b16 %v2659
    %v2850 = vunpack.c.l.b16 %v2660
    %v2851 = vunpack.c.h.b16 %v2660
    %v2852 = vunpack.c.l.b16 %v2661
    %v2853 = vunpack.c.h.b16 %v2661
    %v2854 = vpack.c.b16 %v2730, %v2726
    %v2855 = vpack.c.b16 %v2731, %v2727
    %v2856 = vpack.c.b16 %v2732, %v2728
    %v2857 = vpack.c.b16 %v2733, %v2729
    %v2858 = vpack.c.b16 %v2738, %v2734
    %v2859 = vpack.c.b16 %v2739, %v2735
    %v2860 = vpack.c.b16 %v2740, %v2736
    %v2861 = vpack.c.b16 %v2741, %v2737
    %v2862 = vpack.c.b16 %v2746, %v2742
    %v2863 = vpack.c.b16 %v2747, %v2743
    %v2864 = vpack.c.b16 %v2748, %v2744
    %v2865 = vpack.c.b16 %v2749, %v2745
    %v2866 = vpack.c.b16 %v2754, %v2750
    %v2867 = vpack.c.b16 %v2755, %v2751
    %v2868 = vpack.c.b16 %v2756, %v2752
    %v2869 = vpack.c.b16 %v2757, %v2753
    %v2870 = vpack.c.b16 %v2762, %v2758
    %v2871 = vpack.c.b16 %v2763, %v2759
    %v2872 = vpack.c.b16 %v2764, %v2760
    %v2873 = vpack.c.b16 %v2765, %v2761
    %v2874 = vpack.c.b16 %v2770, %v2766
    %v2875 = vpack.c.b16 %v2771, %v2767
    %v2876 = vpack.c.b16 %v2772, %v2768
    %v2877 = vpack.c.b16 %v2773, %v2769
    %v2878 = vpack.c.b16 %v2778, %v2774
    %v2879 = vpack.c.b16 %v2779, %v2775
    %v2880 = vpack.c.b16 %v2780, %v2776
    %v2881 = vpack.c.b16 %v2781, %v2777
    %v2882 = vpack.c.b16 %v2786, %v2782
    %v2883 = vpack.c.b16 %v2787, %v2783
    %v2884 = vpack.c.b16 %v2788, %v2784
    %v2885 = vpack.c.b16 %v2789, %v2785
    %v2886 = vpack.c.b16 %v2794, %v2790
    %v2887 = vpack.c.b16 %v2795, %v2791
    %v2888 = vpack.c.b16 %v2796, %v2792
    %v2889 = vpack.c.b16 %v2797, %v2793
    %v2890 = vpack.c.b16 %v2802, %v2798
    %v2891 = vpack.c.b16 %v2803, %v2799
    %v2892 = vpack.c.b16 %v2804, %v2800
    %v2893 = vpack.c.b16 %v2805, %v2801
    %v2894 = vpack.c.b16 %v2810, %v2806
    %v2895 = vpack.c.b16 %v2811, %v2807
    %v2896 = vpack.c.b16 %v2812, %v2808
    %v2897 = vpack.c.b16 %v2813, %v2809
    %v2898 = vpack.c.b16 %v2818, %v2814
    %v2899 = vpack.c.b16 %v2819, %v2815
    %v2900 = vpack.c.b16 %v2820, %v2816
    %v2901 = vpack.c.b16 %v2821, %v2817
    %v2902 = vpack.c.b16 %v2826, %v2822
    %v2903 = vpack.c.b16 %v2827, %v2823
    %v2904 = vpack.c.b16 %v2828, %v2824
    %v2905 = vpack.c.b16 %v2829, %v2825
    %v2906 = vpack.c.b16 %v2834, %v2830
    %v2907 = vpack.c.b16 %v2835, %v2831
    %v2908 = vpack.c.b16 %v2836, %v2832
    %v2909 = vpack.c.b16 %v2837, %v2833
    %v2910 = vpack.c.b16 %v2842, %v2838
    %v2911 = vpack.c.b16 %v2843, %v2839
    %v2912 = vpack.c.b16 %v2844, %v2840
    %v2913 = vpack.c.b16 %v2845, %v2841
    %v2914 = vpack.c.b16 %v2850, %v2846
    %v2915 = vpack.c.b16 %v2851, %v2847
    %v2916 = vpack.c.b16 %v2852, %v2848
    %v2917 = vpack.c.b16 %v2853, %v2849
    %2982 = vmatprep.subr.bf16.mxu0 %v2855
    %2983 = vmatpush1.bf16.msra.mxu0 %v2854
    %2984 = vmatprep.subr.bf16.mxu0 %v2859
    %2985 = vmatpush1.bf16.msra.mxu0 %v2858
    %2986 = vmatprep.subr.bf16.mxu0 %v2863
    %2987 = vmatpush1.bf16.msra.mxu0 %v2862
    %2988 = vmatprep.subr.bf16.mxu0 %v2867
    %2989 = vmatpush1.bf16.msra.mxu0 %v2866
    %2990 = vmatprep.subr.bf16.mxu0 %v2871
    %2991 = vmatpush1.bf16.msra.mxu0 %v2870
    %2992 = vmatprep.subr.bf16.mxu0 %v2875
    %2993 = vmatpush1.bf16.msra.mxu0 %v2874
    %2994 = vmatprep.subr.bf16.mxu0 %v2879
    %2995 = vmatpush1.bf16.msra.mxu0 %v2878
    %2996 = vmatprep.subr.bf16.mxu0 %v2883
    %2997 = vmatpush1.bf16.msra.mxu0 %v2882
    %2998 = vmatprep.subr.bf16.mxu0 %v2887
    %2999 = vmatpush1.bf16.msra.mxu0 %v2886
    %3000 = vmatprep.subr.bf16.mxu0 %v2891
    %3001 = vmatpush1.bf16.msra.mxu0 %v2890
    %3002 = vmatprep.subr.bf16.mxu0 %v2895
    %3003 = vmatpush1.bf16.msra.mxu0 %v2894
    %3004 = vmatprep.subr.bf16.mxu0 %v2899
    %3005 = vmatpush1.bf16.msra.mxu0 %v2898
    %3006 = vmatprep.subr.bf16.mxu0 %v2903
    %3007 = vmatpush1.bf16.msra.mxu0 %v2902
    %3008 = vmatprep.subr.bf16.mxu0 %v2907
    %3009 = vmatpush1.bf16.msra.mxu0 %v2906
    %3010 = vmatprep.subr.bf16.mxu0 %v2911
    %3011 = vmatpush1.bf16.msra.mxu0 %v2910
    %3012 = vmatprep.subr.bf16.mxu0 %v2915
    %3013 = vmatpush1.bf16.msra.mxu0 %v2914
    %3014 = vmatprep.mubr.bf16.mxu0 %v2594
    %3015 = vmatmul.mubr.bf16.gmra.mrb[0].mxu0 %v2593
    %v3016 = vpop.f32.mrb[0].mxu0
    %v3017 = vadd.f32 0.0, %v3016
    %v3018 = vpop.f32.mrb[0].mxu0
    %v3019 = vadd.f32 0.0, %v3018
    %v3020 = vpop.f32.mrb[0].mxu0
    %v3021 = vadd.f32 0.0, %v3020
    %v3022 = vpop.f32.mrb[0].mxu0
    %v3023 = vadd.f32 0.0, %v3022
    %3024 = vmatprep.mubr.bf16.mxu0 %v2596
    %3025 = vmatmul.mubr.bf16.gmra.mrb[0].mxu0 %v2595
    %v3026 = vpop.f32.mrb[0].mxu0
    %v3027 = vadd.f32 0.0, %v3026
    %v3028 = vpop.f32.mrb[0].mxu0
    %v3029 = vadd.f32 0.0, %v3028
    %v3030 = vpop.f32.mrb[0].mxu0
    %v3031 = vadd.f32 0.0, %v3030
    %v3032 = vpop.f32.mrb[0].mxu0
    %v3033 = vadd.f32 0.0, %v3032
    %3034 = vdwg.mxu0
    %3035 = vmatprep.subr.bf16.mxu0 %v2857
    %3036 = vmatpush1.bf16.msra.mxu0 %v2856
    %3037 = vmatprep.subr.bf16.mxu0 %v2861
    %3038 = vmatpush1.bf16.msra.mxu0 %v2860
    %3039 = vmatprep.subr.bf16.mxu0 %v2865
    %3040 = vmatpush1.bf16.msra.mxu0 %v2864
    %3041 = vmatprep.subr.bf16.mxu0 %v2869
    %3042 = vmatpush1.bf16.msra.mxu0 %v2868
    %3043 = vmatprep.subr.bf16.mxu0 %v2873
    %3044 = vmatpush1.bf16.msra.mxu0 %v2872
    %3045 = vmatprep.subr.bf16.mxu0 %v2877
    %3046 = vmatpush1.bf16.msra.mxu0 %v2876
    %3047 = vmatprep.subr.bf16.mxu0 %v2881
    %3048 = vmatpush1.bf16.msra.mxu0 %v2880
    %3049 = vmatprep.subr.bf16.mxu0 %v2885
    %3050 = vmatpush1.bf16.msra.mxu0 %v2884
    %3051 = vmatprep.subr.bf16.mxu0 %v2889
    %3052 = vmatpush1.bf16.msra.mxu0 %v2888
    %3053 = vmatprep.subr.bf16.mxu0 %v2893
    %3054 = vmatpush1.bf16.msra.mxu0 %v2892
    %3055 = vmatprep.subr.bf16.mxu0 %v2897
    %3056 = vmatpush1.bf16.msra.mxu0 %v2896
    %3057 = vmatprep.subr.bf16.mxu0 %v2901
    %3058 = vmatpush1.bf16.msra.mxu0 %v2900
    %3059 = vmatprep.subr.bf16.mxu0 %v2905
    %3060 = vmatpush1.bf16.msra.mxu0 %v2904
    %3061 = vmatprep.subr.bf16.mxu0 %v2909
    %3062 = vmatpush1.bf16.msra.mxu0 %v2908
    %3063 = vmatprep.subr.bf16.mxu0 %v2913
    %3064 = vmatpush1.bf16.msra.mxu0 %v2912
    %3065 = vmatprep.subr.bf16.mxu0 %v2917
    %3066 = vmatpush1.bf16.msra.mxu0 %v2916
    %3067 = vmatprep.mubr.bf16.mxu0 %v2594
    %3068 = vmatmul.mubr.bf16.gmra.mrb[0].mxu0 %v2593
    %v3069 = vpop.f32.mrb[0].mxu0
    %v3070 = vadd.f32 0.0, %v3069
    %v3071 = vpop.f32.mrb[0].mxu0
    %v3072 = vadd.f32 0.0, %v3071
    %v3073 = vpop.f32.mrb[0].mxu0
    %v3074 = vadd.f32 0.0, %v3073
    %v3075 = vpop.f32.mrb[0].mxu0
    %v3076 = vadd.f32 0.0, %v3075
    %3077 = vmatprep.mubr.bf16.mxu0 %v2596
    %3078 = vmatmul.mubr.bf16.gmra.mrb[0].mxu0 %v2595
    %v3079 = vpop.f32.mrb[0].mxu0
    %v3080 = vadd.f32 0.0, %v3079
    %v3081 = vpop.f32.mrb[0].mxu0
    %v3082 = vadd.f32 0.0, %v3081
    %v3083 = vpop.f32.mrb[0].mxu0
    %v3084 = vadd.f32 0.0, %v3083
    %v3085 = vpop.f32.mrb[0].mxu0
    %v3086 = vadd.f32 0.0, %v3085
    %3087 = vdwg.mxu0
    %v3088 = vadd.f32 %v2577, %v3017
    %v3089 = vadd.f32 %v2578, %v3019
    %v3090 = vadd.f32 %v2579, %v3070
    %v3091 = vadd.f32 %v2580, %v3072
    %v3092 = vadd.f32 %v2581, %v3021
    %v3093 = vadd.f32 %v2582, %v3023
    %v3094 = vadd.f32 %v2583, %v3074
    %v3095 = vadd.f32 %v2584, %v3076
    %v3096 = vadd.f32 %v2585, %v3027
    %v3097 = vadd.f32 %v2586, %v3029
    %v3098 = vadd.f32 %v2587, %v3080
    %v3099 = vadd.f32 %v2588, %v3082
    %v3100 = vadd.f32 %v2589, %v3031
    %v3101 = vadd.f32 %v2590, %v3033
    %v3102 = vadd.f32 %v2591, %v3084
    %v3103 = vadd.f32 %v2592, %v3086
    %v3104 = vpack.c.bf16 %v1079, %v1077
    %v3105 = vpack.c.bf16 %v1080, %v1078
    %s3106 = scalar_lea.vmem [#allocation6], 2048
    %v3107 = vld [vmem:[%s3106] sm:$0xff]
    %v3108 = vld [vmem:[%s3106 + $0x8] sm:$0xff]
    %v3109 = vld [vmem:[%s3106 + $0x10] sm:$0xff]
    %v3110 = vld [vmem:[%s3106 + $0x18] sm:$0xff]
    %v3111 = vld [vmem:[%s3106 + $0x20] sm:$0xff]
    %v3112 = vld [vmem:[%s3106 + $0x28] sm:$0xff]
    %v3113 = vld [vmem:[%s3106 + $0x30] sm:$0xff]
    %v3114 = vld [vmem:[%s3106 + $0x38] sm:$0xff]
    %v3115 = vld [vmem:[%s3106 + $0x40] sm:$0xff]
    %v3116 = vld [vmem:[%s3106 + $0x48] sm:$0xff]
    %v3117 = vld [vmem:[%s3106 + $0x50] sm:$0xff]
    %v3118 = vld [vmem:[%s3106 + $0x58] sm:$0xff]
    %v3119 = vld [vmem:[%s3106 + $0x60] sm:$0xff]
    %v3120 = vld [vmem:[%s3106 + $0x68] sm:$0xff]
    %v3121 = vld [vmem:[%s3106 + $0x70] sm:$0xff]
    %v3122 = vld [vmem:[%s3106 + $0x78] sm:$0xff]
    %v3123 = vld [vmem:[%s3106 + $0x80] sm:$0xff]
    %v3124 = vld [vmem:[%s3106 + $0x88] sm:$0xff]
    %v3125 = vld [vmem:[%s3106 + $0x90] sm:$0xff]
    %v3126 = vld [vmem:[%s3106 + $0x98] sm:$0xff]
    %v3127 = vld [vmem:[%s3106 + $0xa0] sm:$0xff]
    %v3128 = vld [vmem:[%s3106 + $0xa8] sm:$0xff]
    %v3129 = vld [vmem:[%s3106 + $0xb0] sm:$0xff]
    %v3130 = vld [vmem:[%s3106 + $0xb8] sm:$0xff]
    %v3131 = vld [vmem:[%s3106 + $0xc0] sm:$0xff]
    %v3132 = vld [vmem:[%s3106 + $0xc8] sm:$0xff]
    %v3133 = vld [vmem:[%s3106 + $0xd0] sm:$0xff]
    %v3134 = vld [vmem:[%s3106 + $0xd8] sm:$0xff]
    %v3135 = vld [vmem:[%s3106 + $0xe0] sm:$0xff]
    %v3136 = vld [vmem:[%s3106 + $0xe8] sm:$0xff]
    %v3137 = vld [vmem:[%s3106 + $0xf0] sm:$0xff]
    %v3138 = vld [vmem:[%s3106 + $0xf8] sm:$0xff]
    %v3139 = vld [vmem:[%s3106 + $0x100] sm:$0xff]
    %v3140 = vld [vmem:[%s3106 + $0x108] sm:$0xff]
    %v3141 = vld [vmem:[%s3106 + $0x110] sm:$0xff]
    %v3142 = vld [vmem:[%s3106 + $0x118] sm:$0xff]
    %v3143 = vld [vmem:[%s3106 + $0x120] sm:$0xff]
    %v3144 = vld [vmem:[%s3106 + $0x128] sm:$0xff]
    %v3145 = vld [vmem:[%s3106 + $0x130] sm:$0xff]
    %v3146 = vld [vmem:[%s3106 + $0x138] sm:$0xff]
    %v3147 = vld [vmem:[%s3106 + $0x140] sm:$0xff]
    %v3148 = vld [vmem:[%s3106 + $0x148] sm:$0xff]
    %v3149 = vld [vmem:[%s3106 + $0x150] sm:$0xff]
    %v3150 = vld [vmem:[%s3106 + $0x158] sm:$0xff]
    %v3151 = vld [vmem:[%s3106 + $0x160] sm:$0xff]
    %v3152 = vld [vmem:[%s3106 + $0x168] sm:$0xff]
    %v3153 = vld [vmem:[%s3106 + $0x170] sm:$0xff]
    %v3154 = vld [vmem:[%s3106 + $0x178] sm:$0xff]
    %v3155 = vld [vmem:[%s3106 + $0x180] sm:$0xff]
    %v3156 = vld [vmem:[%s3106 + $0x188] sm:$0xff]
    %v3157 = vld [vmem:[%s3106 + $0x190] sm:$0xff]
    %v3158 = vld [vmem:[%s3106 + $0x198] sm:$0xff]
    %v3159 = vld [vmem:[%s3106 + $0x1a0] sm:$0xff]
    %v3160 = vld [vmem:[%s3106 + $0x1a8] sm:$0xff]
    %v3161 = vld [vmem:[%s3106 + $0x1b0] sm:$0xff]
    %v3162 = vld [vmem:[%s3106 + $0x1b8] sm:$0xff]
    %v3163 = vld [vmem:[%s3106 + $0x1c0] sm:$0xff]
    %v3164 = vld [vmem:[%s3106 + $0x1c8] sm:$0xff]
    %v3165 = vld [vmem:[%s3106 + $0x1d0] sm:$0xff]
    %v3166 = vld [vmem:[%s3106 + $0x1d8] sm:$0xff]
    %v3167 = vld [vmem:[%s3106 + $0x1e0] sm:$0xff]
    %v3168 = vld [vmem:[%s3106 + $0x1e8] sm:$0xff]
    %v3169 = vld [vmem:[%s3106 + $0x1f0] sm:$0xff]
    %v3170 = vld [vmem:[%s3106 + $0x1f8] sm:$0xff]
    %v3235 = vunpack.c.l.b16 %v3107
    %v3236 = vunpack.c.h.b16 %v3107
    %v3237 = vunpack.c.l.b16 %v3108
    %v3238 = vunpack.c.h.b16 %v3108
    %v3239 = vunpack.c.l.b16 %v3109
    %v3240 = vunpack.c.h.b16 %v3109
    %v3241 = vunpack.c.l.b16 %v3110
    %v3242 = vunpack.c.h.b16 %v3110
    %v3243 = vunpack.c.l.b16 %v3111
    %v3244 = vunpack.c.h.b16 %v3111
    %v3245 = vunpack.c.l.b16 %v3112
    %v3246 = vunpack.c.h.b16 %v3112
    %v3247 = vunpack.c.l.b16 %v3113
    %v3248 = vunpack.c.h.b16 %v3113
    %v3249 = vunpack.c.l.b16 %v3114
    %v3250 = vunpack.c.h.b16 %v3114
    %v3251 = vunpack.c.l.b16 %v3115
    %v3252 = vunpack.c.h.b16 %v3115
    %v3253 = vunpack.c.l.b16 %v3116
    %v3254 = vunpack.c.h.b16 %v3116
    %v3255 = vunpack.c.l.b16 %v3117
    %v3256 = vunpack.c.h.b16 %v3117
    %v3257 = vunpack.c.l.b16 %v3118
    %v3258 = vunpack.c.h.b16 %v3118
    %v3259 = vunpack.c.l.b16 %v3119
    %v3260 = vunpack.c.h.b16 %v3119
    %v3261 = vunpack.c.l.b16 %v3120
    %v3262 = vunpack.c.h.b16 %v3120
    %v3263 = vunpack.c.l.b16 %v3121
    %v3264 = vunpack.c.h.b16 %v3121
    %v3265 = vunpack.c.l.b16 %v3122
    %v3266 = vunpack.c.h.b16 %v3122
    %v3267 = vunpack.c.l.b16 %v3123
    %v3268 = vunpack.c.h.b16 %v3123
    %v3269 = vunpack.c.l.b16 %v3124
    %v3270 = vunpack.c.h.b16 %v3124
    %v3271 = vunpack.c.l.b16 %v3125
    %v3272 = vunpack.c.h.b16 %v3125
    %v3273 = vunpack.c.l.b16 %v3126
    %v3274 = vunpack.c.h.b16 %v3126
    %v3275 = vunpack.c.l.b16 %v3127
    %v3276 = vunpack.c.h.b16 %v3127
    %v3277 = vunpack.c.l.b16 %v3128
    %v3278 = vunpack.c.h.b16 %v3128
    %v3279 = vunpack.c.l.b16 %v3129
    %v3280 = vunpack.c.h.b16 %v3129
    %v3281 = vunpack.c.l.b16 %v3130
    %v3282 = vunpack.c.h.b16 %v3130
    %v3283 = vunpack.c.l.b16 %v3131
    %v3284 = vunpack.c.h.b16 %v3131
    %v3285 = vunpack.c.l.b16 %v3132
    %v3286 = vunpack.c.h.b16 %v3132
    %v3287 = vunpack.c.l.b16 %v3133
    %v3288 = vunpack.c.h.b16 %v3133
    %v3289 = vunpack.c.l.b16 %v3134
    %v3290 = vunpack.c.h.b16 %v3134
    %v3291 = vunpack.c.l.b16 %v3135
    %v3292 = vunpack.c.h.b16 %v3135
    %v3293 = vunpack.c.l.b16 %v3136
    %v3294 = vunpack.c.h.b16 %v3136
    %v3295 = vunpack.c.l.b16 %v3137
    %v3296 = vunpack.c.h.b16 %v3137
    %v3297 = vunpack.c.l.b16 %v3138
    %v3298 = vunpack.c.h.b16 %v3138
    %v3299 = vunpack.c.l.b16 %v3139
    %v3300 = vunpack.c.h.b16 %v3139
    %v3301 = vunpack.c.l.b16 %v3140
    %v3302 = vunpack.c.h.b16 %v3140
    %v3303 = vunpack.c.l.b16 %v3141
    %v3304 = vunpack.c.h.b16 %v3141
    %v3305 = vunpack.c.l.b16 %v3142
    %v3306 = vunpack.c.h.b16 %v3142
    %v3307 = vunpack.c.l.b16 %v3143
    %v3308 = vunpack.c.h.b16 %v3143
    %v3309 = vunpack.c.l.b16 %v3144
    %v3310 = vunpack.c.h.b16 %v3144
    %v3311 = vunpack.c.l.b16 %v3145
    %v3312 = vunpack.c.h.b16 %v3145
    %v3313 = vunpack.c.l.b16 %v3146
    %v3314 = vunpack.c.h.b16 %v3146
    %v3315 = vunpack.c.l.b16 %v3147
    %v3316 = vunpack.c.h.b16 %v3147
    %v3317 = vunpack.c.l.b16 %v3148
    %v3318 = vunpack.c.h.b16 %v3148
    %v3319 = vunpack.c.l.b16 %v3149
    %v3320 = vunpack.c.h.b16 %v3149
    %v3321 = vunpack.c.l.b16 %v3150
    %v3322 = vunpack.c.h.b16 %v3150
    %v3323 = vunpack.c.l.b16 %v3151
    %v3324 = vunpack.c.h.b16 %v3151
    %v3325 = vunpack.c.l.b16 %v3152
    %v3326 = vunpack.c.h.b16 %v3152
    %v3327 = vunpack.c.l.b16 %v3153
    %v3328 = vunpack.c.h.b16 %v3153
    %v3329 = vunpack.c.l.b16 %v3154
    %v3330 = vunpack.c.h.b16 %v3154
    %v3331 = vunpack.c.l.b16 %v3155
    %v3332 = vunpack.c.h.b16 %v3155
    %v3333 = vunpack.c.l.b16 %v3156
    %v3334 = vunpack.c.h.b16 %v3156
    %v3335 = vunpack.c.l.b16 %v3157
    %v3336 = vunpack.c.h.b16 %v3157
    %v3337 = vunpack.c.l.b16 %v3158
    %v3338 = vunpack.c.h.b16 %v3158
    %v3339 = vunpack.c.l.b16 %v3159
    %v3340 = vunpack.c.h.b16 %v3159
    %v3341 = vunpack.c.l.b16 %v3160
    %v3342 = vunpack.c.h.b16 %v3160
    %v3343 = vunpack.c.l.b16 %v3161
    %v3344 = vunpack.c.h.b16 %v3161
    %v3345 = vunpack.c.l.b16 %v3162
    %v3346 = vunpack.c.h.b16 %v3162
    %v3347 = vunpack.c.l.b16 %v3163
    %v3348 = vunpack.c.h.b16 %v3163
    %v3349 = vunpack.c.l.b16 %v3164
    %v3350 = vunpack.c.h.b16 %v3164
    %v3351 = vunpack.c.l.b16 %v3165
    %v3352 = vunpack.c.h.b16 %v3165
    %v3353 = vunpack.c.l.b16 %v3166
    %v3354 = vunpack.c.h.b16 %v3166
    %v3355 = vunpack.c.l.b16 %v3167
    %v3356 = vunpack.c.h.b16 %v3167
    %v3357 = vunpack.c.l.b16 %v3168
    %v3358 = vunpack.c.h.b16 %v3168
    %v3359 = vunpack.c.l.b16 %v3169
    %v3360 = vunpack.c.h.b16 %v3169
    %v3361 = vunpack.c.l.b16 %v3170
    %v3362 = vunpack.c.h.b16 %v3170
    %v3363 = vpack.c.b16 %v3239, %v3235
    %v3364 = vpack.c.b16 %v3240, %v3236
    %v3365 = vpack.c.b16 %v3241, %v3237
    %v3366 = vpack.c.b16 %v3242, %v3238
    %v3367 = vpack.c.b16 %v3247, %v3243
    %v3368 = vpack.c.b16 %v3248, %v3244
    %v3369 = vpack.c.b16 %v3249, %v3245
    %v3370 = vpack.c.b16 %v3250, %v3246
    %v3371 = vpack.c.b16 %v3255, %v3251
    %v3372 = vpack.c.b16 %v3256, %v3252
    %v3373 = vpack.c.b16 %v3257, %v3253
    %v3374 = vpack.c.b16 %v3258, %v3254
    %v3375 = vpack.c.b16 %v3263, %v3259
    %v3376 = vpack.c.b16 %v3264, %v3260
    %v3377 = vpack.c.b16 %v3265, %v3261
    %v3378 = vpack.c.b16 %v3266, %v3262
    %v3379 = vpack.c.b16 %v3271, %v3267
    %v3380 = vpack.c.b16 %v3272, %v3268
    %v3381 = vpack.c.b16 %v3273, %v3269
    %v3382 = vpack.c.b16 %v3274, %v3270
    %v3383 = vpack.c.b16 %v3279, %v3275
    %v3384 = vpack.c.b16 %v3280, %v3276
    %v3385 = vpack.c.b16 %v3281, %v3277
    %v3386 = vpack.c.b16 %v3282, %v3278
    %v3387 = vpack.c.b16 %v3287, %v3283
    %v3388 = vpack.c.b16 %v3288, %v3284
    %v3389 = vpack.c.b16 %v3289, %v3285
    %v3390 = vpack.c.b16 %v3290, %v3286
    %v3391 = vpack.c.b16 %v3295, %v3291
    %v3392 = vpack.c.b16 %v3296, %v3292
    %v3393 = vpack.c.b16 %v3297, %v3293
    %v3394 = vpack.c.b16 %v3298, %v3294
    %v3395 = vpack.c.b16 %v3303, %v3299
    %v3396 = vpack.c.b16 %v3304, %v3300
    %v3397 = vpack.c.b16 %v3305, %v3301
    %v3398 = vpack.c.b16 %v3306, %v3302
    %v3399 = vpack.c.b16 %v3311, %v3307
    %v3400 = vpack.c.b16 %v3312, %v3308
    %v3401 = vpack.c.b16 %v3313, %v3309
    %v3402 = vpack.c.b16 %v3314, %v3310
    %v3403 = vpack.c.b16 %v3319, %v3315
    %v3404 = vpack.c.b16 %v3320, %v3316
    %v3405 = vpack.c.b16 %v3321, %v3317
    %v3406 = vpack.c.b16 %v3322, %v3318
    %v3407 = vpack.c.b16 %v3327, %v3323
    %v3408 = vpack.c.b16 %v3328, %v3324
    %v3409 = vpack.c.b16 %v3329, %v3325
    %v3410 = vpack.c.b16 %v3330, %v3326
    %v3411 = vpack.c.b16 %v3335, %v3331
    %v3412 = vpack.c.b16 %v3336, %v3332
    %v3413 = vpack.c.b16 %v3337, %v3333
    %v3414 = vpack.c.b16 %v3338, %v3334
    %v3415 = vpack.c.b16 %v3343, %v3339
    %v3416 = vpack.c.b16 %v3344, %v3340
    %v3417 = vpack.c.b16 %v3345, %v3341
    %v3418 = vpack.c.b16 %v3346, %v3342
    %v3419 = vpack.c.b16 %v3351, %v3347
    %v3420 = vpack.c.b16 %v3352, %v3348
    %v3421 = vpack.c.b16 %v3353, %v3349
    %v3422 = vpack.c.b16 %v3354, %v3350
    %v3423 = vpack.c.b16 %v3359, %v3355
    %v3424 = vpack.c.b16 %v3360, %v3356
    %v3425 = vpack.c.b16 %v3361, %v3357
    %v3426 = vpack.c.b16 %v3362, %v3358
    %3491 = vmatprep.subr.bf16.mxu0 %v3364
    %3492 = vmatpush1.bf16.msra.mxu0 %v3363
    %3493 = vmatprep.subr.bf16.mxu0 %v3368
    %3494 = vmatpush1.bf16.msra.mxu0 %v3367
    %3495 = vmatprep.subr.bf16.mxu0 %v3372
    %3496 = vmatpush1.bf16.msra.mxu0 %v3371
    %3497 = vmatprep.subr.bf16.mxu0 %v3376
    %3498 = vmatpush1.bf16.msra.mxu0 %v3375
    %3499 = vmatprep.subr.bf16.mxu0 %v3380
    %3500 = vmatpush1.bf16.msra.mxu0 %v3379
    %3501 = vmatprep.subr.bf16.mxu0 %v3384
    %3502 = vmatpush1.bf16.msra.mxu0 %v3383
    %3503 = vmatprep.subr.bf16.mxu0 %v3388
    %3504 = vmatpush1.bf16.msra.mxu0 %v3387
    %3505 = vmatprep.subr.bf16.mxu0 %v3392
    %3506 = vmatpush1.bf16.msra.mxu0 %v3391
    %3507 = vmatprep.subr.bf16.mxu0 %v3396
    %3508 = vmatpush1.bf16.msra.mxu0 %v3395
    %3509 = vmatprep.subr.bf16.mxu0 %v3400
    %3510 = vmatpush1.bf16.msra.mxu0 %v3399
    %3511 = vmatprep.subr.bf16.mxu0 %v3404
    %3512 = vmatpush1.bf16.msra.mxu0 %v3403
    %3513 = vmatprep.subr.bf16.mxu0 %v3408
    %3514 = vmatpush1.bf16.msra.mxu0 %v3407
    %3515 = vmatprep.subr.bf16.mxu0 %v3412
    %3516 = vmatpush1.bf16.msra.mxu0 %v3411
    %3517 = vmatprep.subr.bf16.mxu0 %v3416
    %3518 = vmatpush1.bf16.msra.mxu0 %v3415
    %3519 = vmatprep.subr.bf16.mxu0 %v3420
    %3520 = vmatpush1.bf16.msra.mxu0 %v3419
    %3521 = vmatprep.subr.bf16.mxu0 %v3424
    %3522 = vmatpush1.bf16.msra.mxu0 %v3423
    %3523 = vmatprep.mubr.bf16.mxu0 %v1096
    %3524 = vmatmul.mubr.bf16.gmra.mrb[0].mxu0 %v1095
    %v3525 = vpop.f32.mrb[0].mxu0
    %v3526 = vadd.f32 0.0, %v3525
    %v3527 = vpop.f32.mrb[0].mxu0
    %v3528 = vadd.f32 0.0, %v3527
    %v3529 = vpop.f32.mrb[0].mxu0
    %v3530 = vadd.f32 0.0, %v3529
    %v3531 = vpop.f32.mrb[0].mxu0
    %v3532 = vadd.f32 0.0, %v3531
    %3533 = vmatprep.mubr.bf16.mxu0 %v3105
    %3534 = vmatmul.mubr.bf16.gmra.mrb[0].mxu0 %v3104
    %v3535 = vpop.f32.mrb[0].mxu0
    %v3536 = vadd.f32 0.0, %v3535
    %v3537 = vpop.f32.mrb[0].mxu0
    %v3538 = vadd.f32 0.0, %v3537
    %v3539 = vpop.f32.mrb[0].mxu0
    %v3540 = vadd.f32 0.0, %v3539
    %v3541 = vpop.f32.mrb[0].mxu0
    %v3542 = vadd.f32 0.0, %v3541
    %3543 = vdwg.mxu0
    %3544 = vmatprep.subr.bf16.mxu0 %v3366
    %3545 = vmatpush1.bf16.msra.mxu0 %v3365
    %3546 = vmatprep.subr.bf16.mxu0 %v3370
    %3547 = vmatpush1.bf16.msra.mxu0 %v3369
    %3548 = vmatprep.subr.bf16.mxu0 %v3374
    %3549 = vmatpush1.bf16.msra.mxu0 %v3373
    %3550 = vmatprep.subr.bf16.mxu0 %v3378
    %3551 = vmatpush1.bf16.msra.mxu0 %v3377
    %3552 = vmatprep.subr.bf16.mxu0 %v3382
    %3553 = vmatpush1.bf16.msra.mxu0 %v3381
    %3554 = vmatprep.subr.bf16.mxu0 %v3386
    %3555 = vmatpush1.bf16.msra.mxu0 %v3385
    %3556 = vmatprep.subr.bf16.mxu0 %v3390
    %3557 = vmatpush1.bf16.msra.mxu0 %v3389
    %3558 = vmatprep.subr.bf16.mxu0 %v3394
    %3559 = vmatpush1.bf16.msra.mxu0 %v3393
    %3560 = vmatprep.subr.bf16.mxu0 %v3398
    %3561 = vmatpush1.bf16.msra.mxu0 %v3397
    %3562 = vmatprep.subr.bf16.mxu0 %v3402
    %3563 = vmatpush1.bf16.msra.mxu0 %v3401
    %3564 = vmatprep.subr.bf16.mxu0 %v3406
    %3565 = vmatpush1.bf16.msra.mxu0 %v3405
    %3566 = vmatprep.subr.bf16.mxu0 %v3410
    %3567 = vmatpush1.bf16.msra.mxu0 %v3409
    %3568 = vmatprep.subr.bf16.mxu0 %v3414
    %3569 = vmatpush1.bf16.msra.mxu0 %v3413
    %3570 = vmatprep.subr.bf16.mxu0 %v3418
    %3571 = vmatpush1.bf16.msra.mxu0 %v3417
    %3572 = vmatprep.subr.bf16.mxu0 %v3422
    %3573 = vmatpush1.bf16.msra.mxu0 %v3421
    %3574 = vmatprep.subr.bf16.mxu0 %v3426
    %3575 = vmatpush1.bf16.msra.mxu0 %v3425
    %3576 = vmatprep.mubr.bf16.mxu0 %v1096
    %3577 = vmatmul.mubr.bf16.gmra.mrb[0].mxu0 %v1095
    %v3578 = vpop.f32.mrb[0].mxu0
    %v3579 = vadd.f32 0.0, %v3578
    %v3580 = vpop.f32.mrb[0].mxu0
    %v3581 = vadd.f32 0.0, %v3580
    %v3582 = vpop.f32.mrb[0].mxu0
    %v3583 = vadd.f32 0.0, %v3582
    %v3584 = vpop.f32.mrb[0].mxu0
    %v3585 = vadd.f32 0.0, %v3584
    %3586 = vmatprep.mubr.bf16.mxu0 %v3105
    %3587 = vmatmul.mubr.bf16.gmra.mrb[0].mxu0 %v3104
    %v3588 = vpop.f32.mrb[0].mxu0
    %v3589 = vadd.f32 0.0, %v3588
    %v3590 = vpop.f32.mrb[0].mxu0
    %v3591 = vadd.f32 0.0, %v3590
    %v3592 = vpop.f32.mrb[0].mxu0
    %v3593 = vadd.f32 0.0, %v3592
    %v3594 = vpop.f32.mrb[0].mxu0
    %v3595 = vadd.f32 0.0, %v3594
    %3596 = vdwg.mxu0
    %v3597 = vadd.f32 %v3088, %v3526
    %v3598 = vadd.f32 %v3089, %v3528
    %v3599 = vadd.f32 %v3090, %v3579
    %v3600 = vadd.f32 %v3091, %v3581
    %v3601 = vadd.f32 %v3092, %v3530
    %v3602 = vadd.f32 %v3093, %v3532
    %v3603 = vadd.f32 %v3094, %v3583
    %v3604 = vadd.f32 %v3095, %v3585
    %v3605 = vadd.f32 %v3096, %v3536
    %v3606 = vadd.f32 %v3097, %v3538
    %v3607 = vadd.f32 %v3098, %v3589
    %v3608 = vadd.f32 %v3099, %v3591
    %v3609 = vadd.f32 %v3100, %v3540
    %v3610 = vadd.f32 %v3101, %v3542
    %v3611 = vadd.f32 %v3102, %v3593
    %v3612 = vadd.f32 %v3103, %v3595
    %v3613 = vmax.f32 %v3597, %v3599
    %v3614 = vmax.f32 %v3598, %v3600
    %v3615 = vmax.f32 %v3601, %v3603
    %v3616 = vmax.f32 %v3602, %v3604
    %v3617 = vmax.f32 %v3605, %v3607
    %v3618 = vmax.f32 %v3606, %v3608
    %v3619 = vmax.f32 %v3609, %v3611
    %v3620 = vmax.f32 %v3610, %v3612
    %3621 = vmatprep.subr.bf16.mxu0 %v1423
    %3622 = vmatpush1.bf16.msra.mxu0 %v1422
    %3623 = vmatprep.subr.bf16.mxu0 %v1427
    %3624 = vmatpush1.bf16.msra.mxu0 %v1426
    %3625 = vmatprep.subr.bf16.mxu0 %v1431
    %3626 = vmatpush1.bf16.msra.mxu0 %v1430
    %3627 = vmatprep.subr.bf16.mxu0 %v1435
    %3628 = vmatpush1.bf16.msra.mxu0 %v1434
    %3629 = vmatprep.subr.bf16.mxu0 %v1439
    %3630 = vmatpush1.bf16.msra.mxu0 %v1438
    %3631 = vmatprep.subr.bf16.mxu0 %v1443
    %3632 = vmatpush1.bf16.msra.mxu0 %v1442
    %3633 = vmatprep.subr.bf16.mxu0 %v1447
    %3634 = vmatpush1.bf16.msra.mxu0 %v1446
    %3635 = vmatprep.subr.bf16.mxu0 %v1451
    %3636 = vmatpush1.bf16.msra.mxu0 %v1450
    %3637 = vmatprep.subr.bf16.mxu0 %v1455
    %3638 = vmatpush1.bf16.msra.mxu0 %v1454
    %3639 = vmatprep.subr.bf16.mxu0 %v1459
    %3640 = vmatpush1.bf16.msra.mxu0 %v1458
    %3641 = vmatprep.subr.bf16.mxu0 %v1463
    %3642 = vmatpush1.bf16.msra.mxu0 %v1462
    %3643 = vmatprep.subr.bf16.mxu0 %v1467
    %3644 = vmatpush1.bf16.msra.mxu0 %v1466
    %3645 = vmatprep.subr.bf16.mxu0 %v1471
    %3646 = vmatpush1.bf16.msra.mxu0 %v1470
    %3647 = vmatprep.subr.bf16.mxu0 %v1475
    %3648 = vmatpush1.bf16.msra.mxu0 %v1474
    %3649 = vmatprep.subr.bf16.mxu0 %v1479
    %3650 = vmatpush1.bf16.msra.mxu0 %v1478
    %3651 = vmatprep.subr.bf16.mxu0 %v1483
    %3652 = vmatpush1.bf16.msra.mxu0 %v1482
    %3653 = vmatprep.mubr.bf16.mxu0 %v2083
    %3654 = vmatmul.mubr.bf16.gmra.mrb[0].mxu0 %v2082
    %v3655 = vpop.f32.mrb[0].mxu0
    %v3656 = vadd.f32 0.0, %v3655
    %v3657 = vpop.f32.mrb[0].mxu0
    %v3658 = vadd.f32 0.0, %v3657
    %v3659 = vpop.f32.mrb[0].mxu0
    %v3660 = vadd.f32 0.0, %v3659
    %v3661 = vpop.f32.mrb[0].mxu0
    %v3662 = vadd.f32 0.0, %v3661
    %3663 = vmatprep.mubr.bf16.mxu0 %v2085
    %3664 = vmatmul.mubr.bf16.gmra.mrb[0].mxu0 %v2084
    %v3665 = vpop.f32.mrb[0].mxu0
    %v3666 = vadd.f32 0.0, %v3665
    %v3667 = vpop.f32.mrb[0].mxu0
    %v3668 = vadd.f32 0.0, %v3667
    %v3669 = vpop.f32.mrb[0].mxu0
    %v3670 = vadd.f32 0.0, %v3669
    %v3671 = vpop.f32.mrb[0].mxu0
    %v3672 = vadd.f32 0.0, %v3671
    %3673 = vdwg.mxu0
    %3674 = vmatprep.subr.bf16.mxu0 %v1425
    %3675 = vmatpush1.bf16.msra.mxu0 %v1424
    %3676 = vmatprep.subr.bf16.mxu0 %v1429
    %3677 = vmatpush1.bf16.msra.mxu0 %v1428
    %3678 = vmatprep.subr.bf16.mxu0 %v1433
    %3679 = vmatpush1.bf16.msra.mxu0 %v1432
    %3680 = vmatprep.subr.bf16.mxu0 %v1437
    %3681 = vmatpush1.bf16.msra.mxu0 %v1436
    %3682 = vmatprep.subr.bf16.mxu0 %v1441
    %3683 = vmatpush1.bf16.msra.mxu0 %v1440
    %3684 = vmatprep.subr.bf16.mxu0 %v1445
    %3685 = vmatpush1.bf16.msra.mxu0 %v1444
    %3686 = vmatprep.subr.bf16.mxu0 %v1449
    %3687 = vmatpush1.bf16.msra.mxu0 %v1448
    %3688 = vmatprep.subr.bf16.mxu0 %v1453
    %3689 = vmatpush1.bf16.msra.mxu0 %v1452
    %3690 = vmatprep.subr.bf16.mxu0 %v1457
    %3691 = vmatpush1.bf16.msra.mxu0 %v1456
    %3692 = vmatprep.subr.bf16.mxu0 %v1461
    %3693 = vmatpush1.bf16.msra.mxu0 %v1460
    %3694 = vmatprep.subr.bf16.mxu0 %v1465
    %3695 = vmatpush1.bf16.msra.mxu0 %v1464
    %3696 = vmatprep.subr.bf16.mxu0 %v1469
    %3697 = vmatpush1.bf16.msra.mxu0 %v1468
    %3698 = vmatprep.subr.bf16.mxu0 %v1473
    %3699 = vmatpush1.bf16.msra.mxu0 %v1472
    %3700 = vmatprep.subr.bf16.mxu0 %v1477
    %3701 = vmatpush1.bf16.msra.mxu0 %v1476
    %3702 = vmatprep.subr.bf16.mxu0 %v1481
    %3703 = vmatpush1.bf16.msra.mxu0 %v1480
    %3704 = vmatprep.subr.bf16.mxu0 %v1485
    %3705 = vmatpush1.bf16.msra.mxu0 %v1484
    %3706 = vmatprep.mubr.bf16.mxu0 %v2083
    %3707 = vmatmul.mubr.bf16.gmra.mrb[0].mxu0 %v2082
    %v3708 = vpop.f32.mrb[0].mxu0
    %v3709 = vadd.f32 0.0, %v3708
    %v3710 = vpop.f32.mrb[0].mxu0
    %v3711 = vadd.f32 0.0, %v3710
    %v3712 = vpop.f32.mrb[0].mxu0
    %v3713 = vadd.f32 0.0, %v3712
    %v3714 = vpop.f32.mrb[0].mxu0
    %v3715 = vadd.f32 0.0, %v3714
    %3716 = vmatprep.mubr.bf16.mxu0 %v2085
    %3717 = vmatmul.mubr.bf16.gmra.mrb[0].mxu0 %v2084
    %v3718 = vpop.f32.mrb[0].mxu0
    %v3719 = vadd.f32 0.0, %v3718
    %v3720 = vpop.f32.mrb[0].mxu0
    %v3721 = vadd.f32 0.0, %v3720
    %v3722 = vpop.f32.mrb[0].mxu0
    %v3723 = vadd.f32 0.0, %v3722
    %v3724 = vpop.f32.mrb[0].mxu0
    %v3725 = vadd.f32 0.0, %v3724
    %3726 = vdwg.mxu0
    %3727 = vmatprep.subr.bf16.mxu0 %v1849
    %3728 = vmatpush1.bf16.msra.mxu0 %v1848
    %3729 = vmatprep.subr.bf16.mxu0 %v1853
    %3730 = vmatpush1.bf16.msra.mxu0 %v1852
    %3731 = vmatprep.subr.bf16.mxu0 %v1857
    %3732 = vmatpush1.bf16.msra.mxu0 %v1856
    %3733 = vmatprep.subr.bf16.mxu0 %v1861
    %3734 = vmatpush1.bf16.msra.mxu0 %v1860
    %3735 = vmatprep.subr.bf16.mxu0 %v1865
    %3736 = vmatpush1.bf16.msra.mxu0 %v1864
    %3737 = vmatprep.subr.bf16.mxu0 %v1869
    %3738 = vmatpush1.bf16.msra.mxu0 %v1868
    %3739 = vmatprep.subr.bf16.mxu0 %v1873
    %3740 = vmatpush1.bf16.msra.mxu0 %v1872
    %3741 = vmatprep.subr.bf16.mxu0 %v1877
    %3742 = vmatpush1.bf16.msra.mxu0 %v1876
    %3743 = vmatprep.subr.bf16.mxu0 %v1881
    %3744 = vmatpush1.bf16.msra.mxu0 %v1880
    %3745 = vmatprep.subr.bf16.mxu0 %v1885
    %3746 = vmatpush1.bf16.msra.mxu0 %v1884
    %3747 = vmatprep.subr.bf16.mxu0 %v1889
    %3748 = vmatpush1.bf16.msra.mxu0 %v1888
    %3749 = vmatprep.subr.bf16.mxu0 %v1893
    %3750 = vmatpush1.bf16.msra.mxu0 %v1892
    %3751 = vmatprep.subr.bf16.mxu0 %v1897
    %3752 = vmatpush1.bf16.msra.mxu0 %v1896
    %3753 = vmatprep.subr.bf16.mxu0 %v1901
    %3754 = vmatpush1.bf16.msra.mxu0 %v1900
    %3755 = vmatprep.subr.bf16.mxu0 %v1905
    %3756 = vmatpush1.bf16.msra.mxu0 %v1904
    %3757 = vmatprep.subr.bf16.mxu0 %v1909
    %3758 = vmatpush1.bf16.msra.mxu0 %v1908
    %3759 = vmatprep.mubr.bf16.mxu0 %v1162
    %3760 = vmatmul.mubr.bf16.gmra.mrb[0].mxu0 %v1161
    %v3761 = vpop.f32.mrb[0].mxu0
    %v3762 = vadd.f32 %v3656, %v3761
    %v3763 = vpop.f32.mrb[0].mxu0
    %v3764 = vadd.f32 %v3658, %v3763
    %v3765 = vpop.f32.mrb[0].mxu0
    %v3766 = vadd.f32 %v3660, %v3765
    %v3767 = vpop.f32.mrb[0].mxu0
    %v3768 = vadd.f32 %v3662, %v3767
    %3769 = vmatprep.mubr.bf16.mxu0 %v1164
    %3770 = vmatmul.mubr.bf16.gmra.mrb[0].mxu0 %v1163
    %v3771 = vpop.f32.mrb[0].mxu0
    %v3772 = vadd.f32 %v3666, %v3771
    %v3773 = vpop.f32.mrb[0].mxu0
    %v3774 = vadd.f32 %v3668, %v3773
    %v3775 = vpop.f32.mrb[0].mxu0
    %v3776 = vadd.f32 %v3670, %v3775
    %v3777 = vpop.f32.mrb[0].mxu0
    %v3778 = vadd.f32 %v3672, %v3777
    %3779 = vdwg.mxu0
    %3780 = vmatprep.subr.bf16.mxu0 %v1851
    %3781 = vmatpush1.bf16.msra.mxu0 %v1850
    %3782 = vmatprep.subr.bf16.mxu0 %v1855
    %3783 = vmatpush1.bf16.msra.mxu0 %v1854
    %3784 = vmatprep.subr.bf16.mxu0 %v1859
    %3785 = vmatpush1.bf16.msra.mxu0 %v1858
    %3786 = vmatprep.subr.bf16.mxu0 %v1863
    %3787 = vmatpush1.bf16.msra.mxu0 %v1862
    %3788 = vmatprep.subr.bf16.mxu0 %v1867
    %3789 = vmatpush1.bf16.msra.mxu0 %v1866
    %3790 = vmatprep.subr.bf16.mxu0 %v1871
    %3791 = vmatpush1.bf16.msra.mxu0 %v1870
    %3792 = vmatprep.subr.bf16.mxu0 %v1875
    %3793 = vmatpush1.bf16.msra.mxu0 %v1874
    %3794 = vmatprep.subr.bf16.mxu0 %v1879
    %3795 = vmatpush1.bf16.msra.mxu0 %v1878
    %3796 = vmatprep.subr.bf16.mxu0 %v1883
    %3797 = vmatpush1.bf16.msra.mxu0 %v1882
    %3798 = vmatprep.subr.bf16.mxu0 %v1887
    %3799 = vmatpush1.bf16.msra.mxu0 %v1886
    %3800 = vmatprep.subr.bf16.mxu0 %v1891
    %3801 = vmatpush1.bf16.msra.mxu0 %v1890
    %3802 = vmatprep.subr.bf16.mxu0 %v1895
    %3803 = vmatpush1.bf16.msra.mxu0 %v1894
    %3804 = vmatprep.subr.bf16.mxu0 %v1899
    %3805 = vmatpush1.bf16.msra.mxu0 %v1898
    %3806 = vmatprep.subr.bf16.mxu0 %v1903
    %3807 = vmatpush1.bf16.msra.mxu0 %v1902
    %3808 = vmatprep.subr.bf16.mxu0 %v1907
    %3809 = vmatpush1.bf16.msra.mxu0 %v1906
    %3810 = vmatprep.subr.bf16.mxu0 %v1911
    %3811 = vmatpush1.bf16.msra.mxu0 %v1910
    %3812 = vmatprep.mubr.bf16.mxu0 %v1162
    %3813 = vmatmul.mubr.bf16.gmra.mrb[0].mxu0 %v1161
    %v3814 = vpop.f32.mrb[0].mxu0
    %v3815 = vadd.f32 %v3709, %v3814
    %v3816 = vpop.f32.mrb[0].mxu0
    %v3817 = vadd.f32 %v3711, %v3816
    %v3818 = vpop.f32.mrb[0].mxu0
    %v3819 = vadd.f32 %v3713, %v3818
    %v3820 = vpop.f32.mrb[0].mxu0
    %v3821 = vadd.f32 %v3715, %v3820
    %3822 = vmatprep.mubr.bf16.mxu0 %v1164
    %3823 = vmatmul.mubr.bf16.gmra.mrb[0].mxu0 %v1163
    %v3824 = vpop.f32.mrb[0].mxu0
    %v3825 = vadd.f32 %v3719, %v3824
    %v3826 = vpop.f32.mrb[0].mxu0
    %v3827 = vadd.f32 %v3721, %v3826
    %v3828 = vpop.f32.mrb[0].mxu0
    %v3829 = vadd.f32 %v3723, %v3828
    %v3830 = vpop.f32.mrb[0].mxu0
    %v3831 = vadd.f32 %v3725, %v3830
    %3832 = vdwg.mxu0
    %3833 = vmatprep.subr.bf16.mxu0 %v2344
    %3834 = vmatpush1.bf16.msra.mxu0 %v2343
    %3835 = vmatprep.subr.bf16.mxu0 %v2348
    %3836 = vmatpush1.bf16.msra.mxu0 %v2347
    %3837 = vmatprep.subr.bf16.mxu0 %v2352
    %3838 = vmatpush1.bf16.msra.mxu0 %v2351
    %3839 = vmatprep.subr.bf16.mxu0 %v2356
    %3840 = vmatpush1.bf16.msra.mxu0 %v2355
    %3841 = vmatprep.subr.bf16.mxu0 %v2360
    %3842 = vmatpush1.bf16.msra.mxu0 %v2359
    %3843 = vmatprep.subr.bf16.mxu0 %v2364
    %3844 = vmatpush1.bf16.msra.mxu0 %v2363
    %3845 = vmatprep.subr.bf16.mxu0 %v2368
    %3846 = vmatpush1.bf16.msra.mxu0 %v2367
    %3847 = vmatprep.subr.bf16.mxu0 %v2372
    %3848 = vmatpush1.bf16.msra.mxu0 %v2371
    %3849 = vmatprep.subr.bf16.mxu0 %v2376
    %3850 = vmatpush1.bf16.msra.mxu0 %v2375
    %3851 = vmatprep.subr.bf16.mxu0 %v2380
    %3852 = vmatpush1.bf16.msra.mxu0 %v2379
    %3853 = vmatprep.subr.bf16.mxu0 %v2384
    %3854 = vmatpush1.bf16.msra.mxu0 %v2383
    %3855 = vmatprep.subr.bf16.mxu0 %v2388
    %3856 = vmatpush1.bf16.msra.mxu0 %v2387
    %3857 = vmatprep.subr.bf16.mxu0 %v2392
    %3858 = vmatpush1.bf16.msra.mxu0 %v2391
    %3859 = vmatprep.subr.bf16.mxu0 %v2396
    %3860 = vmatpush1.bf16.msra.mxu0 %v2395
    %3861 = vmatprep.subr.bf16.mxu0 %v2400
    %3862 = vmatpush1.bf16.msra.mxu0 %v2399
    %3863 = vmatprep.subr.bf16.mxu0 %v2404
    %3864 = vmatpush1.bf16.msra.mxu0 %v2403
    %3865 = vmatprep.mubr.bf16.mxu0 %v2594
    %3866 = vmatmul.mubr.bf16.gmra.mrb[0].mxu0 %v2593
    %v3867 = vpop.f32.mrb[0].mxu0
    %v3868 = vadd.f32 0.0, %v3867
    %v3869 = vpop.f32.mrb[0].mxu0
    %v3870 = vadd.f32 0.0, %v3869
    %v3871 = vpop.f32.mrb[0].mxu0
    %v3872 = vadd.f32 0.0, %v3871
    %v3873 = vpop.f32.mrb[0].mxu0
    %v3874 = vadd.f32 0.0, %v3873
    %3875 = vmatprep.mubr.bf16.mxu0 %v2596
    %3876 = vmatmul.mubr.bf16.gmra.mrb[0].mxu0 %v2595
    %v3877 = vpop.f32.mrb[0].mxu0
    %v3878 = vadd.f32 0.0, %v3877
    %v3879 = vpop.f32.mrb[0].mxu0
    %v3880 = vadd.f32 0.0, %v3879
    %v3881 = vpop.f32.mrb[0].mxu0
    %v3882 = vadd.f32 0.0, %v3881
    %v3883 = vpop.f32.mrb[0].mxu0
    %v3884 = vadd.f32 0.0, %v3883
    %3885 = vdwg.mxu0
    %3886 = vmatprep.subr.bf16.mxu0 %v2346
    %3887 = vmatpush1.bf16.msra.mxu0 %v2345
    %3888 = vmatprep.subr.bf16.mxu0 %v2350
    %3889 = vmatpush1.bf16.msra.mxu0 %v2349
    %3890 = vmatprep.subr.bf16.mxu0 %v2354
    %3891 = vmatpush1.bf16.msra.mxu0 %v2353
    %3892 = vmatprep.subr.bf16.mxu0 %v2358
    %3893 = vmatpush1.bf16.msra.mxu0 %v2357
    %3894 = vmatprep.subr.bf16.mxu0 %v2362
    %3895 = vmatpush1.bf16.msra.mxu0 %v2361
    %3896 = vmatprep.subr.bf16.mxu0 %v2366
    %3897 = vmatpush1.bf16.msra.mxu0 %v2365
    %3898 = vmatprep.subr.bf16.mxu0 %v2370
    %3899 = vmatpush1.bf16.msra.mxu0 %v2369
    %3900 = vmatprep.subr.bf16.mxu0 %v2374
    %3901 = vmatpush1.bf16.msra.mxu0 %v2373
    %3902 = vmatprep.subr.bf16.mxu0 %v2378
    %3903 = vmatpush1.bf16.msra.mxu0 %v2377
    %3904 = vmatprep.subr.bf16.mxu0 %v2382
    %3905 = vmatpush1.bf16.msra.mxu0 %v2381
    %3906 = vmatprep.subr.bf16.mxu0 %v2386
    %3907 = vmatpush1.bf16.msra.mxu0 %v2385
    %3908 = vmatprep.subr.bf16.mxu0 %v2390
    %3909 = vmatpush1.bf16.msra.mxu0 %v2389
    %3910 = vmatprep.subr.bf16.mxu0 %v2394
    %3911 = vmatpush1.bf16.msra.mxu0 %v2393
    %3912 = vmatprep.subr.bf16.mxu0 %v2398
    %3913 = vmatpush1.bf16.msra.mxu0 %v2397
    %3914 = vmatprep.subr.bf16.mxu0 %v2402
    %3915 = vmatpush1.bf16.msra.mxu0 %v2401
    %3916 = vmatprep.subr.bf16.mxu0 %v2406
    %3917 = vmatpush1.bf16.msra.mxu0 %v2405
    %3918 = vmatprep.mubr.bf16.mxu0 %v2594
    %3919 = vmatmul.mubr.bf16.gmra.mrb[0].mxu0 %v2593
    %v3920 = vpop.f32.mrb[0].mxu0
    %v3921 = vadd.f32 0.0, %v3920
    %v3922 = vpop.f32.mrb[0].mxu0
    %v3923 = vadd.f32 0.0, %v3922
    %v3924 = vpop.f32.mrb[0].mxu0
    %v3925 = vadd.f32 0.0, %v3924
    %v3926 = vpop.f32.mrb[0].mxu0
    %v3927 = vadd.f32 0.0, %v3926
    %3928 = vmatprep.mubr.bf16.mxu0 %v2596
    %3929 = vmatmul.mubr.bf16.gmra.mrb[0].mxu0 %v2595
    %v3930 = vpop.f32.mrb[0].mxu0
    %v3931 = vadd.f32 0.0, %v3930
    %v3932 = vpop.f32.mrb[0].mxu0
    %v3933 = vadd.f32 0.0, %v3932
    %v3934 = vpop.f32.mrb[0].mxu0
    %v3935 = vadd.f32 0.0, %v3934
    %v3936 = vpop.f32.mrb[0].mxu0
    %v3937 = vadd.f32 0.0, %v3936
    %3938 = vdwg.mxu0
    %v3939 = vadd.f32 %v3762, %v3868
    %v3940 = vadd.f32 %v3764, %v3870
    %v3941 = vadd.f32 %v3815, %v3921
    %v3942 = vadd.f32 %v3817, %v3923
    %v3943 = vadd.f32 %v3766, %v3872
    %v3944 = vadd.f32 %v3768, %v3874
    %v3945 = vadd.f32 %v3819, %v3925
    %v3946 = vadd.f32 %v3821, %v3927
    %v3947 = vadd.f32 %v3772, %v3878
    %v3948 = vadd.f32 %v3774, %v3880
    %v3949 = vadd.f32 %v3825, %v3931
    %v3950 = vadd.f32 %v3827, %v3933
    %v3951 = vadd.f32 %v3776, %v3882
    %v3952 = vadd.f32 %v3778, %v3884
    %v3953 = vadd.f32 %v3829, %v3935
    %v3954 = vadd.f32 %v3831, %v3937
    %3955 = vmatprep.subr.bf16.mxu0 %v2855
    %3956 = vmatpush1.bf16.msra.mxu0 %v2854
    %3957 = vmatprep.subr.bf16.mxu0 %v2859
    %3958 = vmatpush1.bf16.msra.mxu0 %v2858
    %3959 = vmatprep.subr.bf16.mxu0 %v2863
    %3960 = vmatpush1.bf16.msra.mxu0 %v2862
    %3961 = vmatprep.subr.bf16.mxu0 %v2867
    %3962 = vmatpush1.bf16.msra.mxu0 %v2866
    %3963 = vmatprep.subr.bf16.mxu0 %v2871
    %3964 = vmatpush1.bf16.msra.mxu0 %v2870
    %3965 = vmatprep.subr.bf16.mxu0 %v2875
    %3966 = vmatpush1.bf16.msra.mxu0 %v2874
    %3967 = vmatprep.subr.bf16.mxu0 %v2879
    %3968 = vmatpush1.bf16.msra.mxu0 %v2878
    %3969 = vmatprep.subr.bf16.mxu0 %v2883
    %3970 = vmatpush1.bf16.msra.mxu0 %v2882
    %3971 = vmatprep.subr.bf16.mxu0 %v2887
    %3972 = vmatpush1.bf16.msra.mxu0 %v2886
    %3973 = vmatprep.subr.bf16.mxu0 %v2891
    %3974 = vmatpush1.bf16.msra.mxu0 %v2890
    %3975 = vmatprep.subr.bf16.mxu0 %v2895
    %3976 = vmatpush1.bf16.msra.mxu0 %v2894
    %3977 = vmatprep.subr.bf16.mxu0 %v2899
    %3978 = vmatpush1.bf16.msra.mxu0 %v2898
    %3979 = vmatprep.subr.bf16.mxu0 %v2903
    %3980 = vmatpush1.bf16.msra.mxu0 %v2902
    %3981 = vmatprep.subr.bf16.mxu0 %v2907
    %3982 = vmatpush1.bf16.msra.mxu0 %v2906
    %3983 = vmatprep.subr.bf16.mxu0 %v2911
    %3984 = vmatpush1.bf16.msra.mxu0 %v2910
    %3985 = vmatprep.subr.bf16.mxu0 %v2915
    %3986 = vmatpush1.bf16.msra.mxu0 %v2914
    %3987 = vmatprep.mubr.bf16.mxu0 %v1096
    %3988 = vmatmul.mubr.bf16.gmra.mrb[0].mxu0 %v1095
    %v3989 = vpop.f32.mrb[0].mxu0
    %v3990 = vadd.f32 0.0, %v3989
    %v3991 = vpop.f32.mrb[0].mxu0
    %v3992 = vadd.f32 0.0, %v3991
    %v3993 = vpop.f32.mrb[0].mxu0
    %v3994 = vadd.f32 0.0, %v3993
    %v3995 = vpop.f32.mrb[0].mxu0
    %v3996 = vadd.f32 0.0, %v3995
    %3997 = vmatprep.mubr.bf16.mxu0 %v3105
    %3998 = vmatmul.mubr.bf16.gmra.mrb[0].mxu0 %v3104
    %v3999 = vpop.f32.mrb[0].mxu0
    %v4000 = vadd.f32 0.0, %v3999
    %v4001 = vpop.f32.mrb[0].mxu0
    %v4002 = vadd.f32 0.0, %v4001
    %v4003 = vpop.f32.mrb[0].mxu0
    %v4004 = vadd.f32 0.0, %v4003
    %v4005 = vpop.f32.mrb[0].mxu0
    %v4006 = vadd.f32 0.0, %v4005
    %4007 = vdwg.mxu0
    %4008 = vmatprep.subr.bf16.mxu0 %v2857
    %4009 = vmatpush1.bf16.msra.mxu0 %v2856
    %4010 = vmatprep.subr.bf16.mxu0 %v2861
    %4011 = vmatpush1.bf16.msra.mxu0 %v2860
    %4012 = vmatprep.subr.bf16.mxu0 %v2865
    %4013 = vmatpush1.bf16.msra.mxu0 %v2864
    %4014 = vmatprep.subr.bf16.mxu0 %v2869
    %4015 = vmatpush1.bf16.msra.mxu0 %v2868
    %4016 = vmatprep.subr.bf16.mxu0 %v2873
    %4017 = vmatpush1.bf16.msra.mxu0 %v2872
    %4018 = vmatprep.subr.bf16.mxu0 %v2877
    %4019 = vmatpush1.bf16.msra.mxu0 %v2876
    %4020 = vmatprep.subr.bf16.mxu0 %v2881
    %4021 = vmatpush1.bf16.msra.mxu0 %v2880
    %4022 = vmatprep.subr.bf16.mxu0 %v2885
    %4023 = vmatpush1.bf16.msra.mxu0 %v2884
    %4024 = vmatprep.subr.bf16.mxu0 %v2889
    %4025 = vmatpush1.bf16.msra.mxu0 %v2888
    %4026 = vmatprep.subr.bf16.mxu0 %v2893
    %4027 = vmatpush1.bf16.msra.mxu0 %v2892
    %4028 = vmatprep.subr.bf16.mxu0 %v2897
    %4029 = vmatpush1.bf16.msra.mxu0 %v2896
    %4030 = vmatprep.subr.bf16.mxu0 %v2901
    %4031 = vmatpush1.bf16.msra.mxu0 %v2900
    %4032 = vmatprep.subr.bf16.mxu0 %v2905
    %4033 = vmatpush1.bf16.msra.mxu0 %v2904
    %4034 = vmatprep.subr.bf16.mxu0 %v2909
    %4035 = vmatpush1.bf16.msra.mxu0 %v2908
    %4036 = vmatprep.subr.bf16.mxu0 %v2913
    %4037 = vmatpush1.bf16.msra.mxu0 %v2912
    %4038 = vmatprep.subr.bf16.mxu0 %v2917
    %4039 = vmatpush1.bf16.msra.mxu0 %v2916
    %4040 = vmatprep.mubr.bf16.mxu0 %v1096
    %4041 = vmatmul.mubr.bf16.gmra.mrb[0].mxu0 %v1095
    %v4042 = vpop.f32.mrb[0].mxu0
    %v4043 = vadd.f32 0.0, %v4042
    %v4044 = vpop.f32.mrb[0].mxu0
    %v4045 = vadd.f32 0.0, %v4044
    %v4046 = vpop.f32.mrb[0].mxu0
    %v4047 = vadd.f32 0.0, %v4046
    %v4048 = vpop.f32.mrb[0].mxu0
    %v4049 = vadd.f32 0.0, %v4048
    %4050 = vmatprep.mubr.bf16.mxu0 %v3105
    %4051 = vmatmul.mubr.bf16.gmra.mrb[0].mxu0 %v3104
    %v4052 = vpop.f32.mrb[0].mxu0
    %v4053 = vadd.f32 0.0, %v4052
    %v4054 = vpop.f32.mrb[0].mxu0
    %v4055 = vadd.f32 0.0, %v4054
    %v4056 = vpop.f32.mrb[0].mxu0
    %v4057 = vadd.f32 0.0, %v4056
    %v4058 = vpop.f32.mrb[0].mxu0
    %v4059 = vadd.f32 0.0, %v4058
    %4060 = vdwg.mxu0
    %v4061 = vadd.f32 %v3939, %v3990
    %v4062 = vadd.f32 %v3940, %v3992
    %v4063 = vadd.f32 %v3941, %v4043
    %v4064 = vadd.f32 %v3942, %v4045
    %v4065 = vadd.f32 %v3943, %v3994
    %v4066 = vadd.f32 %v3944, %v3996
    %v4067 = vadd.f32 %v3945, %v4047
    %v4068 = vadd.f32 %v3946, %v4049
    %v4069 = vadd.f32 %v3947, %v4000
    %v4070 = vadd.f32 %v3948, %v4002
    %v4071 = vadd.f32 %v3949, %v4053
    %v4072 = vadd.f32 %v3950, %v4055
    %v4073 = vadd.f32 %v3951, %v4004
    %v4074 = vadd.f32 %v3952, %v4006
    %v4075 = vadd.f32 %v3953, %v4057
    %v4076 = vadd.f32 %v3954, %v4059
    %v4077 = vpack.c.bf16 %v1091, %v1089
    %v4078 = vpack.c.bf16 %v1092, %v1090
    %4079 = vmatprep.subr.bf16.mxu0 %v3364
    %4080 = vmatpush1.bf16.msra.mxu0 %v3363
    %4081 = vmatprep.subr.bf16.mxu0 %v3368
    %4082 = vmatpush1.bf16.msra.mxu0 %v3367
    %4083 = vmatprep.subr.bf16.mxu0 %v3372
    %4084 = vmatpush1.bf16.msra.mxu0 %v3371
    %4085 = vmatprep.subr.bf16.mxu0 %v3376
    %4086 = vmatpush1.bf16.msra.mxu0 %v3375
    %4087 = vmatprep.subr.bf16.mxu0 %v3380
    %4088 = vmatpush1.bf16.msra.mxu0 %v3379
    %4089 = vmatprep.subr.bf16.mxu0 %v3384
    %4090 = vmatpush1.bf16.msra.mxu0 %v3383
    %4091 = vmatprep.subr.bf16.mxu0 %v3388
    %4092 = vmatpush1.bf16.msra.mxu0 %v3387
    %4093 = vmatprep.subr.bf16.mxu0 %v3392
    %4094 = vmatpush1.bf16.msra.mxu0 %v3391
    %4095 = vmatprep.subr.bf16.mxu0 %v3396
    %4096 = vmatpush1.bf16.msra.mxu0 %v3395
    %4097 = vmatprep.subr.bf16.mxu0 %v3400
    %4098 = vmatpush1.bf16.msra.mxu0 %v3399
    %4099 = vmatprep.subr.bf16.mxu0 %v3404
    %4100 = vmatpush1.bf16.msra.mxu0 %v3403
    %4101 = vmatprep.subr.bf16.mxu0 %v3408
    %4102 = vmatpush1.bf16.msra.mxu0 %v3407
    %4103 = vmatprep.subr.bf16.mxu0 %v3412
    %4104 = vmatpush1.bf16.msra.mxu0 %v3411
    %4105 = vmatprep.subr.bf16.mxu0 %v3416
    %4106 = vmatpush1.bf16.msra.mxu0 %v3415
    %4107 = vmatprep.subr.bf16.mxu0 %v3420
    %4108 = vmatpush1.bf16.msra.mxu0 %v3419
    %4109 = vmatprep.subr.bf16.mxu0 %v3424
    %4110 = vmatpush1.bf16.msra.mxu0 %v3423
    %4111 = vmatprep.mubr.bf16.mxu0 %v1164
    %4112 = vmatmul.mubr.bf16.gmra.mrb[0].mxu0 %v1163
    %v4113 = vpop.f32.mrb[0].mxu0
    %v4114 = vadd.f32 0.0, %v4113
    %v4115 = vpop.f32.mrb[0].mxu0
    %v4116 = vadd.f32 0.0, %v4115
    %v4117 = vpop.f32.mrb[0].mxu0
    %v4118 = vadd.f32 0.0, %v4117
    %v4119 = vpop.f32.mrb[0].mxu0
    %v4120 = vadd.f32 0.0, %v4119
    %4121 = vmatprep.mubr.bf16.mxu0 %v4078
    %4122 = vmatmul.mubr.bf16.gmra.mrb[0].mxu0 %v4077
    %v4123 = vpop.f32.mrb[0].mxu0
    %v4124 = vadd.f32 0.0, %v4123
    %v4125 = vpop.f32.mrb[0].mxu0
    %v4126 = vadd.f32 0.0, %v4125
    %v4127 = vpop.f32.mrb[0].mxu0
    %v4128 = vadd.f32 0.0, %v4127
    %v4129 = vpop.f32.mrb[0].mxu0
    %v4130 = vadd.f32 0.0, %v4129
    %4131 = vdwg.mxu0
    %4132 = vmatprep.subr.bf16.mxu0 %v3366
    %4133 = vmatpush1.bf16.msra.mxu0 %v3365
    %4134 = vmatprep.subr.bf16.mxu0 %v3370
    %4135 = vmatpush1.bf16.msra.mxu0 %v3369
    %4136 = vmatprep.subr.bf16.mxu0 %v3374
    %4137 = vmatpush1.bf16.msra.mxu0 %v3373
    %4138 = vmatprep.subr.bf16.mxu0 %v3378
    %4139 = vmatpush1.bf16.msra.mxu0 %v3377
    %4140 = vmatprep.subr.bf16.mxu0 %v3382
    %4141 = vmatpush1.bf16.msra.mxu0 %v3381
    %4142 = vmatprep.subr.bf16.mxu0 %v3386
    %4143 = vmatpush1.bf16.msra.mxu0 %v3385
    %4144 = vmatprep.subr.bf16.mxu0 %v3390
    %4145 = vmatpush1.bf16.msra.mxu0 %v3389
    %4146 = vmatprep.subr.bf16.mxu0 %v3394
    %4147 = vmatpush1.bf16.msra.mxu0 %v3393
    %4148 = vmatprep.subr.bf16.mxu0 %v3398
    %4149 = vmatpush1.bf16.msra.mxu0 %v3397
    %4150 = vmatprep.subr.bf16.mxu0 %v3402
    %4151 = vmatpush1.bf16.msra.mxu0 %v3401
    %4152 = vmatprep.subr.bf16.mxu0 %v3406
    %4153 = vmatpush1.bf16.msra.mxu0 %v3405
    %4154 = vmatprep.subr.bf16.mxu0 %v3410
    %4155 = vmatpush1.bf16.msra.mxu0 %v3409
    %4156 = vmatprep.subr.bf16.mxu0 %v3414
    %4157 = vmatpush1.bf16.msra.mxu0 %v3413
    %4158 = vmatprep.subr.bf16.mxu0 %v3418
    %4159 = vmatpush1.bf16.msra.mxu0 %v3417
    %4160 = vmatprep.subr.bf16.mxu0 %v3422
    %4161 = vmatpush1.bf16.msra.mxu0 %v3421
    %4162 = vmatprep.subr.bf16.mxu0 %v3426
    %4163 = vmatpush1.bf16.msra.mxu0 %v3425
    %4164 = vmatprep.mubr.bf16.mxu0 %v1164
    %4165 = vmatmul.mubr.bf16.gmra.mrb[0].mxu0 %v1163
    %v4166 = vpop.f32.mrb[0].mxu0
    %v4167 = vadd.f32 0.0, %v4166
    %v4168 = vpop.f32.mrb[0].mxu0
    %v4169 = vadd.f32 0.0, %v4168
    %v4170 = vpop.f32.mrb[0].mxu0
    %v4171 = vadd.f32 0.0, %v4170
    %v4172 = vpop.f32.mrb[0].mxu0
    %v4173 = vadd.f32 0.0, %v4172
    %4174 = vmatprep.mubr.bf16.mxu0 %v4078
    %4175 = vmatmul.mubr.bf16.gmra.mrb[0].mxu0 %v4077
    %v4176 = vpop.f32.mrb[0].mxu0
    %v4177 = vadd.f32 0.0, %v4176
    %v4178 = vpop.f32.mrb[0].mxu0
    %v4179 = vadd.f32 0.0, %v4178
    %v4180 = vpop.f32.mrb[0].mxu0
    %v4181 = vadd.f32 0.0, %v4180
    %v4182 = vpop.f32.mrb[0].mxu0
    %v4183 = vadd.f32 0.0, %v4182
    %4184 = vdwg.mxu0
    %v4185 = vadd.f32 %v4061, %v4114
    %v4186 = vadd.f32 %v4062, %v4116
    %v4187 = vadd.f32 %v4063, %v4167
    %v4188 = vadd.f32 %v4064, %v4169
    %v4189 = vadd.f32 %v4065, %v4118
    %v4190 = vadd.f32 %v4066, %v4120
    %v4191 = vadd.f32 %v4067, %v4171
    %v4192 = vadd.f32 %v4068, %v4173
    %v4193 = vadd.f32 %v4069, %v4124
    %v4194 = vadd.f32 %v4070, %v4126
    %v4195 = vadd.f32 %v4071, %v4177
    %v4196 = vadd.f32 %v4072, %v4179
    %v4197 = vadd.f32 %v4073, %v4128
    %v4198 = vadd.f32 %v4074, %v4130
    %v4199 = vadd.f32 %v4075, %v4181
    %v4200 = vadd.f32 %v4076, %v4183
    %v4201 = vmax.f32 %v4185, %v4187
    %v4202 = vmax.f32 %v4186, %v4188
    %v4203 = vmax.f32 %v4189, %v4191
    %v4204 = vmax.f32 %v4190, %v4192
    %v4205 = vmax.f32 %v4193, %v4195
    %v4206 = vmax.f32 %v4194, %v4196
    %v4207 = vmax.f32 %v4197, %v4199
    %v4208 = vmax.f32 %v4198, %v4200
    %v4209 = vmax.f32 %v3613, %v4201
    %v4210 = vmax.f32 %v3614, %v4202
    %v4211 = vmax.f32 %v3615, %v4203
    %v4212 = vmax.f32 %v3616, %v4204
    %v4213 = vmax.f32 %v3617, %v4205
    %v4214 = vmax.f32 %v3618, %v4206
    %v4215 = vmax.f32 %v3619, %v4207
    %v4216 = vmax.f32 %v3620, %v4208
    %v4217 = vld [vmem:[#allocation7] sm:$0x3]
    %v4219 = vlaneseq
    %v4220 = vshrl.u32 %v4219, 7
    %v4221 = vsub.s32 0, %v4220
    %v4222 = vrot.slane %v4217, %v4221
    %v4223 = vlaneseq
    %v4224 = vshrl.u32 %v4223, 7
    %v4225 = vsub.s32 1, %v4224
    %v4226 = vrot.slane %v4217, %v4225
    %v4229 = vadd.f32 %v4209, %v4222
    %v4230 = vadd.f32 %v4210, %v4226
    %v4231 = vadd.f32 %v4211, %v4222
    %v4232 = vadd.f32 %v4212, %v4226
    %v4233 = vadd.f32 %v4213, %v4222
    %v4234 = vadd.f32 %v4214, %v4226
    %v4235 = vadd.f32 %v4215, %v4222
    %v4236 = vadd.f32 %v4216, %v4226
    %v4237 = vpack.c.bf16 %v4229, %v4229
    %v4238 = vpack.c.bf16 %v4230, %v4230
    %v4239 = vld [vmem:[%s5] sm:$0xff]
    %v4240 = vld [vmem:[%s5 + $0x8] sm:$0xff]
    %v4241 = vld [vmem:[%s5 + $0x10] sm:$0xff]
    %v4242 = vld [vmem:[%s5 + $0x18] sm:$0xff]
    %v4243 = vld [vmem:[%s5 + $0x20] sm:$0xff]
    %v4244 = vld [vmem:[%s5 + $0x28] sm:$0xff]
    %v4245 = vld [vmem:[%s5 + $0x30] sm:$0xff]
    %v4246 = vld [vmem:[%s5 + $0x38] sm:$0xff]
    %v4247 = vld [vmem:[%s5 + $0x40] sm:$0xff]
    %v4248 = vld [vmem:[%s5 + $0x48] sm:$0xff]
    %v4249 = vld [vmem:[%s5 + $0x50] sm:$0xff]
    %v4250 = vld [vmem:[%s5 + $0x58] sm:$0xff]
    %v4251 = vld [vmem:[%s5 + $0x60] sm:$0xff]
    %v4252 = vld [vmem:[%s5 + $0x68] sm:$0xff]
    %v4253 = vld [vmem:[%s5 + $0x70] sm:$0xff]
    %v4254 = vld [vmem:[%s5 + $0x78] sm:$0xff]
    %v4255 = vld [vmem:[%s5 + $0x80] sm:$0xff]
    %v4256 = vld [vmem:[%s5 + $0x88] sm:$0xff]
    %v4257 = vld [vmem:[%s5 + $0x90] sm:$0xff]
    %v4258 = vld [vmem:[%s5 + $0x98] sm:$0xff]
    %v4259 = vld [vmem:[%s5 + $0xa0] sm:$0xff]
    %v4260 = vld [vmem:[%s5 + $0xa8] sm:$0xff]
    %v4261 = vld [vmem:[%s5 + $0xb0] sm:$0xff]
    %v4262 = vld [vmem:[%s5 + $0xb8] sm:$0xff]
    %v4263 = vld [vmem:[%s5 + $0xc0] sm:$0xff]
    %v4264 = vld [vmem:[%s5 + $0xc8] sm:$0xff]
    %v4265 = vld [vmem:[%s5 + $0xd0] sm:$0xff]
    %v4266 = vld [vmem:[%s5 + $0xd8] sm:$0xff]
    %v4267 = vld [vmem:[%s5 + $0xe0] sm:$0xff]
    %v4268 = vld [vmem:[%s5 + $0xe8] sm:$0xff]
    %v4269 = vld [vmem:[%s5 + $0xf0] sm:$0xff]
    %v4270 = vld [vmem:[%s5 + $0xf8] sm:$0xff]
    %v4271 = vld [vmem:[%s5 + $0x100] sm:$0xff]
    %v4272 = vld [vmem:[%s5 + $0x108] sm:$0xff]
    %v4273 = vld [vmem:[%s5 + $0x110] sm:$0xff]
    %v4274 = vld [vmem:[%s5 + $0x118] sm:$0xff]
    %v4275 = vld [vmem:[%s5 + $0x120] sm:$0xff]
    %v4276 = vld [vmem:[%s5 + $0x128] sm:$0xff]
    %v4277 = vld [vmem:[%s5 + $0x130] sm:$0xff]
    %v4278 = vld [vmem:[%s5 + $0x138] sm:$0xff]
    %v4279 = vld [vmem:[%s5 + $0x140] sm:$0xff]
    %v4280 = vld [vmem:[%s5 + $0x148] sm:$0xff]
    %v4281 = vld [vmem:[%s5 + $0x150] sm:$0xff]
    %v4282 = vld [vmem:[%s5 + $0x158] sm:$0xff]
    %v4283 = vld [vmem:[%s5 + $0x160] sm:$0xff]
    %v4284 = vld [vmem:[%s5 + $0x168] sm:$0xff]
    %v4285 = vld [vmem:[%s5 + $0x170] sm:$0xff]
    %v4286 = vld [vmem:[%s5 + $0x178] sm:$0xff]
    %v4287 = vld [vmem:[%s5 + $0x180] sm:$0xff]
    %v4288 = vld [vmem:[%s5 + $0x188] sm:$0xff]
    %v4289 = vld [vmem:[%s5 + $0x190] sm:$0xff]
    %v4290 = vld [vmem:[%s5 + $0x198] sm:$0xff]
    %v4291 = vld [vmem:[%s5 + $0x1a0] sm:$0xff]
    %v4292 = vld [vmem:[%s5 + $0x1a8] sm:$0xff]
    %v4293 = vld [vmem:[%s5 + $0x1b0] sm:$0xff]
    %v4294 = vld [vmem:[%s5 + $0x1b8] sm:$0xff]
    %v4295 = vld [vmem:[%s5 + $0x1c0] sm:$0xff]
    %v4296 = vld [vmem:[%s5 + $0x1c8] sm:$0xff]
    %v4297 = vld [vmem:[%s5 + $0x1d0] sm:$0xff]
    %v4298 = vld [vmem:[%s5 + $0x1d8] sm:$0xff]
    %v4299 = vld [vmem:[%s5 + $0x1e0] sm:$0xff]
    %v4300 = vld [vmem:[%s5 + $0x1e8] sm:$0xff]
    %v4301 = vld [vmem:[%s5 + $0x1f0] sm:$0xff]
    %v4302 = vld [vmem:[%s5 + $0x1f8] sm:$0xff]
    %v4303 = vpack.c.bf16 %v4231, %v4231
    %v4304 = vpack.c.bf16 %v4232, %v4232
    %s4305 = scalar_lea.vmem %s5, 512
    %v4306 = vld [vmem:[%s4305] sm:$0xff]
    %v4307 = vld [vmem:[%s4305 + $0x8] sm:$0xff]
    %v4308 = vld [vmem:[%s4305 + $0x10] sm:$0xff]
    %v4309 = vld [vmem:[%s4305 + $0x18] sm:$0xff]
    %v4310 = vld [vmem:[%s4305 + $0x20] sm:$0xff]
    %v4311 = vld [vmem:[%s4305 + $0x28] sm:$0xff]
    %v4312 = vld [vmem:[%s4305 + $0x30] sm:$0xff]
    %v4313 = vld [vmem:[%s4305 + $0x38] sm:$0xff]
    %v4314 = vld [vmem:[%s4305 + $0x40] sm:$0xff]
    %v4315 = vld [vmem:[%s4305 + $0x48] sm:$0xff]
    %v4316 = vld [vmem:[%s4305 + $0x50] sm:$0xff]
    %v4317 = vld [vmem:[%s4305 + $0x58] sm:$0xff]
    %v4318 = vld [vmem:[%s4305 + $0x60] sm:$0xff]
    %v4319 = vld [vmem:[%s4305 + $0x68] sm:$0xff]
    %v4320 = vld [vmem:[%s4305 + $0x70] sm:$0xff]
    %v4321 = vld [vmem:[%s4305 + $0x78] sm:$0xff]
    %v4322 = vld [vmem:[%s4305 + $0x80] sm:$0xff]
    %v4323 = vld [vmem:[%s4305 + $0x88] sm:$0xff]
    %v4324 = vld [vmem:[%s4305 + $0x90] sm:$0xff]
    %v4325 = vld [vmem:[%s4305 + $0x98] sm:$0xff]
    %v4326 = vld [vmem:[%s4305 + $0xa0] sm:$0xff]
    %v4327 = vld [vmem:[%s4305 + $0xa8] sm:$0xff]
    %v4328 = vld [vmem:[%s4305 + $0xb0] sm:$0xff]
    %v4329 = vld [vmem:[%s4305 + $0xb8] sm:$0xff]
    %v4330 = vld [vmem:[%s4305 + $0xc0] sm:$0xff]
    %v4331 = vld [vmem:[%s4305 + $0xc8] sm:$0xff]
    %v4332 = vld [vmem:[%s4305 + $0xd0] sm:$0xff]
    %v4333 = vld [vmem:[%s4305 + $0xd8] sm:$0xff]
    %v4334 = vld [vmem:[%s4305 + $0xe0] sm:$0xff]
    %v4335 = vld [vmem:[%s4305 + $0xe8] sm:$0xff]
    %v4336 = vld [vmem:[%s4305 + $0xf0] sm:$0xff]
    %v4337 = vld [vmem:[%s4305 + $0xf8] sm:$0xff]
    %v4338 = vld [vmem:[%s4305 + $0x100] sm:$0xff]
    %v4339 = vld [vmem:[%s4305 + $0x108] sm:$0xff]
    %v4340 = vld [vmem:[%s4305 + $0x110] sm:$0xff]
    %v4341 = vld [vmem:[%s4305 + $0x118] sm:$0xff]
    %v4342 = vld [vmem:[%s4305 + $0x120] sm:$0xff]
    %v4343 = vld [vmem:[%s4305 + $0x128] sm:$0xff]
    %v4344 = vld [vmem:[%s4305 + $0x130] sm:$0xff]
    %v4345 = vld [vmem:[%s4305 + $0x138] sm:$0xff]
    %v4346 = vld [vmem:[%s4305 + $0x140] sm:$0xff]
    %v4347 = vld [vmem:[%s4305 + $0x148] sm:$0xff]
    %v4348 = vld [vmem:[%s4305 + $0x150] sm:$0xff]
    %v4349 = vld [vmem:[%s4305 + $0x158] sm:$0xff]
    %v4350 = vld [vmem:[%s4305 + $0x160] sm:$0xff]
    %v4351 = vld [vmem:[%s4305 + $0x168] sm:$0xff]
    %v4352 = vld [vmem:[%s4305 + $0x170] sm:$0xff]
    %v4353 = vld [vmem:[%s4305 + $0x178] sm:$0xff]
    %v4354 = vld [vmem:[%s4305 + $0x180] sm:$0xff]
    %v4355 = vld [vmem:[%s4305 + $0x188] sm:$0xff]
    %v4356 = vld [vmem:[%s4305 + $0x190] sm:$0xff]
    %v4357 = vld [vmem:[%s4305 + $0x198] sm:$0xff]
    %v4358 = vld [vmem:[%s4305 + $0x1a0] sm:$0xff]
    %v4359 = vld [vmem:[%s4305 + $0x1a8] sm:$0xff]
    %v4360 = vld [vmem:[%s4305 + $0x1b0] sm:$0xff]
    %v4361 = vld [vmem:[%s4305 + $0x1b8] sm:$0xff]
    %v4362 = vld [vmem:[%s4305 + $0x1c0] sm:$0xff]
    %v4363 = vld [vmem:[%s4305 + $0x1c8] sm:$0xff]
    %v4364 = vld [vmem:[%s4305 + $0x1d0] sm:$0xff]
    %v4365 = vld [vmem:[%s4305 + $0x1d8] sm:$0xff]
    %v4366 = vld [vmem:[%s4305 + $0x1e0] sm:$0xff]
    %v4367 = vld [vmem:[%s4305 + $0x1e8] sm:$0xff]
    %v4368 = vld [vmem:[%s4305 + $0x1f0] sm:$0xff]
    %v4369 = vld [vmem:[%s4305 + $0x1f8] sm:$0xff]
    %v4434 = vunpack.c.l.b16 %v4306
    %v4435 = vunpack.c.h.b16 %v4306
    %v4436 = vunpack.c.l.b16 %v4307
    %v4437 = vunpack.c.h.b16 %v4307
    %v4438 = vunpack.c.l.b16 %v4308
    %v4439 = vunpack.c.h.b16 %v4308
    %v4440 = vunpack.c.l.b16 %v4309
    %v4441 = vunpack.c.h.b16 %v4309
    %v4442 = vunpack.c.l.b16 %v4310
    %v4443 = vunpack.c.h.b16 %v4310
    %v4444 = vunpack.c.l.b16 %v4311
    %v4445 = vunpack.c.h.b16 %v4311
    %v4446 = vunpack.c.l.b16 %v4312
    %v4447 = vunpack.c.h.b16 %v4312
    %v4448 = vunpack.c.l.b16 %v4313
    %v4449 = vunpack.c.h.b16 %v4313
    %v4450 = vunpack.c.l.b16 %v4314
    %v4451 = vunpack.c.h.b16 %v4314
    %v4452 = vunpack.c.l.b16 %v4315
    %v4453 = vunpack.c.h.b16 %v4315
    %v4454 = vunpack.c.l.b16 %v4316
    %v4455 = vunpack.c.h.b16 %v4316
    %v4456 = vunpack.c.l.b16 %v4317
    %v4457 = vunpack.c.h.b16 %v4317
    %v4458 = vunpack.c.l.b16 %v4318
    %v4459 = vunpack.c.h.b16 %v4318
    %v4460 = vunpack.c.l.b16 %v4319
    %v4461 = vunpack.c.h.b16 %v4319
    %v4462 = vunpack.c.l.b16 %v4320
    %v4463 = vunpack.c.h.b16 %v4320
    %v4464 = vunpack.c.l.b16 %v4321
    %v4465 = vunpack.c.h.b16 %v4321
    %v4466 = vunpack.c.l.b16 %v4322
    %v4467 = vunpack.c.h.b16 %v4322
    %v4468 = vunpack.c.l.b16 %v4323
    %v4469 = vunpack.c.h.b16 %v4323
    %v4470 = vunpack.c.l.b16 %v4324
    %v4471 = vunpack.c.h.b16 %v4324
    %v4472 = vunpack.c.l.b16 %v4325
    %v4473 = vunpack.c.h.b16 %v4325
    %v4474 = vunpack.c.l.b16 %v4326
    %v4475 = vunpack.c.h.b16 %v4326
    %v4476 = vunpack.c.l.b16 %v4327
    %v4477 = vunpack.c.h.b16 %v4327
    %v4478 = vunpack.c.l.b16 %v4328
    %v4479 = vunpack.c.h.b16 %v4328
    %v4480 = vunpack.c.l.b16 %v4329
    %v4481 = vunpack.c.h.b16 %v4329
    %v4482 = vunpack.c.l.b16 %v4330
    %v4483 = vunpack.c.h.b16 %v4330
    %v4484 = vunpack.c.l.b16 %v4331
    %v4485 = vunpack.c.h.b16 %v4331
    %v4486 = vunpack.c.l.b16 %v4332
    %v4487 = vunpack.c.h.b16 %v4332
    %v4488 = vunpack.c.l.b16 %v4333
    %v4489 = vunpack.c.h.b16 %v4333
    %v4490 = vunpack.c.l.b16 %v4334
    %v4491 = vunpack.c.h.b16 %v4334
    %v4492 = vunpack.c.l.b16 %v4335
    %v4493 = vunpack.c.h.b16 %v4335
    %v4494 = vunpack.c.l.b16 %v4336
    %v4495 = vunpack.c.h.b16 %v4336
    %v4496 = vunpack.c.l.b16 %v4337
    %v4497 = vunpack.c.h.b16 %v4337
    %v4498 = vunpack.c.l.b16 %v4338
    %v4499 = vunpack.c.h.b16 %v4338
    %v4500 = vunpack.c.l.b16 %v4339
    %v4501 = vunpack.c.h.b16 %v4339
    %v4502 = vunpack.c.l.b16 %v4340
    %v4503 = vunpack.c.h.b16 %v4340
    %v4504 = vunpack.c.l.b16 %v4341
    %v4505 = vunpack.c.h.b16 %v4341
    %v4506 = vunpack.c.l.b16 %v4342
    %v4507 = vunpack.c.h.b16 %v4342
    %v4508 = vunpack.c.l.b16 %v4343
    %v4509 = vunpack.c.h.b16 %v4343
    %v4510 = vunpack.c.l.b16 %v4344
    %v4511 = vunpack.c.h.b16 %v4344
    %v4512 = vunpack.c.l.b16 %v4345
    %v4513 = vunpack.c.h.b16 %v4345
    %v4514 = vunpack.c.l.b16 %v4346
    %v4515 = vunpack.c.h.b16 %v4346
    %v4516 = vunpack.c.l.b16 %v4347
    %v4517 = vunpack.c.h.b16 %v4347
    %v4518 = vunpack.c.l.b16 %v4348
    %v4519 = vunpack.c.h.b16 %v4348
    %v4520 = vunpack.c.l.b16 %v4349
    %v4521 = vunpack.c.h.b16 %v4349
    %v4522 = vunpack.c.l.b16 %v4350
    %v4523 = vunpack.c.h.b16 %v4350
    %v4524 = vunpack.c.l.b16 %v4351
    %v4525 = vunpack.c.h.b16 %v4351
    %v4526 = vunpack.c.l.b16 %v4352
    %v4527 = vunpack.c.h.b16 %v4352
    %v4528 = vunpack.c.l.b16 %v4353
    %v4529 = vunpack.c.h.b16 %v4353
    %v4530 = vunpack.c.l.b16 %v4354
    %v4531 = vunpack.c.h.b16 %v4354
    %v4532 = vunpack.c.l.b16 %v4355
    %v4533 = vunpack.c.h.b16 %v4355
    %v4534 = vunpack.c.l.b16 %v4356
    %v4535 = vunpack.c.h.b16 %v4356
    %v4536 = vunpack.c.l.b16 %v4357
    %v4537 = vunpack.c.h.b16 %v4357
    %v4538 = vunpack.c.l.b16 %v4358
    %v4539 = vunpack.c.h.b16 %v4358
    %v4540 = vunpack.c.l.b16 %v4359
    %v4541 = vunpack.c.h.b16 %v4359
    %v4542 = vunpack.c.l.b16 %v4360
    %v4543 = vunpack.c.h.b16 %v4360
    %v4544 = vunpack.c.l.b16 %v4361
    %v4545 = vunpack.c.h.b16 %v4361
    %v4546 = vunpack.c.l.b16 %v4362
    %v4547 = vunpack.c.h.b16 %v4362
    %v4548 = vunpack.c.l.b16 %v4363
    %v4549 = vunpack.c.h.b16 %v4363
    %v4550 = vunpack.c.l.b16 %v4364
    %v4551 = vunpack.c.h.b16 %v4364
    %v4552 = vunpack.c.l.b16 %v4365
    %v4553 = vunpack.c.h.b16 %v4365
    %v4554 = vunpack.c.l.b16 %v4366
    %v4555 = vunpack.c.h.b16 %v4366
    %v4556 = vunpack.c.l.b16 %v4367
    %v4557 = vunpack.c.h.b16 %v4367
    %v4558 = vunpack.c.l.b16 %v4368
    %v4559 = vunpack.c.h.b16 %v4368
    %v4560 = vunpack.c.l.b16 %v4369
    %v4561 = vunpack.c.h.b16 %v4369
    %v4562 = vpack.c.b16 %v4438, %v4434
    %v4563 = vpack.c.b16 %v4439, %v4435
    %v4564 = vpack.c.b16 %v4440, %v4436
    %v4565 = vpack.c.b16 %v4441, %v4437
    %v4566 = vpack.c.b16 %v4446, %v4442
    %v4567 = vpack.c.b16 %v4447, %v4443
    %v4568 = vpack.c.b16 %v4448, %v4444
    %v4569 = vpack.c.b16 %v4449, %v4445
    %v4570 = vpack.c.b16 %v4454, %v4450
    %v4571 = vpack.c.b16 %v4455, %v4451
    %v4572 = vpack.c.b16 %v4456, %v4452
    %v4573 = vpack.c.b16 %v4457, %v4453
    %v4574 = vpack.c.b16 %v4462, %v4458
    %v4575 = vpack.c.b16 %v4463, %v4459
    %v4576 = vpack.c.b16 %v4464, %v4460
    %v4577 = vpack.c.b16 %v4465, %v4461
    %v4578 = vpack.c.b16 %v4470, %v4466
    %v4579 = vpack.c.b16 %v4471, %v4467
    %v4580 = vpack.c.b16 %v4472, %v4468
    %v4581 = vpack.c.b16 %v4473, %v4469
    %v4582 = vpack.c.b16 %v4478, %v4474
    %v4583 = vpack.c.b16 %v4479, %v4475
    %v4584 = vpack.c.b16 %v4480, %v4476
    %v4585 = vpack.c.b16 %v4481, %v4477
    %v4586 = vpack.c.b16 %v4486, %v4482
    %v4587 = vpack.c.b16 %v4487, %v4483
    %v4588 = vpack.c.b16 %v4488, %v4484
    %v4589 = vpack.c.b16 %v4489, %v4485
    %v4590 = vpack.c.b16 %v4494, %v4490
    %v4591 = vpack.c.b16 %v4495, %v4491
    %v4592 = vpack.c.b16 %v4496, %v4492
    %v4593 = vpack.c.b16 %v4497, %v4493
    %v4594 = vpack.c.b16 %v4502, %v4498
    %v4595 = vpack.c.b16 %v4503, %v4499
    %v4596 = vpack.c.b16 %v4504, %v4500
    %v4597 = vpack.c.b16 %v4505, %v4501
    %v4598 = vpack.c.b16 %v4510, %v4506
    %v4599 = vpack.c.b16 %v4511, %v4507
    %v4600 = vpack.c.b16 %v4512, %v4508
    %v4601 = vpack.c.b16 %v4513, %v4509
    %v4602 = vpack.c.b16 %v4518, %v4514
    %v4603 = vpack.c.b16 %v4519, %v4515
    %v4604 = vpack.c.b16 %v4520, %v4516
    %v4605 = vpack.c.b16 %v4521, %v4517
    %v4606 = vpack.c.b16 %v4526, %v4522
    %v4607 = vpack.c.b16 %v4527, %v4523
    %v4608 = vpack.c.b16 %v4528, %v4524
    %v4609 = vpack.c.b16 %v4529, %v4525
    %v4610 = vpack.c.b16 %v4534, %v4530
    %v4611 = vpack.c.b16 %v4535, %v4531
    %v4612 = vpack.c.b16 %v4536, %v4532
    %v4613 = vpack.c.b16 %v4537, %v4533
    %v4614 = vpack.c.b16 %v4542, %v4538
    %v4615 = vpack.c.b16 %v4543, %v4539
    %v4616 = vpack.c.b16 %v4544, %v4540
    %v4617 = vpack.c.b16 %v4545, %v4541
    %v4618 = vpack.c.b16 %v4550, %v4546
    %v4619 = vpack.c.b16 %v4551, %v4547
    %v4620 = vpack.c.b16 %v4552, %v4548
    %v4621 = vpack.c.b16 %v4553, %v4549
    %v4622 = vpack.c.b16 %v4558, %v4554
    %v4623 = vpack.c.b16 %v4559, %v4555
    %v4624 = vpack.c.b16 %v4560, %v4556
    %v4625 = vpack.c.b16 %v4561, %v4557
    %4690 = vmatprep.subr.bf16.mxu0 %v4563
    %4691 = vmatpush1.bf16.msra.mxu0 %v4562
    %4692 = vmatprep.subr.bf16.mxu0 %v4567
    %4693 = vmatpush1.bf16.msra.mxu0 %v4566
    %4694 = vmatprep.subr.bf16.mxu0 %v4571
    %4695 = vmatpush1.bf16.msra.mxu0 %v4570
    %4696 = vmatprep.subr.bf16.mxu0 %v4575
    %4697 = vmatpush1.bf16.msra.mxu0 %v4574
    %4698 = vmatprep.subr.bf16.mxu0 %v4579
    %4699 = vmatpush1.bf16.msra.mxu0 %v4578
    %4700 = vmatprep.subr.bf16.mxu0 %v4583
    %4701 = vmatpush1.bf16.msra.mxu0 %v4582
    %4702 = vmatprep.subr.bf16.mxu0 %v4587
    %4703 = vmatpush1.bf16.msra.mxu0 %v4586
    %4704 = vmatprep.subr.bf16.mxu0 %v4591
    %4705 = vmatpush1.bf16.msra.mxu0 %v4590
    %4706 = vmatprep.subr.bf16.mxu0 %v4595
    %4707 = vmatpush1.bf16.msra.mxu0 %v4594
    %4708 = vmatprep.subr.bf16.mxu0 %v4599
    %4709 = vmatpush1.bf16.msra.mxu0 %v4598
    %4710 = vmatprep.subr.bf16.mxu0 %v4603
    %4711 = vmatpush1.bf16.msra.mxu0 %v4602
    %4712 = vmatprep.subr.bf16.mxu0 %v4607
    %4713 = vmatpush1.bf16.msra.mxu0 %v4606
    %4714 = vmatprep.subr.bf16.mxu0 %v4611
    %4715 = vmatpush1.bf16.msra.mxu0 %v4610
    %4716 = vmatprep.subr.bf16.mxu0 %v4615
    %4717 = vmatpush1.bf16.msra.mxu0 %v4614
    %4718 = vmatprep.subr.bf16.mxu0 %v4619
    %4719 = vmatpush1.bf16.msra.mxu0 %v4618
    %4720 = vmatprep.subr.bf16.mxu0 %v4623
    %4721 = vmatpush1.bf16.msra.mxu0 %v4622
    %4722 = vmatprep.mubr.bf16.mxu0 %v4304
    %4723 = vmatmul.mubr.bf16.gmra.mrb[0].mxu0 %v4303
    %v4724 = vpop.f32.mrb[0].mxu0
    %v4725 = vadd.f32 0.0, %v4724
    %v4726 = vpop.f32.mrb[0].mxu0
    %v4727 = vadd.f32 0.0, %v4726
    %v4728 = vpop.f32.mrb[0].mxu0
    %v4729 = vpop.f32.mrb[0].mxu0
    %4730 = vdwg.mxu0
    %4731 = vmatprep.subr.bf16.mxu0 %v4565
    %4732 = vmatpush1.bf16.msra.mxu0 %v4564
    %4733 = vmatprep.subr.bf16.mxu0 %v4569
    %4734 = vmatpush1.bf16.msra.mxu0 %v4568
    %4735 = vmatprep.subr.bf16.mxu0 %v4573
    %4736 = vmatpush1.bf16.msra.mxu0 %v4572
    %4737 = vmatprep.subr.bf16.mxu0 %v4577
    %4738 = vmatpush1.bf16.msra.mxu0 %v4576
    %4739 = vmatprep.subr.bf16.mxu0 %v4581
    %4740 = vmatpush1.bf16.msra.mxu0 %v4580
    %4741 = vmatprep.subr.bf16.mxu0 %v4585
    %4742 = vmatpush1.bf16.msra.mxu0 %v4584
    %4743 = vmatprep.subr.bf16.mxu0 %v4589
    %4744 = vmatpush1.bf16.msra.mxu0 %v4588
    %4745 = vmatprep.subr.bf16.mxu0 %v4593
    %4746 = vmatpush1.bf16.msra.mxu0 %v4592
    %4747 = vmatprep.subr.bf16.mxu0 %v4597
    %4748 = vmatpush1.bf16.msra.mxu0 %v4596
    %4749 = vmatprep.subr.bf16.mxu0 %v4601
    %4750 = vmatpush1.bf16.msra.mxu0 %v4600
    %4751 = vmatprep.subr.bf16.mxu0 %v4605
    %4752 = vmatpush1.bf16.msra.mxu0 %v4604
    %4753 = vmatprep.subr.bf16.mxu0 %v4609
    %4754 = vmatpush1.bf16.msra.mxu0 %v4608
    %4755 = vmatprep.subr.bf16.mxu0 %v4613
    %4756 = vmatpush1.bf16.msra.mxu0 %v4612
    %4757 = vmatprep.subr.bf16.mxu0 %v4617
    %4758 = vmatpush1.bf16.msra.mxu0 %v4616
    %4759 = vmatprep.subr.bf16.mxu0 %v4621
    %4760 = vmatpush1.bf16.msra.mxu0 %v4620
    %4761 = vmatprep.subr.bf16.mxu0 %v4625
    %4762 = vmatpush1.bf16.msra.mxu0 %v4624
    %4763 = vmatprep.mubr.bf16.mxu0 %v4304
    %4764 = vmatmul.mubr.bf16.gmra.mrb[0].mxu0 %v4303
    %v4765 = vpop.f32.mrb[0].mxu0
    %v4766 = vadd.f32 0.0, %v4765
    %v4767 = vpop.f32.mrb[0].mxu0
    %v4768 = vadd.f32 0.0, %v4767
    %v4769 = vpop.f32.mrb[0].mxu0
    %v4770 = vpop.f32.mrb[0].mxu0
    %4771 = vdwg.mxu0
    %v4836 = vunpack.c.l.b16 %v4239
    %v4837 = vunpack.c.h.b16 %v4239
    %v4838 = vunpack.c.l.b16 %v4240
    %v4839 = vunpack.c.h.b16 %v4240
    %v4840 = vunpack.c.l.b16 %v4241
    %v4841 = vunpack.c.h.b16 %v4241
    %v4842 = vunpack.c.l.b16 %v4242
    %v4843 = vunpack.c.h.b16 %v4242
    %v4844 = vunpack.c.l.b16 %v4243
    %v4845 = vunpack.c.h.b16 %v4243
    %v4846 = vunpack.c.l.b16 %v4244
    %v4847 = vunpack.c.h.b16 %v4244
    %v4848 = vunpack.c.l.b16 %v4245
    %v4849 = vunpack.c.h.b16 %v4245
    %v4850 = vunpack.c.l.b16 %v4246
    %v4851 = vunpack.c.h.b16 %v4246
    %v4852 = vunpack.c.l.b16 %v4247
    %v4853 = vunpack.c.h.b16 %v4247
    %v4854 = vunpack.c.l.b16 %v4248
    %v4855 = vunpack.c.h.b16 %v4248
    %v4856 = vunpack.c.l.b16 %v4249
    %v4857 = vunpack.c.h.b16 %v4249
    %v4858 = vunpack.c.l.b16 %v4250
    %v4859 = vunpack.c.h.b16 %v4250
    %v4860 = vunpack.c.l.b16 %v4251
    %v4861 = vunpack.c.h.b16 %v4251
    %v4862 = vunpack.c.l.b16 %v4252
    %v4863 = vunpack.c.h.b16 %v4252
    %v4864 = vunpack.c.l.b16 %v4253
    %v4865 = vunpack.c.h.b16 %v4253
    %v4866 = vunpack.c.l.b16 %v4254
    %v4867 = vunpack.c.h.b16 %v4254
    %v4868 = vunpack.c.l.b16 %v4255
    %v4869 = vunpack.c.h.b16 %v4255
    %v4870 = vunpack.c.l.b16 %v4256
    %v4871 = vunpack.c.h.b16 %v4256
    %v4872 = vunpack.c.l.b16 %v4257
    %v4873 = vunpack.c.h.b16 %v4257
    %v4874 = vunpack.c.l.b16 %v4258
    %v4875 = vunpack.c.h.b16 %v4258
    %v4876 = vunpack.c.l.b16 %v4259
    %v4877 = vunpack.c.h.b16 %v4259
    %v4878 = vunpack.c.l.b16 %v4260
    %v4879 = vunpack.c.h.b16 %v4260
    %v4880 = vunpack.c.l.b16 %v4261
    %v4881 = vunpack.c.h.b16 %v4261
    %v4882 = vunpack.c.l.b16 %v4262
    %v4883 = vunpack.c.h.b16 %v4262
    %v4884 = vunpack.c.l.b16 %v4263
    %v4885 = vunpack.c.h.b16 %v4263
    %v4886 = vunpack.c.l.b16 %v4264
    %v4887 = vunpack.c.h.b16 %v4264
    %v4888 = vunpack.c.l.b16 %v4265
    %v4889 = vunpack.c.h.b16 %v4265
    %v4890 = vunpack.c.l.b16 %v4266
    %v4891 = vunpack.c.h.b16 %v4266
    %v4892 = vunpack.c.l.b16 %v4267
    %v4893 = vunpack.c.h.b16 %v4267
    %v4894 = vunpack.c.l.b16 %v4268
    %v4895 = vunpack.c.h.b16 %v4268
    %v4896 = vunpack.c.l.b16 %v4269
    %v4897 = vunpack.c.h.b16 %v4269
    %v4898 = vunpack.c.l.b16 %v4270
    %v4899 = vunpack.c.h.b16 %v4270
    %v4900 = vunpack.c.l.b16 %v4271
    %v4901 = vunpack.c.h.b16 %v4271
    %v4902 = vunpack.c.l.b16 %v4272
    %v4903 = vunpack.c.h.b16 %v4272
    %v4904 = vunpack.c.l.b16 %v4273
    %v4905 = vunpack.c.h.b16 %v4273
    %v4906 = vunpack.c.l.b16 %v4274
    %v4907 = vunpack.c.h.b16 %v4274
    %v4908 = vunpack.c.l.b16 %v4275
    %v4909 = vunpack.c.h.b16 %v4275
    %v4910 = vunpack.c.l.b16 %v4276
    %v4911 = vunpack.c.h.b16 %v4276
    %v4912 = vunpack.c.l.b16 %v4277
    %v4913 = vunpack.c.h.b16 %v4277
    %v4914 = vunpack.c.l.b16 %v4278
    %v4915 = vunpack.c.h.b16 %v4278
    %v4916 = vunpack.c.l.b16 %v4279
    %v4917 = vunpack.c.h.b16 %v4279
    %v4918 = vunpack.c.l.b16 %v4280
    %v4919 = vunpack.c.h.b16 %v4280
    %v4920 = vunpack.c.l.b16 %v4281
    %v4921 = vunpack.c.h.b16 %v4281
    %v4922 = vunpack.c.l.b16 %v4282
    %v4923 = vunpack.c.h.b16 %v4282
    %v4924 = vunpack.c.l.b16 %v4283
    %v4925 = vunpack.c.h.b16 %v4283
    %v4926 = vunpack.c.l.b16 %v4284
    %v4927 = vunpack.c.h.b16 %v4284
    %v4928 = vunpack.c.l.b16 %v4285
    %v4929 = vunpack.c.h.b16 %v4285
    %v4930 = vunpack.c.l.b16 %v4286
    %v4931 = vunpack.c.h.b16 %v4286
    %v4932 = vunpack.c.l.b16 %v4287
    %v4933 = vunpack.c.h.b16 %v4287
    %v4934 = vunpack.c.l.b16 %v4288
    %v4935 = vunpack.c.h.b16 %v4288
    %v4936 = vunpack.c.l.b16 %v4289
    %v4937 = vunpack.c.h.b16 %v4289
    %v4938 = vunpack.c.l.b16 %v4290
    %v4939 = vunpack.c.h.b16 %v4290
    %v4940 = vunpack.c.l.b16 %v4291
    %v4941 = vunpack.c.h.b16 %v4291
    %v4942 = vunpack.c.l.b16 %v4292
    %v4943 = vunpack.c.h.b16 %v4292
    %v4944 = vunpack.c.l.b16 %v4293
    %v4945 = vunpack.c.h.b16 %v4293
    %v4946 = vunpack.c.l.b16 %v4294
    %v4947 = vunpack.c.h.b16 %v4294
    %v4948 = vunpack.c.l.b16 %v4295
    %v4949 = vunpack.c.h.b16 %v4295
    %v4950 = vunpack.c.l.b16 %v4296
    %v4951 = vunpack.c.h.b16 %v4296
    %v4952 = vunpack.c.l.b16 %v4297
    %v4953 = vunpack.c.h.b16 %v4297
    %v4954 = vunpack.c.l.b16 %v4298
    %v4955 = vunpack.c.h.b16 %v4298
    %v4956 = vunpack.c.l.b16 %v4299
    %v4957 = vunpack.c.h.b16 %v4299
    %v4958 = vunpack.c.l.b16 %v4300
    %v4959 = vunpack.c.h.b16 %v4300
    %v4960 = vunpack.c.l.b16 %v4301
    %v4961 = vunpack.c.h.b16 %v4301
    %v4962 = vunpack.c.l.b16 %v4302
    %v4963 = vunpack.c.h.b16 %v4302
    %v4964 = vpack.c.b16 %v4840, %v4836
    %v4965 = vpack.c.b16 %v4841, %v4837
    %v4966 = vpack.c.b16 %v4842, %v4838
    %v4967 = vpack.c.b16 %v4843, %v4839
    %v4968 = vpack.c.b16 %v4848, %v4844
    %v4969 = vpack.c.b16 %v4849, %v4845
    %v4970 = vpack.c.b16 %v4850, %v4846
    %v4971 = vpack.c.b16 %v4851, %v4847
    %v4972 = vpack.c.b16 %v4856, %v4852
    %v4973 = vpack.c.b16 %v4857, %v4853
    %v4974 = vpack.c.b16 %v4858, %v4854
    %v4975 = vpack.c.b16 %v4859, %v4855
    %v4976 = vpack.c.b16 %v4864, %v4860
    %v4977 = vpack.c.b16 %v4865, %v4861
    %v4978 = vpack.c.b16 %v4866, %v4862
    %v4979 = vpack.c.b16 %v4867, %v4863
    %v4980 = vpack.c.b16 %v4872, %v4868
    %v4981 = vpack.c.b16 %v4873, %v4869
    %v4982 = vpack.c.b16 %v4874, %v4870
    %v4983 = vpack.c.b16 %v4875, %v4871
    %v4984 = vpack.c.b16 %v4880, %v4876
    %v4985 = vpack.c.b16 %v4881, %v4877
    %v4986 = vpack.c.b16 %v4882, %v4878
    %v4987 = vpack.c.b16 %v4883, %v4879
    %v4988 = vpack.c.b16 %v4888, %v4884
    %v4989 = vpack.c.b16 %v4889, %v4885
    %v4990 = vpack.c.b16 %v4890, %v4886
    %v4991 = vpack.c.b16 %v4891, %v4887
    %v4992 = vpack.c.b16 %v4896, %v4892
    %v4993 = vpack.c.b16 %v4897, %v4893
    %v4994 = vpack.c.b16 %v4898, %v4894
    %v4995 = vpack.c.b16 %v4899, %v4895
    %v4996 = vpack.c.b16 %v4904, %v4900
    %v4997 = vpack.c.b16 %v4905, %v4901
    %v4998 = vpack.c.b16 %v4906, %v4902
    %v4999 = vpack.c.b16 %v4907, %v4903
    %v5000 = vpack.c.b16 %v4912, %v4908
    %v5001 = vpack.c.b16 %v4913, %v4909
    %v5002 = vpack.c.b16 %v4914, %v4910
    %v5003 = vpack.c.b16 %v4915, %v4911
    %v5004 = vpack.c.b16 %v4920, %v4916
    %v5005 = vpack.c.b16 %v4921, %v4917
    %v5006 = vpack.c.b16 %v4922, %v4918
    %v5007 = vpack.c.b16 %v4923, %v4919
    %v5008 = vpack.c.b16 %v4928, %v4924
    %v5009 = vpack.c.b16 %v4929, %v4925
    %v5010 = vpack.c.b16 %v4930, %v4926
    %v5011 = vpack.c.b16 %v4931, %v4927
    %v5012 = vpack.c.b16 %v4936, %v4932
    %v5013 = vpack.c.b16 %v4937, %v4933
    %v5014 = vpack.c.b16 %v4938, %v4934
    %v5015 = vpack.c.b16 %v4939, %v4935
    %v5016 = vpack.c.b16 %v4944, %v4940
    %v5017 = vpack.c.b16 %v4945, %v4941
    %v5018 = vpack.c.b16 %v4946, %v4942
    %v5019 = vpack.c.b16 %v4947, %v4943
    %v5020 = vpack.c.b16 %v4952, %v4948
    %v5021 = vpack.c.b16 %v4953, %v4949
    %v5022 = vpack.c.b16 %v4954, %v4950
    %v5023 = vpack.c.b16 %v4955, %v4951
    %v5024 = vpack.c.b16 %v4960, %v4956
    %v5025 = vpack.c.b16 %v4961, %v4957
    %v5026 = vpack.c.b16 %v4962, %v4958
    %v5027 = vpack.c.b16 %v4963, %v4959
    %5092 = vmatprep.subr.bf16.mxu0 %v4965
    %5093 = vmatpush1.bf16.msra.mxu0 %v4964
    %5094 = vmatprep.subr.bf16.mxu0 %v4969
    %5095 = vmatpush1.bf16.msra.mxu0 %v4968
    %5096 = vmatprep.subr.bf16.mxu0 %v4973
    %5097 = vmatpush1.bf16.msra.mxu0 %v4972
    %5098 = vmatprep.subr.bf16.mxu0 %v4977
    %5099 = vmatpush1.bf16.msra.mxu0 %v4976
    %5100 = vmatprep.subr.bf16.mxu0 %v4981
    %5101 = vmatpush1.bf16.msra.mxu0 %v4980
    %5102 = vmatprep.subr.bf16.mxu0 %v4985
    %5103 = vmatpush1.bf16.msra.mxu0 %v4984
    %5104 = vmatprep.subr.bf16.mxu0 %v4989
    %5105 = vmatpush1.bf16.msra.mxu0 %v4988
    %5106 = vmatprep.subr.bf16.mxu0 %v4993
    %5107 = vmatpush1.bf16.msra.mxu0 %v4992
    %5108 = vmatprep.subr.bf16.mxu0 %v4997
    %5109 = vmatpush1.bf16.msra.mxu0 %v4996
    %5110 = vmatprep.subr.bf16.mxu0 %v5001
    %5111 = vmatpush1.bf16.msra.mxu0 %v5000
    %5112 = vmatprep.subr.bf16.mxu0 %v5005
    %5113 = vmatpush1.bf16.msra.mxu0 %v5004
    %5114 = vmatprep.subr.bf16.mxu0 %v5009
    %5115 = vmatpush1.bf16.msra.mxu0 %v5008
    %5116 = vmatprep.subr.bf16.mxu0 %v5013
    %5117 = vmatpush1.bf16.msra.mxu0 %v5012
    %5118 = vmatprep.subr.bf16.mxu0 %v5017
    %5119 = vmatpush1.bf16.msra.mxu0 %v5016
    %5120 = vmatprep.subr.bf16.mxu0 %v5021
    %5121 = vmatpush1.bf16.msra.mxu0 %v5020
    %5122 = vmatprep.subr.bf16.mxu0 %v5025
    %5123 = vmatpush1.bf16.msra.mxu0 %v5024
    %5124 = vmatprep.mubr.bf16.mxu0 %v4238
    %5125 = vmatmul.mubr.bf16.gmra.mrb[0].mxu0 %v4237
    %v5126 = vpop.f32.mrb[0].mxu0
    %v5127 = vadd.f32 %v4725, %v5126
    %v5128 = vpop.f32.mrb[0].mxu0
    %v5129 = vadd.f32 %v4727, %v5128
    %v5130 = vpop.f32.mrb[0].mxu0
    %v5131 = vpop.f32.mrb[0].mxu0
    %5132 = vdwg.mxu0
    %5133 = vmatprep.subr.bf16.mxu0 %v4967
    %5134 = vmatpush1.bf16.msra.mxu0 %v4966
    %5135 = vmatprep.subr.bf16.mxu0 %v4971
    %5136 = vmatpush1.bf16.msra.mxu0 %v4970
    %5137 = vmatprep.subr.bf16.mxu0 %v4975
    %5138 = vmatpush1.bf16.msra.mxu0 %v4974
    %5139 = vmatprep.subr.bf16.mxu0 %v4979
    %5140 = vmatpush1.bf16.msra.mxu0 %v4978
    %5141 = vmatprep.subr.bf16.mxu0 %v4983
    %5142 = vmatpush1.bf16.msra.mxu0 %v4982
    %5143 = vmatprep.subr.bf16.mxu0 %v4987
    %5144 = vmatpush1.bf16.msra.mxu0 %v4986
    %5145 = vmatprep.subr.bf16.mxu0 %v4991
    %5146 = vmatpush1.bf16.msra.mxu0 %v4990
    %5147 = vmatprep.subr.bf16.mxu0 %v4995
    %5148 = vmatpush1.bf16.msra.mxu0 %v4994
    %5149 = vmatprep.subr.bf16.mxu0 %v4999
    %5150 = vmatpush1.bf16.msra.mxu0 %v4998
    %5151 = vmatprep.subr.bf16.mxu0 %v5003
    %5152 = vmatpush1.bf16.msra.mxu0 %v5002
    %5153 = vmatprep.subr.bf16.mxu0 %v5007
    %5154 = vmatpush1.bf16.msra.mxu0 %v5006
    %5155 = vmatprep.subr.bf16.mxu0 %v5011
    %5156 = vmatpush1.bf16.msra.mxu0 %v5010
    %5157 = vmatprep.subr.bf16.mxu0 %v5015
    %5158 = vmatpush1.bf16.msra.mxu0 %v5014
    %5159 = vmatprep.subr.bf16.mxu0 %v5019
    %5160 = vmatpush1.bf16.msra.mxu0 %v5018
    %5161 = vmatprep.subr.bf16.mxu0 %v5023
    %5162 = vmatpush1.bf16.msra.mxu0 %v5022
    %5163 = vmatprep.subr.bf16.mxu0 %v5027
    %5164 = vmatpush1.bf16.msra.mxu0 %v5026
    %5165 = vmatprep.mubr.bf16.mxu0 %v4238
    %5166 = vmatmul.mubr.bf16.gmra.mrb[0].mxu0 %v4237
    %v5167 = vpop.f32.mrb[0].mxu0
    %v5168 = vadd.f32 %v4766, %v5167
    %v5169 = vpop.f32.mrb[0].mxu0
    %v5170 = vadd.f32 %v4768, %v5169
    %v5171 = vpop.f32.mrb[0].mxu0
    %v5172 = vpop.f32.mrb[0].mxu0
    %5173 = vdwg.mxu0
    %v5174 = vpack.c.bf16 %v4233, %v4233
    %v5175 = vpack.c.bf16 %v4234, %v4234
    %s5176 = scalar_lea.vmem %s5, 1024
    %v5177 = vld [vmem:[%s5176] sm:$0xff]
    %v5178 = vld [vmem:[%s5176 + $0x8] sm:$0xff]
    %v5179 = vld [vmem:[%s5176 + $0x10] sm:$0xff]
    %v5180 = vld [vmem:[%s5176 + $0x18] sm:$0xff]
    %v5181 = vld [vmem:[%s5176 + $0x20] sm:$0xff]
    %v5182 = vld [vmem:[%s5176 + $0x28] sm:$0xff]
    %v5183 = vld [vmem:[%s5176 + $0x30] sm:$0xff]
    %v5184 = vld [vmem:[%s5176 + $0x38] sm:$0xff]
    %v5185 = vld [vmem:[%s5176 + $0x40] sm:$0xff]
    %v5186 = vld [vmem:[%s5176 + $0x48] sm:$0xff]
    %v5187 = vld [vmem:[%s5176 + $0x50] sm:$0xff]
    %v5188 = vld [vmem:[%s5176 + $0x58] sm:$0xff]
    %v5189 = vld [vmem:[%s5176 + $0x60] sm:$0xff]
    %v5190 = vld [vmem:[%s5176 + $0x68] sm:$0xff]
    %v5191 = vld [vmem:[%s5176 + $0x70] sm:$0xff]
    %v5192 = vld [vmem:[%s5176 + $0x78] sm:$0xff]
    %v5193 = vld [vmem:[%s5176 + $0x80] sm:$0xff]
    %v5194 = vld [vmem:[%s5176 + $0x88] sm:$0xff]
    %v5195 = vld [vmem:[%s5176 + $0x90] sm:$0xff]
    %v5196 = vld [vmem:[%s5176 + $0x98] sm:$0xff]
    %v5197 = vld [vmem:[%s5176 + $0xa0] sm:$0xff]
    %v5198 = vld [vmem:[%s5176 + $0xa8] sm:$0xff]
    %v5199 = vld [vmem:[%s5176 + $0xb0] sm:$0xff]
    %v5200 = vld [vmem:[%s5176 + $0xb8] sm:$0xff]
    %v5201 = vld [vmem:[%s5176 + $0xc0] sm:$0xff]
    %v5202 = vld [vmem:[%s5176 + $0xc8] sm:$0xff]
    %v5203 = vld [vmem:[%s5176 + $0xd0] sm:$0xff]
    %v5204 = vld [vmem:[%s5176 + $0xd8] sm:$0xff]
    %v5205 = vld [vmem:[%s5176 + $0xe0] sm:$0xff]
    %v5206 = vld [vmem:[%s5176 + $0xe8] sm:$0xff]
    %v5207 = vld [vmem:[%s5176 + $0xf0] sm:$0xff]
    %v5208 = vld [vmem:[%s5176 + $0xf8] sm:$0xff]
    %v5209 = vld [vmem:[%s5176 + $0x100] sm:$0xff]
    %v5210 = vld [vmem:[%s5176 + $0x108] sm:$0xff]
    %v5211 = vld [vmem:[%s5176 + $0x110] sm:$0xff]
    %v5212 = vld [vmem:[%s5176 + $0x118] sm:$0xff]
    %v5213 = vld [vmem:[%s5176 + $0x120] sm:$0xff]
    %v5214 = vld [vmem:[%s5176 + $0x128] sm:$0xff]
    %v5215 = vld [vmem:[%s5176 + $0x130] sm:$0xff]
    %v5216 = vld [vmem:[%s5176 + $0x138] sm:$0xff]
    %v5217 = vld [vmem:[%s5176 + $0x140] sm:$0xff]
    %v5218 = vld [vmem:[%s5176 + $0x148] sm:$0xff]
    %v5219 = vld [vmem:[%s5176 + $0x150] sm:$0xff]
    %v5220 = vld [vmem:[%s5176 + $0x158] sm:$0xff]
    %v5221 = vld [vmem:[%s5176 + $0x160] sm:$0xff]
    %v5222 = vld [vmem:[%s5176 + $0x168] sm:$0xff]
    %v5223 = vld [vmem:[%s5176 + $0x170] sm:$0xff]
    %v5224 = vld [vmem:[%s5176 + $0x178] sm:$0xff]
    %v5225 = vld [vmem:[%s5176 + $0x180] sm:$0xff]
    %v5226 = vld [vmem:[%s5176 + $0x188] sm:$0xff]
    %v5227 = vld [vmem:[%s5176 + $0x190] sm:$0xff]
    %v5228 = vld [vmem:[%s5176 + $0x198] sm:$0xff]
    %v5229 = vld [vmem:[%s5176 + $0x1a0] sm:$0xff]
    %v5230 = vld [vmem:[%s5176 + $0x1a8] sm:$0xff]
    %v5231 = vld [vmem:[%s5176 + $0x1b0] sm:$0xff]
    %v5232 = vld [vmem:[%s5176 + $0x1b8] sm:$0xff]
    %v5233 = vld [vmem:[%s5176 + $0x1c0] sm:$0xff]
    %v5234 = vld [vmem:[%s5176 + $0x1c8] sm:$0xff]
    %v5235 = vld [vmem:[%s5176 + $0x1d0] sm:$0xff]
    %v5236 = vld [vmem:[%s5176 + $0x1d8] sm:$0xff]
    %v5237 = vld [vmem:[%s5176 + $0x1e0] sm:$0xff]
    %v5238 = vld [vmem:[%s5176 + $0x1e8] sm:$0xff]
    %v5239 = vld [vmem:[%s5176 + $0x1f0] sm:$0xff]
    %v5240 = vld [vmem:[%s5176 + $0x1f8] sm:$0xff]
    %v5305 = vunpack.c.l.b16 %v5177
    %v5306 = vunpack.c.h.b16 %v5177
    %v5307 = vunpack.c.l.b16 %v5178
    %v5308 = vunpack.c.h.b16 %v5178
    %v5309 = vunpack.c.l.b16 %v5179
    %v5310 = vunpack.c.h.b16 %v5179
    %v5311 = vunpack.c.l.b16 %v5180
    %v5312 = vunpack.c.h.b16 %v5180
    %v5313 = vunpack.c.l.b16 %v5181
    %v5314 = vunpack.c.h.b16 %v5181
    %v5315 = vunpack.c.l.b16 %v5182
    %v5316 = vunpack.c.h.b16 %v5182
    %v5317 = vunpack.c.l.b16 %v5183
    %v5318 = vunpack.c.h.b16 %v5183
    %v5319 = vunpack.c.l.b16 %v5184
    %v5320 = vunpack.c.h.b16 %v5184
    %v5321 = vunpack.c.l.b16 %v5185
    %v5322 = vunpack.c.h.b16 %v5185
    %v5323 = vunpack.c.l.b16 %v5186
    %v5324 = vunpack.c.h.b16 %v5186
    %v5325 = vunpack.c.l.b16 %v5187
    %v5326 = vunpack.c.h.b16 %v5187
    %v5327 = vunpack.c.l.b16 %v5188
    %v5328 = vunpack.c.h.b16 %v5188
    %v5329 = vunpack.c.l.b16 %v5189
    %v5330 = vunpack.c.h.b16 %v5189
    %v5331 = vunpack.c.l.b16 %v5190
    %v5332 = vunpack.c.h.b16 %v5190
    %v5333 = vunpack.c.l.b16 %v5191
    %v5334 = vunpack.c.h.b16 %v5191
    %v5335 = vunpack.c.l.b16 %v5192
    %v5336 = vunpack.c.h.b16 %v5192
    %v5337 = vunpack.c.l.b16 %v5193
    %v5338 = vunpack.c.h.b16 %v5193
    %v5339 = vunpack.c.l.b16 %v5194
    %v5340 = vunpack.c.h.b16 %v5194
    %v5341 = vunpack.c.l.b16 %v5195
    %v5342 = vunpack.c.h.b16 %v5195
    %v5343 = vunpack.c.l.b16 %v5196
    %v5344 = vunpack.c.h.b16 %v5196
    %v5345 = vunpack.c.l.b16 %v5197
    %v5346 = vunpack.c.h.b16 %v5197
    %v5347 = vunpack.c.l.b16 %v5198
    %v5348 = vunpack.c.h.b16 %v5198
    %v5349 = vunpack.c.l.b16 %v5199
    %v5350 = vunpack.c.h.b16 %v5199
    %v5351 = vunpack.c.l.b16 %v5200
    %v5352 = vunpack.c.h.b16 %v5200
    %v5353 = vunpack.c.l.b16 %v5201
    %v5354 = vunpack.c.h.b16 %v5201
    %v5355 = vunpack.c.l.b16 %v5202
    %v5356 = vunpack.c.h.b16 %v5202
    %v5357 = vunpack.c.l.b16 %v5203
    %v5358 = vunpack.c.h.b16 %v5203
    %v5359 = vunpack.c.l.b16 %v5204
    %v5360 = vunpack.c.h.b16 %v5204
    %v5361 = vunpack.c.l.b16 %v5205
    %v5362 = vunpack.c.h.b16 %v5205
    %v5363 = vunpack.c.l.b16 %v5206
    %v5364 = vunpack.c.h.b16 %v5206
    %v5365 = vunpack.c.l.b16 %v5207
    %v5366 = vunpack.c.h.b16 %v5207
    %v5367 = vunpack.c.l.b16 %v5208
    %v5368 = vunpack.c.h.b16 %v5208
    %v5369 = vunpack.c.l.b16 %v5209
    %v5370 = vunpack.c.h.b16 %v5209
    %v5371 = vunpack.c.l.b16 %v5210
    %v5372 = vunpack.c.h.b16 %v5210
    %v5373 = vunpack.c.l.b16 %v5211
    %v5374 = vunpack.c.h.b16 %v5211
    %v5375 = vunpack.c.l.b16 %v5212
    %v5376 = vunpack.c.h.b16 %v5212
    %v5377 = vunpack.c.l.b16 %v5213
    %v5378 = vunpack.c.h.b16 %v5213
    %v5379 = vunpack.c.l.b16 %v5214
    %v5380 = vunpack.c.h.b16 %v5214
    %v5381 = vunpack.c.l.b16 %v5215
    %v5382 = vunpack.c.h.b16 %v5215
    %v5383 = vunpack.c.l.b16 %v5216
    %v5384 = vunpack.c.h.b16 %v5216
    %v5385 = vunpack.c.l.b16 %v5217
    %v5386 = vunpack.c.h.b16 %v5217
    %v5387 = vunpack.c.l.b16 %v5218
    %v5388 = vunpack.c.h.b16 %v5218
    %v5389 = vunpack.c.l.b16 %v5219
    %v5390 = vunpack.c.h.b16 %v5219
    %v5391 = vunpack.c.l.b16 %v5220
    %v5392 = vunpack.c.h.b16 %v5220
    %v5393 = vunpack.c.l.b16 %v5221
    %v5394 = vunpack.c.h.b16 %v5221
    %v5395 = vunpack.c.l.b16 %v5222
    %v5396 = vunpack.c.h.b16 %v5222
    %v5397 = vunpack.c.l.b16 %v5223
    %v5398 = vunpack.c.h.b16 %v5223
    %v5399 = vunpack.c.l.b16 %v5224
    %v5400 = vunpack.c.h.b16 %v5224
    %v5401 = vunpack.c.l.b16 %v5225
    %v5402 = vunpack.c.h.b16 %v5225
    %v5403 = vunpack.c.l.b16 %v5226
    %v5404 = vunpack.c.h.b16 %v5226
    %v5405 = vunpack.c.l.b16 %v5227
    %v5406 = vunpack.c.h.b16 %v5227
    %v5407 = vunpack.c.l.b16 %v5228
    %v5408 = vunpack.c.h.b16 %v5228
    %v5409 = vunpack.c.l.b16 %v5229
    %v5410 = vunpack.c.h.b16 %v5229
    %v5411 = vunpack.c.l.b16 %v5230
    %v5412 = vunpack.c.h.b16 %v5230
    %v5413 = vunpack.c.l.b16 %v5231
    %v5414 = vunpack.c.h.b16 %v5231
    %v5415 = vunpack.c.l.b16 %v5232
    %v5416 = vunpack.c.h.b16 %v5232
    %v5417 = vunpack.c.l.b16 %v5233
    %v5418 = vunpack.c.h.b16 %v5233
    %v5419 = vunpack.c.l.b16 %v5234
    %v5420 = vunpack.c.h.b16 %v5234
    %v5421 = vunpack.c.l.b16 %v5235
    %v5422 = vunpack.c.h.b16 %v5235
    %v5423 = vunpack.c.l.b16 %v5236
    %v5424 = vunpack.c.h.b16 %v5236
    %v5425 = vunpack.c.l.b16 %v5237
    %v5426 = vunpack.c.h.b16 %v5237
    %v5427 = vunpack.c.l.b16 %v5238
    %v5428 = vunpack.c.h.b16 %v5238
    %v5429 = vunpack.c.l.b16 %v5239
    %v5430 = vunpack.c.h.b16 %v5239
    %v5431 = vunpack.c.l.b16 %v5240
    %v5432 = vunpack.c.h.b16 %v5240
    %v5433 = vpack.c.b16 %v5309, %v5305
    %v5434 = vpack.c.b16 %v5310, %v5306
    %v5435 = vpack.c.b16 %v5311, %v5307
    %v5436 = vpack.c.b16 %v5312, %v5308
    %v5437 = vpack.c.b16 %v5317, %v5313
    %v5438 = vpack.c.b16 %v5318, %v5314
    %v5439 = vpack.c.b16 %v5319, %v5315
    %v5440 = vpack.c.b16 %v5320, %v5316
    %v5441 = vpack.c.b16 %v5325, %v5321
    %v5442 = vpack.c.b16 %v5326, %v5322
    %v5443 = vpack.c.b16 %v5327, %v5323
    %v5444 = vpack.c.b16 %v5328, %v5324
    %v5445 = vpack.c.b16 %v5333, %v5329
    %v5446 = vpack.c.b16 %v5334, %v5330
    %v5447 = vpack.c.b16 %v5335, %v5331
    %v5448 = vpack.c.b16 %v5336, %v5332
    %v5449 = vpack.c.b16 %v5341, %v5337
    %v5450 = vpack.c.b16 %v5342, %v5338
    %v5451 = vpack.c.b16 %v5343, %v5339
    %v5452 = vpack.c.b16 %v5344, %v5340
    %v5453 = vpack.c.b16 %v5349, %v5345
    %v5454 = vpack.c.b16 %v5350, %v5346
    %v5455 = vpack.c.b16 %v5351, %v5347
    %v5456 = vpack.c.b16 %v5352, %v5348
    %v5457 = vpack.c.b16 %v5357, %v5353
    %v5458 = vpack.c.b16 %v5358, %v5354
    %v5459 = vpack.c.b16 %v5359, %v5355
    %v5460 = vpack.c.b16 %v5360, %v5356
    %v5461 = vpack.c.b16 %v5365, %v5361
    %v5462 = vpack.c.b16 %v5366, %v5362
    %v5463 = vpack.c.b16 %v5367, %v5363
    %v5464 = vpack.c.b16 %v5368, %v5364
    %v5465 = vpack.c.b16 %v5373, %v5369
    %v5466 = vpack.c.b16 %v5374, %v5370
    %v5467 = vpack.c.b16 %v5375, %v5371
    %v5468 = vpack.c.b16 %v5376, %v5372
    %v5469 = vpack.c.b16 %v5381, %v5377
    %v5470 = vpack.c.b16 %v5382, %v5378
    %v5471 = vpack.c.b16 %v5383, %v5379
    %v5472 = vpack.c.b16 %v5384, %v5380
    %v5473 = vpack.c.b16 %v5389, %v5385
    %v5474 = vpack.c.b16 %v5390, %v5386
    %v5475 = vpack.c.b16 %v5391, %v5387
    %v5476 = vpack.c.b16 %v5392, %v5388
    %v5477 = vpack.c.b16 %v5397, %v5393
    %v5478 = vpack.c.b16 %v5398, %v5394
    %v5479 = vpack.c.b16 %v5399, %v5395
    %v5480 = vpack.c.b16 %v5400, %v5396
    %v5481 = vpack.c.b16 %v5405, %v5401
    %v5482 = vpack.c.b16 %v5406, %v5402
    %v5483 = vpack.c.b16 %v5407, %v5403
    %v5484 = vpack.c.b16 %v5408, %v5404
    %v5485 = vpack.c.b16 %v5413, %v5409
    %v5486 = vpack.c.b16 %v5414, %v5410
    %v5487 = vpack.c.b16 %v5415, %v5411
    %v5488 = vpack.c.b16 %v5416, %v5412
    %v5489 = vpack.c.b16 %v5421, %v5417
    %v5490 = vpack.c.b16 %v5422, %v5418
    %v5491 = vpack.c.b16 %v5423, %v5419
    %v5492 = vpack.c.b16 %v5424, %v5420
    %v5493 = vpack.c.b16 %v5429, %v5425
    %v5494 = vpack.c.b16 %v5430, %v5426
    %v5495 = vpack.c.b16 %v5431, %v5427
    %v5496 = vpack.c.b16 %v5432, %v5428
    %5561 = vmatprep.subr.bf16.mxu0 %v5434
    %5562 = vmatpush1.bf16.msra.mxu0 %v5433
    %5563 = vmatprep.subr.bf16.mxu0 %v5438
    %5564 = vmatpush1.bf16.msra.mxu0 %v5437
    %5565 = vmatprep.subr.bf16.mxu0 %v5442
    %5566 = vmatpush1.bf16.msra.mxu0 %v5441
    %5567 = vmatprep.subr.bf16.mxu0 %v5446
    %5568 = vmatpush1.bf16.msra.mxu0 %v5445
    %5569 = vmatprep.subr.bf16.mxu0 %v5450
    %5570 = vmatpush1.bf16.msra.mxu0 %v5449
    %5571 = vmatprep.subr.bf16.mxu0 %v5454
    %5572 = vmatpush1.bf16.msra.mxu0 %v5453
    %5573 = vmatprep.subr.bf16.mxu0 %v5458
    %5574 = vmatpush1.bf16.msra.mxu0 %v5457
    %5575 = vmatprep.subr.bf16.mxu0 %v5462
    %5576 = vmatpush1.bf16.msra.mxu0 %v5461
    %5577 = vmatprep.subr.bf16.mxu0 %v5466
    %5578 = vmatpush1.bf16.msra.mxu0 %v5465
    %5579 = vmatprep.subr.bf16.mxu0 %v5470
    %5580 = vmatpush1.bf16.msra.mxu0 %v5469
    %5581 = vmatprep.subr.bf16.mxu0 %v5474
    %5582 = vmatpush1.bf16.msra.mxu0 %v5473
    %5583 = vmatprep.subr.bf16.mxu0 %v5478
    %5584 = vmatpush1.bf16.msra.mxu0 %v5477
    %5585 = vmatprep.subr.bf16.mxu0 %v5482
    %5586 = vmatpush1.bf16.msra.mxu0 %v5481
    %5587 = vmatprep.subr.bf16.mxu0 %v5486
    %5588 = vmatpush1.bf16.msra.mxu0 %v5485
    %5589 = vmatprep.subr.bf16.mxu0 %v5490
    %5590 = vmatpush1.bf16.msra.mxu0 %v5489
    %5591 = vmatprep.subr.bf16.mxu0 %v5494
    %5592 = vmatpush1.bf16.msra.mxu0 %v5493
    %5593 = vmatprep.mubr.bf16.mxu0 %v5175
    %5594 = vmatmul.mubr.bf16.gmra.mrb[0].mxu0 %v5174
    %v5595 = vpop.f32.mrb[0].mxu0
    %v5596 = vadd.f32 0.0, %v5595
    %v5597 = vpop.f32.mrb[0].mxu0
    %v5598 = vadd.f32 0.0, %v5597
    %v5599 = vpop.f32.mrb[0].mxu0
    %v5600 = vpop.f32.mrb[0].mxu0
    %5601 = vdwg.mxu0
    %5602 = vmatprep.subr.bf16.mxu0 %v5436
    %5603 = vmatpush1.bf16.msra.mxu0 %v5435
    %5604 = vmatprep.subr.bf16.mxu0 %v5440
    %5605 = vmatpush1.bf16.msra.mxu0 %v5439
    %5606 = vmatprep.subr.bf16.mxu0 %v5444
    %5607 = vmatpush1.bf16.msra.mxu0 %v5443
    %5608 = vmatprep.subr.bf16.mxu0 %v5448
    %5609 = vmatpush1.bf16.msra.mxu0 %v5447
    %5610 = vmatprep.subr.bf16.mxu0 %v5452
    %5611 = vmatpush1.bf16.msra.mxu0 %v5451
    %5612 = vmatprep.subr.bf16.mxu0 %v5456
    %5613 = vmatpush1.bf16.msra.mxu0 %v5455
    %5614 = vmatprep.subr.bf16.mxu0 %v5460
    %5615 = vmatpush1.bf16.msra.mxu0 %v5459
    %5616 = vmatprep.subr.bf16.mxu0 %v5464
    %5617 = vmatpush1.bf16.msra.mxu0 %v5463
    %5618 = vmatprep.subr.bf16.mxu0 %v5468
    %5619 = vmatpush1.bf16.msra.mxu0 %v5467
    %5620 = vmatprep.subr.bf16.mxu0 %v5472
    %5621 = vmatpush1.bf16.msra.mxu0 %v5471
    %5622 = vmatprep.subr.bf16.mxu0 %v5476
    %5623 = vmatpush1.bf16.msra.mxu0 %v5475
    %5624 = vmatprep.subr.bf16.mxu0 %v5480
    %5625 = vmatpush1.bf16.msra.mxu0 %v5479
    %5626 = vmatprep.subr.bf16.mxu0 %v5484
    %5627 = vmatpush1.bf16.msra.mxu0 %v5483
    %5628 = vmatprep.subr.bf16.mxu0 %v5488
    %5629 = vmatpush1.bf16.msra.mxu0 %v5487
    %5630 = vmatprep.subr.bf16.mxu0 %v5492
    %5631 = vmatpush1.bf16.msra.mxu0 %v5491
    %5632 = vmatprep.subr.bf16.mxu0 %v5496
    %5633 = vmatpush1.bf16.msra.mxu0 %v5495
    %5634 = vmatprep.mubr.bf16.mxu0 %v5175
    %5635 = vmatmul.mubr.bf16.gmra.mrb[0].mxu0 %v5174
    %v5636 = vpop.f32.mrb[0].mxu0
    %v5637 = vadd.f32 0.0, %v5636
    %v5638 = vpop.f32.mrb[0].mxu0
    %v5639 = vadd.f32 0.0, %v5638
    %v5640 = vpop.f32.mrb[0].mxu0
    %v5641 = vpop.f32.mrb[0].mxu0
    %5642 = vdwg.mxu0
    %v5643 = vadd.f32 %v5127, %v5596
    %v5644 = vadd.f32 %v5129, %v5598
    %v5645 = vadd.f32 %v5168, %v5637
    %v5646 = vadd.f32 %v5170, %v5639
    %v5647 = vpack.c.bf16 %v4235, %v4235
    %v5648 = vpack.c.bf16 %v4236, %v4236
    %s5649 = scalar_lea.vmem %s5, 1536
    %v5650 = vld [vmem:[%s5649] sm:$0xff]
    %v5651 = vld [vmem:[%s5649 + $0x8] sm:$0xff]
    %v5652 = vld [vmem:[%s5649 + $0x10] sm:$0xff]
    %v5653 = vld [vmem:[%s5649 + $0x18] sm:$0xff]
    %v5654 = vld [vmem:[%s5649 + $0x20] sm:$0xff]
    %v5655 = vld [vmem:[%s5649 + $0x28] sm:$0xff]
    %v5656 = vld [vmem:[%s5649 + $0x30] sm:$0xff]
    %v5657 = vld [vmem:[%s5649 + $0x38] sm:$0xff]
    %v5658 = vld [vmem:[%s5649 + $0x40] sm:$0xff]
    %v5659 = vld [vmem:[%s5649 + $0x48] sm:$0xff]
    %v5660 = vld [vmem:[%s5649 + $0x50] sm:$0xff]
    %v5661 = vld [vmem:[%s5649 + $0x58] sm:$0xff]
    %v5662 = vld [vmem:[%s5649 + $0x60] sm:$0xff]
    %v5663 = vld [vmem:[%s5649 + $0x68] sm:$0xff]
    %v5664 = vld [vmem:[%s5649 + $0x70] sm:$0xff]
    %v5665 = vld [vmem:[%s5649 + $0x78] sm:$0xff]
    %v5666 = vld [vmem:[%s5649 + $0x80] sm:$0xff]
    %v5667 = vld [vmem:[%s5649 + $0x88] sm:$0xff]
    %v5668 = vld [vmem:[%s5649 + $0x90] sm:$0xff]
    %v5669 = vld [vmem:[%s5649 + $0x98] sm:$0xff]
    %v5670 = vld [vmem:[%s5649 + $0xa0] sm:$0xff]
    %v5671 = vld [vmem:[%s5649 + $0xa8] sm:$0xff]
    %v5672 = vld [vmem:[%s5649 + $0xb0] sm:$0xff]
    %v5673 = vld [vmem:[%s5649 + $0xb8] sm:$0xff]
    %v5674 = vld [vmem:[%s5649 + $0xc0] sm:$0xff]
    %v5675 = vld [vmem:[%s5649 + $0xc8] sm:$0xff]
    %v5676 = vld [vmem:[%s5649 + $0xd0] sm:$0xff]
    %v5677 = vld [vmem:[%s5649 + $0xd8] sm:$0xff]
    %v5678 = vld [vmem:[%s5649 + $0xe0] sm:$0xff]
    %v5679 = vld [vmem:[%s5649 + $0xe8] sm:$0xff]
    %v5680 = vld [vmem:[%s5649 + $0xf0] sm:$0xff]
    %v5681 = vld [vmem:[%s5649 + $0xf8] sm:$0xff]
    %v5682 = vld [vmem:[%s5649 + $0x100] sm:$0xff]
    %v5683 = vld [vmem:[%s5649 + $0x108] sm:$0xff]
    %v5684 = vld [vmem:[%s5649 + $0x110] sm:$0xff]
    %v5685 = vld [vmem:[%s5649 + $0x118] sm:$0xff]
    %v5686 = vld [vmem:[%s5649 + $0x120] sm:$0xff]
    %v5687 = vld [vmem:[%s5649 + $0x128] sm:$0xff]
    %v5688 = vld [vmem:[%s5649 + $0x130] sm:$0xff]
    %v5689 = vld [vmem:[%s5649 + $0x138] sm:$0xff]
    %v5690 = vld [vmem:[%s5649 + $0x140] sm:$0xff]
    %v5691 = vld [vmem:[%s5649 + $0x148] sm:$0xff]
    %v5692 = vld [vmem:[%s5649 + $0x150] sm:$0xff]
    %v5693 = vld [vmem:[%s5649 + $0x158] sm:$0xff]
    %v5694 = vld [vmem:[%s5649 + $0x160] sm:$0xff]
    %v5695 = vld [vmem:[%s5649 + $0x168] sm:$0xff]
    %v5696 = vld [vmem:[%s5649 + $0x170] sm:$0xff]
    %v5697 = vld [vmem:[%s5649 + $0x178] sm:$0xff]
    %v5698 = vld [vmem:[%s5649 + $0x180] sm:$0xff]
    %v5699 = vld [vmem:[%s5649 + $0x188] sm:$0xff]
    %v5700 = vld [vmem:[%s5649 + $0x190] sm:$0xff]
    %v5701 = vld [vmem:[%s5649 + $0x198] sm:$0xff]
    %v5702 = vld [vmem:[%s5649 + $0x1a0] sm:$0xff]
    %v5703 = vld [vmem:[%s5649 + $0x1a8] sm:$0xff]
    %v5704 = vld [vmem:[%s5649 + $0x1b0] sm:$0xff]
    %v5705 = vld [vmem:[%s5649 + $0x1b8] sm:$0xff]
    %v5706 = vld [vmem:[%s5649 + $0x1c0] sm:$0xff]
    %v5707 = vld [vmem:[%s5649 + $0x1c8] sm:$0xff]
    %v5708 = vld [vmem:[%s5649 + $0x1d0] sm:$0xff]
    %v5709 = vld [vmem:[%s5649 + $0x1d8] sm:$0xff]
    %v5710 = vld [vmem:[%s5649 + $0x1e0] sm:$0xff]
    %v5711 = vld [vmem:[%s5649 + $0x1e8] sm:$0xff]
    %v5712 = vld [vmem:[%s5649 + $0x1f0] sm:$0xff]
    %v5713 = vld [vmem:[%s5649 + $0x1f8] sm:$0xff]
    %v5778 = vunpack.c.l.b16 %v5650
    %v5779 = vunpack.c.h.b16 %v5650
    %v5780 = vunpack.c.l.b16 %v5651
    %v5781 = vunpack.c.h.b16 %v5651
    %v5782 = vunpack.c.l.b16 %v5652
    %v5783 = vunpack.c.h.b16 %v5652
    %v5784 = vunpack.c.l.b16 %v5653
    %v5785 = vunpack.c.h.b16 %v5653
    %v5786 = vunpack.c.l.b16 %v5654
    %v5787 = vunpack.c.h.b16 %v5654
    %v5788 = vunpack.c.l.b16 %v5655
    %v5789 = vunpack.c.h.b16 %v5655
    %v5790 = vunpack.c.l.b16 %v5656
    %v5791 = vunpack.c.h.b16 %v5656
    %v5792 = vunpack.c.l.b16 %v5657
    %v5793 = vunpack.c.h.b16 %v5657
    %v5794 = vunpack.c.l.b16 %v5658
    %v5795 = vunpack.c.h.b16 %v5658
    %v5796 = vunpack.c.l.b16 %v5659
    %v5797 = vunpack.c.h.b16 %v5659
    %v5798 = vunpack.c.l.b16 %v5660
    %v5799 = vunpack.c.h.b16 %v5660
    %v5800 = vunpack.c.l.b16 %v5661
    %v5801 = vunpack.c.h.b16 %v5661
    %v5802 = vunpack.c.l.b16 %v5662
    %v5803 = vunpack.c.h.b16 %v5662
    %v5804 = vunpack.c.l.b16 %v5663
    %v5805 = vunpack.c.h.b16 %v5663
    %v5806 = vunpack.c.l.b16 %v5664
    %v5807 = vunpack.c.h.b16 %v5664
    %v5808 = vunpack.c.l.b16 %v5665
    %v5809 = vunpack.c.h.b16 %v5665
    %v5810 = vunpack.c.l.b16 %v5666
    %v5811 = vunpack.c.h.b16 %v5666
    %v5812 = vunpack.c.l.b16 %v5667
    %v5813 = vunpack.c.h.b16 %v5667
    %v5814 = vunpack.c.l.b16 %v5668
    %v5815 = vunpack.c.h.b16 %v5668
    %v5816 = vunpack.c.l.b16 %v5669
    %v5817 = vunpack.c.h.b16 %v5669
    %v5818 = vunpack.c.l.b16 %v5670
    %v5819 = vunpack.c.h.b16 %v5670
    %v5820 = vunpack.c.l.b16 %v5671
    %v5821 = vunpack.c.h.b16 %v5671
    %v5822 = vunpack.c.l.b16 %v5672
    %v5823 = vunpack.c.h.b16 %v5672
    %v5824 = vunpack.c.l.b16 %v5673
    %v5825 = vunpack.c.h.b16 %v5673
    %v5826 = vunpack.c.l.b16 %v5674
    %v5827 = vunpack.c.h.b16 %v5674
    %v5828 = vunpack.c.l.b16 %v5675
    %v5829 = vunpack.c.h.b16 %v5675
    %v5830 = vunpack.c.l.b16 %v5676
    %v5831 = vunpack.c.h.b16 %v5676
    %v5832 = vunpack.c.l.b16 %v5677
    %v5833 = vunpack.c.h.b16 %v5677
    %v5834 = vunpack.c.l.b16 %v5678
    %v5835 = vunpack.c.h.b16 %v5678
    %v5836 = vunpack.c.l.b16 %v5679
    %v5837 = vunpack.c.h.b16 %v5679
    %v5838 = vunpack.c.l.b16 %v5680
    %v5839 = vunpack.c.h.b16 %v5680
    %v5840 = vunpack.c.l.b16 %v5681
    %v5841 = vunpack.c.h.b16 %v5681
    %v5842 = vunpack.c.l.b16 %v5682
    %v5843 = vunpack.c.h.b16 %v5682
    %v5844 = vunpack.c.l.b16 %v5683
    %v5845 = vunpack.c.h.b16 %v5683
    %v5846 = vunpack.c.l.b16 %v5684
    %v5847 = vunpack.c.h.b16 %v5684
    %v5848 = vunpack.c.l.b16 %v5685
    %v5849 = vunpack.c.h.b16 %v5685
    %v5850 = vunpack.c.l.b16 %v5686
    %v5851 = vunpack.c.h.b16 %v5686
    %v5852 = vunpack.c.l.b16 %v5687
    %v5853 = vunpack.c.h.b16 %v5687
    %v5854 = vunpack.c.l.b16 %v5688
    %v5855 = vunpack.c.h.b16 %v5688
    %v5856 = vunpack.c.l.b16 %v5689
    %v5857 = vunpack.c.h.b16 %v5689
    %v5858 = vunpack.c.l.b16 %v5690
    %v5859 = vunpack.c.h.b16 %v5690
    %v5860 = vunpack.c.l.b16 %v5691
    %v5861 = vunpack.c.h.b16 %v5691
    %v5862 = vunpack.c.l.b16 %v5692
    %v5863 = vunpack.c.h.b16 %v5692
    %v5864 = vunpack.c.l.b16 %v5693
    %v5865 = vunpack.c.h.b16 %v5693
    %v5866 = vunpack.c.l.b16 %v5694
    %v5867 = vunpack.c.h.b16 %v5694
    %v5868 = vunpack.c.l.b16 %v5695
    %v5869 = vunpack.c.h.b16 %v5695
    %v5870 = vunpack.c.l.b16 %v5696
    %v5871 = vunpack.c.h.b16 %v5696
    %v5872 = vunpack.c.l.b16 %v5697
    %v5873 = vunpack.c.h.b16 %v5697
    %v5874 = vunpack.c.l.b16 %v5698
    %v5875 = vunpack.c.h.b16 %v5698
    %v5876 = vunpack.c.l.b16 %v5699
    %v5877 = vunpack.c.h.b16 %v5699
    %v5878 = vunpack.c.l.b16 %v5700
    %v5879 = vunpack.c.h.b16 %v5700
    %v5880 = vunpack.c.l.b16 %v5701
    %v5881 = vunpack.c.h.b16 %v5701
    %v5882 = vunpack.c.l.b16 %v5702
    %v5883 = vunpack.c.h.b16 %v5702
    %v5884 = vunpack.c.l.b16 %v5703
    %v5885 = vunpack.c.h.b16 %v5703
    %v5886 = vunpack.c.l.b16 %v5704
    %v5887 = vunpack.c.h.b16 %v5704
    %v5888 = vunpack.c.l.b16 %v5705
    %v5889 = vunpack.c.h.b16 %v5705
    %v5890 = vunpack.c.l.b16 %v5706
    %v5891 = vunpack.c.h.b16 %v5706
    %v5892 = vunpack.c.l.b16 %v5707
    %v5893 = vunpack.c.h.b16 %v5707
    %v5894 = vunpack.c.l.b16 %v5708
    %v5895 = vunpack.c.h.b16 %v5708
    %v5896 = vunpack.c.l.b16 %v5709
    %v5897 = vunpack.c.h.b16 %v5709
    %v5898 = vunpack.c.l.b16 %v5710
    %v5899 = vunpack.c.h.b16 %v5710
    %v5900 = vunpack.c.l.b16 %v5711
    %v5901 = vunpack.c.h.b16 %v5711
    %v5902 = vunpack.c.l.b16 %v5712
    %v5903 = vunpack.c.h.b16 %v5712
    %v5904 = vunpack.c.l.b16 %v5713
    %v5905 = vunpack.c.h.b16 %v5713
    %v5906 = vpack.c.b16 %v5782, %v5778
    %v5907 = vpack.c.b16 %v5783, %v5779
    %v5908 = vpack.c.b16 %v5784, %v5780
    %v5909 = vpack.c.b16 %v5785, %v5781
    %v5910 = vpack.c.b16 %v5790, %v5786
    %v5911 = vpack.c.b16 %v5791, %v5787
    %v5912 = vpack.c.b16 %v5792, %v5788
    %v5913 = vpack.c.b16 %v5793, %v5789
    %v5914 = vpack.c.b16 %v5798, %v5794
    %v5915 = vpack.c.b16 %v5799, %v5795
    %v5916 = vpack.c.b16 %v5800, %v5796
    %v5917 = vpack.c.b16 %v5801, %v5797
    %v5918 = vpack.c.b16 %v5806, %v5802
    %v5919 = vpack.c.b16 %v5807, %v5803
    %v5920 = vpack.c.b16 %v5808, %v5804
    %v5921 = vpack.c.b16 %v5809, %v5805
    %v5922 = vpack.c.b16 %v5814, %v5810
    %v5923 = vpack.c.b16 %v5815, %v5811
    %v5924 = vpack.c.b16 %v5816, %v5812
    %v5925 = vpack.c.b16 %v5817, %v5813
    %v5926 = vpack.c.b16 %v5822, %v5818
    %v5927 = vpack.c.b16 %v5823, %v5819
    %v5928 = vpack.c.b16 %v5824, %v5820
    %v5929 = vpack.c.b16 %v5825, %v5821
    %v5930 = vpack.c.b16 %v5830, %v5826
    %v5931 = vpack.c.b16 %v5831, %v5827
    %v5932 = vpack.c.b16 %v5832, %v5828
    %v5933 = vpack.c.b16 %v5833, %v5829
    %v5934 = vpack.c.b16 %v5838, %v5834
    %v5935 = vpack.c.b16 %v5839, %v5835
    %v5936 = vpack.c.b16 %v5840, %v5836
    %v5937 = vpack.c.b16 %v5841, %v5837
    %v5938 = vpack.c.b16 %v5846, %v5842
    %v5939 = vpack.c.b16 %v5847, %v5843
    %v5940 = vpack.c.b16 %v5848, %v5844
    %v5941 = vpack.c.b16 %v5849, %v5845
    %v5942 = vpack.c.b16 %v5854, %v5850
    %v5943 = vpack.c.b16 %v5855, %v5851
    %v5944 = vpack.c.b16 %v5856, %v5852
    %v5945 = vpack.c.b16 %v5857, %v5853
    %v5946 = vpack.c.b16 %v5862, %v5858
    %v5947 = vpack.c.b16 %v5863, %v5859
    %v5948 = vpack.c.b16 %v5864, %v5860
    %v5949 = vpack.c.b16 %v5865, %v5861
    %v5950 = vpack.c.b16 %v5870, %v5866
    %v5951 = vpack.c.b16 %v5871, %v5867
    %v5952 = vpack.c.b16 %v5872, %v5868
    %v5953 = vpack.c.b16 %v5873, %v5869
    %v5954 = vpack.c.b16 %v5878, %v5874
    %v5955 = vpack.c.b16 %v5879, %v5875
    %v5956 = vpack.c.b16 %v5880, %v5876
    %v5957 = vpack.c.b16 %v5881, %v5877
    %v5958 = vpack.c.b16 %v5886, %v5882
    %v5959 = vpack.c.b16 %v5887, %v5883
    %v5960 = vpack.c.b16 %v5888, %v5884
    %v5961 = vpack.c.b16 %v5889, %v5885
    %v5962 = vpack.c.b16 %v5894, %v5890
    %v5963 = vpack.c.b16 %v5895, %v5891
    %v5964 = vpack.c.b16 %v5896, %v5892
    %v5965 = vpack.c.b16 %v5897, %v5893
    %v5966 = vpack.c.b16 %v5902, %v5898
    %v5967 = vpack.c.b16 %v5903, %v5899
    %v5968 = vpack.c.b16 %v5904, %v5900
    %v5969 = vpack.c.b16 %v5905, %v5901
    %6034 = vmatprep.subr.bf16.mxu0 %v5907
    %6035 = vmatpush1.bf16.msra.mxu0 %v5906
    %6036 = vmatprep.subr.bf16.mxu0 %v5911
    %6037 = vmatpush1.bf16.msra.mxu0 %v5910
    %6038 = vmatprep.subr.bf16.mxu0 %v5915
    %6039 = vmatpush1.bf16.msra.mxu0 %v5914
    %6040 = vmatprep.subr.bf16.mxu0 %v5919
    %6041 = vmatpush1.bf16.msra.mxu0 %v5918
    %6042 = vmatprep.subr.bf16.mxu0 %v5923
    %6043 = vmatpush1.bf16.msra.mxu0 %v5922
    %6044 = vmatprep.subr.bf16.mxu0 %v5927
    %6045 = vmatpush1.bf16.msra.mxu0 %v5926
    %6046 = vmatprep.subr.bf16.mxu0 %v5931
    %6047 = vmatpush1.bf16.msra.mxu0 %v5930
    %6048 = vmatprep.subr.bf16.mxu0 %v5935
    %6049 = vmatpush1.bf16.msra.mxu0 %v5934
    %6050 = vmatprep.subr.bf16.mxu0 %v5939
    %6051 = vmatpush1.bf16.msra.mxu0 %v5938
    %6052 = vmatprep.subr.bf16.mxu0 %v5943
    %6053 = vmatpush1.bf16.msra.mxu0 %v5942
    %6054 = vmatprep.subr.bf16.mxu0 %v5947
    %6055 = vmatpush1.bf16.msra.mxu0 %v5946
    %6056 = vmatprep.subr.bf16.mxu0 %v5951
    %6057 = vmatpush1.bf16.msra.mxu0 %v5950
    %6058 = vmatprep.subr.bf16.mxu0 %v5955
    %6059 = vmatpush1.bf16.msra.mxu0 %v5954
    %6060 = vmatprep.subr.bf16.mxu0 %v5959
    %6061 = vmatpush1.bf16.msra.mxu0 %v5958
    %6062 = vmatprep.subr.bf16.mxu0 %v5963
    %6063 = vmatpush1.bf16.msra.mxu0 %v5962
    %6064 = vmatprep.subr.bf16.mxu0 %v5967
    %6065 = vmatpush1.bf16.msra.mxu0 %v5966
    %6066 = vmatprep.mubr.bf16.mxu0 %v5648
    %6067 = vmatmul.mubr.bf16.gmra.mrb[0].mxu0 %v5647
    %v6068 = vpop.f32.mrb[0].mxu0
    %v6069 = vadd.f32 0.0, %v6068
    %v6070 = vpop.f32.mrb[0].mxu0
    %v6071 = vadd.f32 0.0, %v6070
    %v6072 = vpop.f32.mrb[0].mxu0
    %v6073 = vpop.f32.mrb[0].mxu0
    %6074 = vdwg.mxu0
    %6075 = vmatprep.subr.bf16.mxu0 %v5909
    %6076 = vmatpush1.bf16.msra.mxu0 %v5908
    %6077 = vmatprep.subr.bf16.mxu0 %v5913
    %6078 = vmatpush1.bf16.msra.mxu0 %v5912
    %6079 = vmatprep.subr.bf16.mxu0 %v5917
    %6080 = vmatpush1.bf16.msra.mxu0 %v5916
    %6081 = vmatprep.subr.bf16.mxu0 %v5921
    %6082 = vmatpush1.bf16.msra.mxu0 %v5920
    %6083 = vmatprep.subr.bf16.mxu0 %v5925
    %6084 = vmatpush1.bf16.msra.mxu0 %v5924
    %6085 = vmatprep.subr.bf16.mxu0 %v5929
    %6086 = vmatpush1.bf16.msra.mxu0 %v5928
    %6087 = vmatprep.subr.bf16.mxu0 %v5933
    %6088 = vmatpush1.bf16.msra.mxu0 %v5932
    %6089 = vmatprep.subr.bf16.mxu0 %v5937
    %6090 = vmatpush1.bf16.msra.mxu0 %v5936
    %6091 = vmatprep.subr.bf16.mxu0 %v5941
    %6092 = vmatpush1.bf16.msra.mxu0 %v5940
    %6093 = vmatprep.subr.bf16.mxu0 %v5945
    %6094 = vmatpush1.bf16.msra.mxu0 %v5944
    %6095 = vmatprep.subr.bf16.mxu0 %v5949
    %6096 = vmatpush1.bf16.msra.mxu0 %v5948
    %6097 = vmatprep.subr.bf16.mxu0 %v5953
    %6098 = vmatpush1.bf16.msra.mxu0 %v5952
    %6099 = vmatprep.subr.bf16.mxu0 %v5957
    %6100 = vmatpush1.bf16.msra.mxu0 %v5956
    %6101 = vmatprep.subr.bf16.mxu0 %v5961
    %6102 = vmatpush1.bf16.msra.mxu0 %v5960
    %6103 = vmatprep.subr.bf16.mxu0 %v5965
    %6104 = vmatpush1.bf16.msra.mxu0 %v5964
    %6105 = vmatprep.subr.bf16.mxu0 %v5969
    %6106 = vmatpush1.bf16.msra.mxu0 %v5968
    %6107 = vmatprep.mubr.bf16.mxu0 %v5648
    %6108 = vmatmul.mubr.bf16.gmra.mrb[0].mxu0 %v5647
    %v6109 = vpop.f32.mrb[0].mxu0
    %v6110 = vadd.f32 0.0, %v6109
    %v6111 = vpop.f32.mrb[0].mxu0
    %v6112 = vadd.f32 0.0, %v6111
    %v6113 = vpop.f32.mrb[0].mxu0
    %v6114 = vpop.f32.mrb[0].mxu0
    %6115 = vdwg.mxu0
    %v6116 = vadd.f32 %v5643, %v6069
    %v6117 = vadd.f32 %v5644, %v6071
    %v6118 = vadd.f32 %v5645, %v6110
    %v6119 = vadd.f32 %v5646, %v6112
    %v6120 = vld [vmem:[#allocation9] sm:$0xf]
    %v6122 = vlaneseq
    %v6123 = vshrl.u32 %v6122, 7
    %v6124 = vsub.s32 0, %v6123
    %v6125 = vrot.slane %v6120, %v6124
    %v6126 = vlaneseq
    %v6127 = vshrl.u32 %v6126, 7
    %v6128 = vsub.s32 1, %v6127
    %v6129 = vrot.slane %v6120, %v6128
    %v6130 = vlaneseq
    %v6131 = vshrl.u32 %v6130, 7
    %v6132 = vsub.s32 2, %v6131
    %v6133 = vrot.slane %v6120, %v6132
    %v6134 = vlaneseq
    %v6135 = vshrl.u32 %v6134, 7
    %v6136 = vsub.s32 3, %v6135
    %v6137 = vrot.slane %v6120, %v6136
    %v6142 = vadd.f32 %v6116, %v6125
    %v6143 = vadd.f32 %v6117, %v6129
    %v6144 = vadd.f32 %v6118, %v6133
    %v6145 = vadd.f32 %v6119, %v6137
    %v6146 = vmax.f32 %v6142, 0.0
    %v6147 = vmax.f32 %v6143, 0.0
    %v6148 = vmax.f32 %v6144, 0.0
    %v6149 = vmax.f32 %v6145, 0.0
    %v6150 = vpack.c.bf16 %v6146, %v6146
    %v6151 = vpack.c.bf16 %v6147, %v6147
    %v6152 = vpack.c.bf16 %v6148, %v6148
    %v6153 = vpack.c.bf16 %v6149, %v6149
    %v6154 = vld [vmem:[#allocation10] sm:$0xf]
    %v6155 = vld [vmem:[#allocation10 + $0x4] sm:$0xf]
    %v6156 = vld [vmem:[#allocation10 + $0x8] sm:$0xf]
    %v6157 = vld [vmem:[#allocation10 + $0xc] sm:$0xf]
    %v6158 = vld [vmem:[#allocation10 + $0x10] sm:$0xf]
    %v6159 = vld [vmem:[#allocation10 + $0x14] sm:$0xf]
    %v6160 = vld [vmem:[#allocation10 + $0x18] sm:$0xf]
    %v6161 = vld [vmem:[#allocation10 + $0x1c] sm:$0xf]
    %v6162 = vld [vmem:[#allocation10 + $0x20] sm:$0xf]
    %v6163 = vld [vmem:[#allocation10 + $0x24] sm:$0xf]
    %v6164 = vld [vmem:[#allocation10 + $0x28] sm:$0xf]
    %v6165 = vld [vmem:[#allocation10 + $0x2c] sm:$0xf]
    %v6166 = vld [vmem:[#allocation10 + $0x30] sm:$0xf]
    %v6167 = vld [vmem:[#allocation10 + $0x34] sm:$0xf]
    %v6168 = vld [vmem:[#allocation10 + $0x38] sm:$0xf]
    %v6169 = vld [vmem:[#allocation10 + $0x3c] sm:$0xf]
    %v6170 = vld [vmem:[#allocation10 + $0x40] sm:$0xf]
    %v6171 = vld [vmem:[#allocation10 + $0x44] sm:$0xf]
    %v6172 = vld [vmem:[#allocation10 + $0x48] sm:$0xf]
    %v6173 = vld [vmem:[#allocation10 + $0x4c] sm:$0xf]
    %v6174 = vld [vmem:[#allocation10 + $0x50] sm:$0xf]
    %v6175 = vld [vmem:[#allocation10 + $0x54] sm:$0xf]
    %v6176 = vld [vmem:[#allocation10 + $0x58] sm:$0xf]
    %v6177 = vld [vmem:[#allocation10 + $0x5c] sm:$0xf]
    %v6178 = vld [vmem:[#allocation10 + $0x60] sm:$0xf]
    %v6179 = vld [vmem:[#allocation10 + $0x64] sm:$0xf]
    %v6180 = vld [vmem:[#allocation10 + $0x68] sm:$0xf]
    %v6181 = vld [vmem:[#allocation10 + $0x6c] sm:$0xf]
    %v6182 = vld [vmem:[#allocation10 + $0x70] sm:$0xf]
    %v6183 = vld [vmem:[#allocation10 + $0x74] sm:$0xf]
    %v6184 = vld [vmem:[#allocation10 + $0x78] sm:$0xf]
    %v6185 = vld [vmem:[#allocation10 + $0x7c] sm:$0xf]
    %v6186 = vld [vmem:[#allocation10 + $0x80] sm:$0xf]
    %v6187 = vld [vmem:[#allocation10 + $0x84] sm:$0xf]
    %v6188 = vld [vmem:[#allocation10 + $0x88] sm:$0xf]
    %v6189 = vld [vmem:[#allocation10 + $0x8c] sm:$0xf]
    %v6190 = vld [vmem:[#allocation10 + $0x90] sm:$0xf]
    %v6191 = vld [vmem:[#allocation10 + $0x94] sm:$0xf]
    %v6192 = vld [vmem:[#allocation10 + $0x98] sm:$0xf]
    %v6193 = vld [vmem:[#allocation10 + $0x9c] sm:$0xf]
    %v6194 = vld [vmem:[#allocation10 + $0xa0] sm:$0xf]
    %v6195 = vld [vmem:[#allocation10 + $0xa4] sm:$0xf]
    %v6196 = vld [vmem:[#allocation10 + $0xa8] sm:$0xf]
    %v6197 = vld [vmem:[#allocation10 + $0xac] sm:$0xf]
    %v6198 = vld [vmem:[#allocation10 + $0xb0] sm:$0xf]
    %v6199 = vld [vmem:[#allocation10 + $0xb4] sm:$0xf]
    %v6200 = vld [vmem:[#allocation10 + $0xb8] sm:$0xf]
    %v6201 = vld [vmem:[#allocation10 + $0xbc] sm:$0xf]
    %v6202 = vld [vmem:[#allocation10 + $0xc0] sm:$0xf]
    %v6203 = vld [vmem:[#allocation10 + $0xc4] sm:$0xf]
    %v6204 = vld [vmem:[#allocation10 + $0xc8] sm:$0xf]
    %v6205 = vld [vmem:[#allocation10 + $0xcc] sm:$0xf]
    %v6206 = vld [vmem:[#allocation10 + $0xd0] sm:$0xf]
    %v6207 = vld [vmem:[#allocation10 + $0xd4] sm:$0xf]
    %v6208 = vld [vmem:[#allocation10 + $0xd8] sm:$0xf]
    %v6209 = vld [vmem:[#allocation10 + $0xdc] sm:$0xf]
    %v6210 = vld [vmem:[#allocation10 + $0xe0] sm:$0xf]
    %v6211 = vld [vmem:[#allocation10 + $0xe4] sm:$0xf]
    %v6212 = vld [vmem:[#allocation10 + $0xe8] sm:$0xf]
    %v6213 = vld [vmem:[#allocation10 + $0xec] sm:$0xf]
    %v6214 = vld [vmem:[#allocation10 + $0xf0] sm:$0xf]
    %v6215 = vld [vmem:[#allocation10 + $0xf4] sm:$0xf]
    %v6216 = vld [vmem:[#allocation10 + $0xf8] sm:$0xf]
    %v6217 = vld [vmem:[#allocation10 + $0xfc] sm:$0xf]
    %v6218 = vld [vmem:[#allocation12] sm:$0x1]
    %v6220 = vlaneseq
    %v6221 = vshrl.u32 %v6220, 7
    %v6222 = vsub.s32 0, %v6221
    %v6223 = vrot.slane %v6218, %v6222
    %v6289 = vunpack.c.l.b16 %v6154
    %v6290 = vunpack.c.l.b16 %v6155
    %v6291 = vunpack.c.l.b16 %v6156
    %v6292 = vunpack.c.l.b16 %v6157
    %v6293 = vunpack.c.l.b16 %v6158
    %v6294 = vunpack.c.l.b16 %v6159
    %v6295 = vunpack.c.l.b16 %v6160
    %v6296 = vunpack.c.l.b16 %v6161
    %v6297 = vunpack.c.l.b16 %v6162
    %v6298 = vunpack.c.l.b16 %v6163
    %v6299 = vunpack.c.l.b16 %v6164
    %v6300 = vunpack.c.l.b16 %v6165
    %v6301 = vunpack.c.l.b16 %v6166
    %v6302 = vunpack.c.l.b16 %v6167
    %v6303 = vunpack.c.l.b16 %v6168
    %v6304 = vunpack.c.l.b16 %v6169
    %v6305 = vunpack.c.l.b16 %v6170
    %v6306 = vunpack.c.l.b16 %v6171
    %v6307 = vunpack.c.l.b16 %v6172
    %v6308 = vunpack.c.l.b16 %v6173
    %v6309 = vunpack.c.l.b16 %v6174
    %v6310 = vunpack.c.l.b16 %v6175
    %v6311 = vunpack.c.l.b16 %v6176
    %v6312 = vunpack.c.l.b16 %v6177
    %v6313 = vunpack.c.l.b16 %v6178
    %v6314 = vunpack.c.l.b16 %v6179
    %v6315 = vunpack.c.l.b16 %v6180
    %v6316 = vunpack.c.l.b16 %v6181
    %v6317 = vunpack.c.l.b16 %v6182
    %v6318 = vunpack.c.l.b16 %v6183
    %v6319 = vunpack.c.l.b16 %v6184
    %v6320 = vunpack.c.l.b16 %v6185
    %v6321 = vunpack.c.l.b16 %v6186
    %v6322 = vunpack.c.l.b16 %v6187
    %v6323 = vunpack.c.l.b16 %v6188
    %v6324 = vunpack.c.l.b16 %v6189
    %v6325 = vunpack.c.l.b16 %v6190
    %v6326 = vunpack.c.l.b16 %v6191
    %v6327 = vunpack.c.l.b16 %v6192
    %v6328 = vunpack.c.l.b16 %v6193
    %v6329 = vunpack.c.l.b16 %v6194
    %v6330 = vunpack.c.l.b16 %v6195
    %v6331 = vunpack.c.l.b16 %v6196
    %v6332 = vunpack.c.l.b16 %v6197
    %v6333 = vunpack.c.l.b16 %v6198
    %v6334 = vunpack.c.l.b16 %v6199
    %v6335 = vunpack.c.l.b16 %v6200
    %v6336 = vunpack.c.l.b16 %v6201
    %v6337 = vunpack.c.l.b16 %v6202
    %v6338 = vunpack.c.l.b16 %v6203
    %v6339 = vunpack.c.l.b16 %v6204
    %v6340 = vunpack.c.l.b16 %v6205
    %v6341 = vunpack.c.l.b16 %v6206
    %v6342 = vunpack.c.l.b16 %v6207
    %v6343 = vunpack.c.l.b16 %v6208
    %v6344 = vunpack.c.l.b16 %v6209
    %v6345 = vunpack.c.l.b16 %v6210
    %v6346 = vunpack.c.l.b16 %v6211
    %v6347 = vunpack.c.l.b16 %v6212
    %v6348 = vunpack.c.l.b16 %v6213
    %v6349 = vunpack.c.l.b16 %v6214
    %v6350 = vunpack.c.l.b16 %v6215
    %v6351 = vunpack.c.l.b16 %v6216
    %v6352 = vunpack.c.l.b16 %v6217
    %v6353 = vpack.c.b16 %v6290, %v6289
    %v6354 = vpack.c.b16 %v6292, %v6291
    %v6355 = vpack.c.b16 %v6294, %v6293
    %v6356 = vpack.c.b16 %v6296, %v6295
    %v6357 = vpack.c.b16 %v6298, %v6297
    %v6358 = vpack.c.b16 %v6300, %v6299
    %v6359 = vpack.c.b16 %v6302, %v6301
    %v6360 = vpack.c.b16 %v6304, %v6303
    %v6361 = vpack.c.b16 %v6306, %v6305
    %v6362 = vpack.c.b16 %v6308, %v6307
    %v6363 = vpack.c.b16 %v6310, %v6309
    %v6364 = vpack.c.b16 %v6312, %v6311
    %v6365 = vpack.c.b16 %v6314, %v6313
    %v6366 = vpack.c.b16 %v6316, %v6315
    %v6367 = vpack.c.b16 %v6318, %v6317
    %v6368 = vpack.c.b16 %v6320, %v6319
    %v6369 = vpack.c.b16 %v6322, %v6321
    %v6370 = vpack.c.b16 %v6324, %v6323
    %v6371 = vpack.c.b16 %v6326, %v6325
    %v6372 = vpack.c.b16 %v6328, %v6327
    %v6373 = vpack.c.b16 %v6330, %v6329
    %v6374 = vpack.c.b16 %v6332, %v6331
    %v6375 = vpack.c.b16 %v6334, %v6333
    %v6376 = vpack.c.b16 %v6336, %v6335
    %v6377 = vpack.c.b16 %v6338, %v6337
    %v6378 = vpack.c.b16 %v6340, %v6339
    %v6379 = vpack.c.b16 %v6342, %v6341
    %v6380 = vpack.c.b16 %v6344, %v6343
    %v6381 = vpack.c.b16 %v6346, %v6345
    %v6382 = vpack.c.b16 %v6348, %v6347
    %v6383 = vpack.c.b16 %v6350, %v6349
    %v6384 = vpack.c.b16 %v6352, %v6351
    %6417 = vmatprep.subr.bf16.mxu0 0
    %6418 = vmatpush1.bf16.msra.mxu0 %v6353
    %6419 = vmatprep.subr.bf16.mxu0 0
    %6420 = vmatpush1.bf16.msra.mxu0 %v6354
    %6421 = vmatprep.subr.bf16.mxu0 0
    %6422 = vmatpush1.bf16.msra.mxu0 %v6355
    %6423 = vmatprep.subr.bf16.mxu0 0
    %6424 = vmatpush1.bf16.msra.mxu0 %v6356
    %6425 = vmatprep.subr.bf16.mxu0 0
    %6426 = vmatpush1.bf16.msra.mxu0 %v6357
    %6427 = vmatprep.subr.bf16.mxu0 0
    %6428 = vmatpush1.bf16.msra.mxu0 %v6358
    %6429 = vmatprep.subr.bf16.mxu0 0
    %6430 = vmatpush1.bf16.msra.mxu0 %v6359
    %6431 = vmatprep.subr.bf16.mxu0 0
    %6432 = vmatpush1.bf16.msra.mxu0 %v6360
    %6433 = vmatprep.subr.bf16.mxu0 0
    %6434 = vmatpush1.bf16.msra.mxu0 %v6361
    %6435 = vmatprep.subr.bf16.mxu0 0
    %6436 = vmatpush1.bf16.msra.mxu0 %v6362
    %6437 = vmatprep.subr.bf16.mxu0 0
    %6438 = vmatpush1.bf16.msra.mxu0 %v6363
    %6439 = vmatprep.subr.bf16.mxu0 0
    %6440 = vmatpush1.bf16.msra.mxu0 %v6364
    %6441 = vmatprep.subr.bf16.mxu0 0
    %6442 = vmatpush1.bf16.msra.mxu0 %v6365
    %6443 = vmatprep.subr.bf16.mxu0 0
    %6444 = vmatpush1.bf16.msra.mxu0 %v6366
    %6445 = vmatprep.subr.bf16.mxu0 0
    %6446 = vmatpush1.bf16.msra.mxu0 %v6367
    %6447 = vmatprep.subr.bf16.mxu0 0
    %6448 = vmatpush1.bf16.msra.mxu0 %v6368
    %6449 = vmatprep.mubr.bf16.mxu0 %v6151
    %6450 = vmatmul.mubr.bf16.gmra.mrb[0].mxu0 %v6150
    %v6451 = vpop.f32.mrb[0].mxu0
    %v6452 = vadd.f32 %v6223, %v6451
    %v6453 = vpop.f32.mrb[0].mxu0
    %v6454 = vpop.f32.mrb[0].mxu0
    %v6455 = vpop.f32.mrb[0].mxu0
    %6456 = vdwg.mxu0
    %6457 = vmatprep.subr.bf16.mxu0 0
    %6458 = vmatpush1.bf16.msra.mxu0 %v6369
    %6459 = vmatprep.subr.bf16.mxu0 0
    %6460 = vmatpush1.bf16.msra.mxu0 %v6370
    %6461 = vmatprep.subr.bf16.mxu0 0
    %6462 = vmatpush1.bf16.msra.mxu0 %v6371
    %6463 = vmatprep.subr.bf16.mxu0 0
    %6464 = vmatpush1.bf16.msra.mxu0 %v6372
    %6465 = vmatprep.subr.bf16.mxu0 0
    %6466 = vmatpush1.bf16.msra.mxu0 %v6373
    %6467 = vmatprep.subr.bf16.mxu0 0
    %6468 = vmatpush1.bf16.msra.mxu0 %v6374
    %6469 = vmatprep.subr.bf16.mxu0 0
    %6470 = vmatpush1.bf16.msra.mxu0 %v6375
    %6471 = vmatprep.subr.bf16.mxu0 0
    %6472 = vmatpush1.bf16.msra.mxu0 %v6376
    %6473 = vmatprep.subr.bf16.mxu0 0
    %6474 = vmatpush1.bf16.msra.mxu0 %v6377
    %6475 = vmatprep.subr.bf16.mxu0 0
    %6476 = vmatpush1.bf16.msra.mxu0 %v6378
    %6477 = vmatprep.subr.bf16.mxu0 0
    %6478 = vmatpush1.bf16.msra.mxu0 %v6379
    %6479 = vmatprep.subr.bf16.mxu0 0
    %6480 = vmatpush1.bf16.msra.mxu0 %v6380
    %6481 = vmatprep.subr.bf16.mxu0 0
    %6482 = vmatpush1.bf16.msra.mxu0 %v6381
    %6483 = vmatprep.subr.bf16.mxu0 0
    %6484 = vmatpush1.bf16.msra.mxu0 %v6382
    %6485 = vmatprep.subr.bf16.mxu0 0
    %6486 = vmatpush1.bf16.msra.mxu0 %v6383
    %6487 = vmatprep.subr.bf16.mxu0 0
    %6488 = vmatpush1.bf16.msra.mxu0 %v6384
    %6489 = vmatprep.mubr.bf16.mxu0 %v6153
    %6490 = vmatmul.mubr.bf16.gmra.mrb[0].mxu0 %v6152
    %v6491 = vpop.f32.mrb[0].mxu0
    %v6492 = vadd.f32 %v6452, %v6491
    %v6493 = vpop.f32.mrb[0].mxu0
    %v6494 = vpop.f32.mrb[0].mxu0
    %v6495 = vpop.f32.mrb[0].mxu0
    %6496 = vdwg.mxu0
    %v6497 = vpack.c.bf16 %v6492, %v6492
    %v6498 = vld [vmem:[#allocation13] sm:$0xf]
    %v6499 = vld [vmem:[#allocation13 + $0x4] sm:$0xf]
    %v6500 = vld [vmem:[#allocation13 + $0x8] sm:$0xf]
    %v6501 = vld [vmem:[#allocation13 + $0xc] sm:$0xf]
    %v6502 = vld [vmem:[#allocation13 + $0x10] sm:$0xf]
    %v6503 = vld [vmem:[#allocation13 + $0x14] sm:$0xf]
    %v6504 = vld [vmem:[#allocation13 + $0x18] sm:$0xf]
    %v6505 = vld [vmem:[#allocation13 + $0x1c] sm:$0xf]
    %v6506 = vld [vmem:[#allocation13 + $0x20] sm:$0xf]
    %v6507 = vld [vmem:[#allocation13 + $0x24] sm:$0xf]
    %v6508 = vld [vmem:[#allocation13 + $0x28] sm:$0xf]
    %v6509 = vld [vmem:[#allocation13 + $0x2c] sm:$0xf]
    %v6510 = vld [vmem:[#allocation13 + $0x30] sm:$0xf]
    %v6511 = vld [vmem:[#allocation13 + $0x34] sm:$0xf]
    %v6512 = vld [vmem:[#allocation13 + $0x38] sm:$0xf]
    %v6513 = vld [vmem:[#allocation13 + $0x3c] sm:$0xf]
    %v6514 = vld [vmem:[#allocation15] sm:$0x1]
    %v6516 = vlaneseq
    %v6517 = vshrl.u32 %v6516, 7
    %v6518 = vsub.s32 0, %v6517
    %v6519 = vrot.slane %v6514, %v6518
    %v6537 = vunpack.c.l.b16 %v6498
    %v6538 = vunpack.c.l.b16 %v6499
    %v6539 = vunpack.c.l.b16 %v6500
    %v6540 = vunpack.c.l.b16 %v6501
    %v6541 = vunpack.c.l.b16 %v6502
    %v6542 = vunpack.c.l.b16 %v6503
    %v6543 = vunpack.c.l.b16 %v6504
    %v6544 = vunpack.c.l.b16 %v6505
    %v6545 = vunpack.c.l.b16 %v6506
    %v6546 = vunpack.c.l.b16 %v6507
    %v6547 = vunpack.c.l.b16 %v6508
    %v6548 = vunpack.c.l.b16 %v6509
    %v6549 = vunpack.c.l.b16 %v6510
    %v6550 = vunpack.c.l.b16 %v6511
    %v6551 = vunpack.c.l.b16 %v6512
    %v6552 = vunpack.c.l.b16 %v6513
    %v6553 = vpack.c.b16 %v6538, %v6537
    %v6554 = vpack.c.b16 %v6540, %v6539
    %v6555 = vpack.c.b16 %v6542, %v6541
    %v6556 = vpack.c.b16 %v6544, %v6543
    %v6557 = vpack.c.b16 %v6546, %v6545
    %v6558 = vpack.c.b16 %v6548, %v6547
    %v6559 = vpack.c.b16 %v6550, %v6549
    %v6560 = vpack.c.b16 %v6552, %v6551
    %6569 = vmatprep.subr.bf16.mxu0 0
    %6570 = vmatpush1.bf16.msra.mxu0 %v6553
    %6571 = vmatprep.subr.bf16.mxu0 0
    %6572 = vmatpush1.bf16.msra.mxu0 %v6554
    %6573 = vmatprep.subr.bf16.mxu0 0
    %6574 = vmatpush1.bf16.msra.mxu0 %v6555
    %6575 = vmatprep.subr.bf16.mxu0 0
    %6576 = vmatpush1.bf16.msra.mxu0 %v6556
    %6577 = vmatprep.subr.bf16.mxu0 0
    %6578 = vmatpush1.bf16.msra.mxu0 %v6557
    %6579 = vmatprep.subr.bf16.mxu0 0
    %6580 = vmatpush1.bf16.msra.mxu0 %v6558
    %6581 = vmatprep.subr.bf16.mxu0 0
    %6582 = vmatpush1.bf16.msra.mxu0 %v6559
    %6583 = vmatprep.subr.bf16.mxu0 0
    %6584 = vmatpush1.bf16.msra.mxu0 %v6560
    %6585 = vmatprep.subr.bf16.mxu0 0
    %6586 = vmatpush1.bf16.msra.mxu0 0
    %6587 = vmatprep.subr.bf16.mxu0 0
    %6588 = vmatpush1.bf16.msra.mxu0 0
    %6589 = vmatprep.subr.bf16.mxu0 0
    %6590 = vmatpush1.bf16.msra.mxu0 0
    %6591 = vmatprep.subr.bf16.mxu0 0
    %6592 = vmatpush1.bf16.msra.mxu0 0
    %6593 = vmatprep.subr.bf16.mxu0 0
    %6594 = vmatpush1.bf16.msra.mxu0 0
    %6595 = vmatprep.subr.bf16.mxu0 0
    %6596 = vmatpush1.bf16.msra.mxu0 0
    %6597 = vmatprep.subr.bf16.mxu0 0
    %6598 = vmatpush1.bf16.msra.mxu0 0
    %6599 = vmatprep.subr.bf16.mxu0 0
    %6600 = vmatpush1.bf16.msra.mxu0 0
    %6601 = vmatprep.mubr.bf16.mxu0 0
    %6602 = vmatmul.mubr.bf16.gmra.mrb[0].mxu0 %v6497
    %v6603 = vpop.f32.mrb[0].mxu0
    %v6604 = vadd.f32 %v6519, %v6603
    %v6605 = vpop.f32.mrb[0].mxu0
    %v6606 = vpop.f32.mrb[0].mxu0
    %v6607 = vpop.f32.mrb[0].mxu0
    %6608 = vdwg.mxu0
    %6609 = vst [vmem:[%s11] sm:$0xff] %v6604
    // Predicated region
    $region82: #{siamese_forward.1} parent=1 // pred_check
      _
    $region83: #{siamese_forward.1} parent=1 // pred_check_branch
      %6611 = sbr.rel (0) target = $region85
    $region84: #{siamese_forward.1} parent=1 // pred_region
      _
    $region85: #{siamese_forward.1} parent=1 // pred_fallthru
      _
    // Predicated region
    $region86: #{siamese_forward.1} parent=1 // pred_check
      _
    $region87: #{siamese_forward.1} parent=1 // pred_check_branch
      %6613 = sbr.rel (0) target = $region89
    $region88: #{siamese_forward.1} parent=1 // pred_region
      _
    $region89: #{siamese_forward.1} parent=1 // pred_fallthru
      _
    %6614 = vsyncpa [#allocation3], 1
    %6615 = vsyncpa [#allocation5], 1
    %6616 = vsyncpa [#allocation8], 1
    %6617 = vsyncpa [#allocation11], 1
    %6618 = vsyncpa [#allocation14], 1

</llo_original>
